<compile_context>
chip_gen: v7x
topology: tpu7x:2x2x1
jax: 0.10.0
libtpu: 0.0.40
codegen_flags: <defaults>
</compile_context>

<pallas_src>
import functools
import math

import jax
import jax.numpy as jnp
from jax.experimental import pallas as pl
from jax.experimental.pallas import tpu as pltpu

_BN_EPS = 1e-5


# ----------------------------------------------------------------------------
# Pallas kernel: conv-as-GEMM in transposed, lane-dense [C, M] layout with
# optional residual / ReLU / channel-gate epilogues.
# ----------------------------------------------------------------------------
def _fused_conv_kernel(*refs, relu, has_res, has_gate):
    it = iter(refs)
    p_ref = next(it)                        # [K, tm]    f32  im2col patches^T
    w_ref = next(it)                        # [Cout, K]  f32  BN (and gate) folded
    b_ref = next(it)                        # [Cout, 1]  f32  folded bias
    r_ref = next(it) if has_res else None   # [Cout, tm] f32  identity skip
    g_ref = next(it) if has_gate else None  # [Cout, 1]  f32  sigmoid(s*mask)
    o_ref = next(it)                        # [Cout, tm]

    # out^T tile [Cout, tm] with M on the 128-lane axis -> unmasked stores.
    acc = jnp.dot(w_ref[...], p_ref[...], preferred_element_type=jnp.float32)
    acc = acc + b_ref[...]
    if has_res:
        acc = acc + r_ref[...]
    if relu:
        acc = jnp.maximum(acc, 0.0)
    if has_gate:
        acc = acc * g_ref[...]
    o_ref[...] = acc.astype(o_ref.dtype)


# ----------------------------------------------------------------------------
# pallas_call wrapper
# ----------------------------------------------------------------------------
def _num_m_steps(m):
    # Full-M tile (1 step) by default: v5e/v6e have a single TensorCore, and
    # each extra grid step costs ~0.35us.  Only the largest layers (M >= 1024)
    # are split in two so v7x's second TensorCore gets work.
    if m >= 1024 and m % 256 == 0:
        return 2
    return 1


def fused_conv(patches, wT, bias, *, residual=None, gate=None, relu=False):
    """All operands in channels x M (transposed, lane-dense) f32 layout."""
    K, M = patches.shape
    cout = wT.shape[0]

    # Sublane-align K (only the stem conv: 27 -> 32).
    if K % 8:
        kpad = (-K) % 8
        patches = jnp.pad(patches, ((0, kpad), (0, 0)))
        wT = jnp.pad(wT, ((0, 0), (0, kpad)))
        K += kpad

    nsteps = _num_m_steps(M)
    tm = M // nsteps

    inputs = [patches, wT, bias]
    in_specs = [
        pl.BlockSpec((K, tm), lambda i: (0, i)),
        pl.BlockSpec((cout, K), lambda i: (0, 0)),
        pl.BlockSpec((cout, 1), lambda i: (0, 0)),
    ]
    bytes_accessed = 4 * (K * M + cout * K + cout + cout * M)
    if residual is not None:
        inputs.append(residual)
        in_specs.append(pl.BlockSpec((cout, tm), lambda i: (0, i)))
        bytes_accessed += 4 * cout * M
    if gate is not None:
        inputs.append(gate)
        in_specs.append(pl.BlockSpec((cout, 1), lambda i: (0, 0)))
        bytes_accessed += 4 * cout

    kernel = functools.partial(
        _fused_conv_kernel, relu=relu,
        has_res=residual is not None, has_gate=gate is not None)

    return pl.pallas_call(
        kernel,
        out_shape=jax.ShapeDtypeStruct((cout, M), jnp.float32),
        grid=(nsteps,),
        in_specs=in_specs,
        out_specs=pl.BlockSpec((cout, tm), lambda i: (0, i)),
        compiler_params=pltpu.CompilerParams(dimension_semantics=("parallel",)),
        cost_estimate=pl.CostEstimate(
            flops=2 * cout * K * M, transcendentals=0,
            bytes_accessed=bytes_accessed),
    )(*inputs)


# ----------------------------------------------------------------------------
# Conv glue: transposed im2col (tap stack) + BN/gate fold into weights
# ----------------------------------------------------------------------------
def _im2col_T(xT, spatial, cin, ksize, stride):
    """xT: [Cin, N*H*W] -> patches^T [k*k*Cin, N*OH*OW] and output spatial."""
    N, H, W = spatial
    pad = (ksize - 1) // 2          # 1 for 3x3 convs, 0 for 1x1 downsample
    x = xT.reshape(cin, N, H, W)
    if pad:
        x = jnp.pad(x, ((0, 0), (0, 0), (pad, pad), (pad, pad)))
    Hp, Wp = H + 2 * pad, W + 2 * pad
    OH = (Hp - ksize) // stride + 1
    OW = (Wp - ksize) // stride + 1
    taps = []
    for kh in range(ksize):
        for kw in range(ksize):
            taps.append(x[:, :, kh:kh + stride * (OH - 1) + 1:stride,
                             kw:kw + stride * (OW - 1) + 1:stride])
    p = jnp.concatenate(taps, axis=0) if len(taps) > 1 else taps[0]
    return p.reshape(ksize * ksize * cin, N * OH * OW), (N, OH, OW)


def _fold_bn_weight(w, bn_scale, bn_bias, gate=None):
    """w: [KH, KW, Cin, Cout] -> (wT [Cout, K], bias [Cout, 1]) with BN scale
    (and optional channel gate) folded in."""
    cout = w.shape[-1]
    s = bn_scale if gate is None else bn_scale * gate
    b = bn_bias if gate is None else bn_bias * gate
    wT = jnp.transpose(w.reshape(-1, cout) * s[None, :]).astype(jnp.float32)
    return wT, b.reshape(cout, 1).astype(jnp.float32)


# ----------------------------------------------------------------------------
# Parameters (deterministic, matches __init__ shapes; layers = [1, 1, 1])
# ----------------------------------------------------------------------------
def _kaiming_conv(key, kh, kw, cin, cout):
    fan_out = kh * kw * cout
    std = math.sqrt(2.0 / fan_out)
    return std * jax.random.normal(key, (kh, kw, cin, cout), jnp.float32)


def _bn_fold(c):
    # gamma=1, beta=0, running_mean=0, running_var=1 (module default init)
    gamma = jnp.ones((c,), jnp.float32)
    beta = jnp.zeros((c,), jnp.float32)
    mean = jnp.zeros((c,), jnp.float32)
    var = jnp.ones((c,), jnp.float32)
    scale = gamma / jnp.sqrt(var + _BN_EPS)
    bias = beta - mean * scale
    return scale, bias


def make_params(key, nf=16):
    keys = jax.random.split(key, 16)
    ki = iter(keys)
    p = {"conv1_w": _kaiming_conv(next(ki), 3, 3, 3, nf)}

    def make_block(cin, cout, stride):
        blk = {
            "conv1_w": _kaiming_conv(next(ki), 3, 3, cin, cout),
            "conv2_w": _kaiming_conv(next(ki), 3, 3, cout, cout),
        }
        blk["bn1_scale"], blk["bn1_bias"] = _bn_fold(cout)
        blk["bn2_scale"], blk["bn2_bias"] = _bn_fold(cout)
        if stride != 1 or cin != cout:
            blk["ds_w"] = _kaiming_conv(next(ki), 1, 1, cin, cout)
            blk["ds_scale"], blk["ds_bias"] = _bn_fold(cout)
        return blk

    p["layer1"] = [make_block(nf, nf, 1)]
    p["layer2"] = [make_block(nf, 2 * nf, 2)]
    p["layer3"] = [make_block(2 * nf, 4 * nf, 2)]

    p["mask_e1"] = jax.random.normal(next(ki), (nf,), jnp.float32)
    p["mask_e2"] = jax.random.normal(next(ki), (2 * nf,), jnp.float32)
    p["mask_e3"] = jax.random.normal(next(ki), (4 * nf,), jnp.float32)
    return p


# ----------------------------------------------------------------------------
# Forward pass
# ----------------------------------------------------------------------------
def basic_block(xT, spatial, blk, stride, gate):
    """BasicBlock: conv3x3-bn-relu-conv3x3-bn (+downsample) -add-relu, then the
    stage-level channel gate (fused into the last conv's weights or epilogue)."""
    cin = blk["conv1_w"].shape[2]
    cout = blk["conv1_w"].shape[-1]

    # conv1 -> bn1 -> relu
    p1, sp1 = _im2col_T(xT, spatial, cin, 3, stride)
    w1, b1 = _fold_bn_weight(blk["conv1_w"], blk["bn1_scale"], blk["bn1_bias"])
    h = fused_conv(p1, w1, b1, relu=True)

    # conv2 -> bn2 (+ skip) -> add -> relu (-> gate)
    p2, sp2 = _im2col_T(h, sp1, cout, 3, 1)
    if "ds_w" in blk:
        # Gate folds into both branches (gate >= 0 commutes with ReLU);
        # downsample branch fused into the main GEMM by K-concatenation.
        w2, b2 = _fold_bn_weight(blk["conv2_w"], blk["bn2_scale"],
                                 blk["bn2_bias"], gate=gate)
        wd, bd = _fold_bn_weight(blk["ds_w"], blk["ds_scale"],
                                 blk["ds_bias"], gate=gate)
        pd, _ = _im2col_T(xT, spatial, cin, 1, stride)
        patches = jnp.concatenate([p2, pd], axis=0)
        wT = jnp.concatenate([w2, wd], axis=1)
        bias = b2 + bd
        out = fused_conv(patches, wT, bias, relu=True)
    else:
        # Identity skip cannot absorb the gate -> explicit epilogue multiply.
        w2, b2 = _fold_bn_weight(blk["conv2_w"], blk["bn2_scale"], blk["bn2_bias"])
        gcol = gate.reshape(cout, 1).astype(jnp.float32)
        out = fused_conv(p2, w2, b2, residual=xT, gate=gcol, relu=True)
    return out, sp2


def resnet_forward(x_nchw, params, s=400.0):
    N, C, H, W = x_nchw.shape
    # NCHW -> transposed, lane-dense layout [C, N*H*W]
    xT = jnp.transpose(x_nchw, (1, 0, 2, 3)).reshape(C, N * H * W).astype(jnp.float32)
    spatial = (N, H, W)
    nf = params["mask_e1"].shape[0]

    # forward() applies conv1 only (bn1 / relu are defined but not used there)
    p0, spatial = _im2col_T(xT, spatial, C, 3, 1)
    w0 = jnp.transpose(params["conv1_w"].reshape(-1, nf)).astype(jnp.float32)
    b0 = jnp.zeros((nf, 1), jnp.float32)
    xT = fused_conv(p0, w0, b0, relu=False)

    g1 = jax.nn.sigmoid(s * params["mask_e1"]).astype(jnp.float32)
    g2 = jax.nn.sigmoid(s * params["mask_e2"]).astype(jnp.float32)
    g3 = jax.nn.sigmoid(s * params["mask_e3"]).astype(jnp.float32)

    xT, spatial = basic_block(xT, spatial, params["layer1"][0], 1, g1)
    xT, spatial = basic_block(xT, spatial, params["layer2"][0], 2, g2)
    xT, spatial = basic_block(xT, spatial, params["layer3"][0], 2, g3)

    # AvgPool2d(8, stride=1) on the 8x8 map == global spatial mean; per-channel
    # gate was already folded into layer3's last conv.  x.view(x.size(0), -1).
    n, oh, ow = spatial
    cfin = xT.shape[0]
    pooled = xT.reshape(cfin, n, oh * ow).mean(axis=-1)   # [4*nf, N]
    return jnp.transpose(pooled)                          # [N, 4*nf]


# ----------------------------------------------------------------------------
if __name__ == "__main__":
    key = jax.random.PRNGKey(0)
    k_param, k_x = jax.random.split(key)

    nf = 16  # module default
    params = make_params(k_param, nf=nf)

    # CIFAR-style NCHW input: spatial must be 32 so the 8x8 AvgPool after two
    # stride-2 stages collapses to 1x1.
    x = jax.random.normal(k_x, (2, 3, 32, 32), jnp.float32)

    fwd = jax.jit(resnet_forward)
    out = jax.block_until_ready(fwd(x, params))

    assert out.shape == (2, 4 * nf), out.shape
    assert bool(jnp.all(jnp.isfinite(out)))
    print("KERNEL_OK")
</pallas_src>

<mosaic_0001>
module attributes {stable_mosaic.version = 11 : i64} {
  func.func @_fused_conv_kernel(%arg0: i32, %arg1: memref<32x1024xf32, #tpu.memory_space<vmem>>, %arg2: memref<16x32xf32, #tpu.memory_space<vmem>>, %arg3: memref<16x1xf32, #tpu.memory_space<vmem>>, %arg4: memref<16x1024xf32, #tpu.memory_space<vmem>>) attributes {dimension_semantics = [#tpu.dimension_semantics<parallel>], iteration_bounds = array<i64: 2>, scalar_prefetch = 0 : i64, scratch_operands = 0 : i64, tpu.core_type = #tpu.core_type<tc>, window_params = [{transform_indices = @transform_0, window_bounds = array<i64: 32, 1024>}, {pipeline_mode = #tpu.pipeline_mode<synchronous>, transform_indices = @transform_1, window_bounds = array<i64: 16, 32>}, {pipeline_mode = #tpu.pipeline_mode<synchronous>, transform_indices = @transform_2, window_bounds = array<i64: 16, 1>}, {transform_indices = @transform_3, window_bounds = array<i64: 16, 1024>}]} {
    %c0 = arith.constant 0 : index
    %c0_0 = arith.constant 0 : index
    %0 = vector.load %arg2[%c0, %c0_0] : memref<16x32xf32, #tpu.memory_space<vmem>>, vector<16x32xf32>
    %c0_1 = arith.constant 0 : index
    %c0_2 = arith.constant 0 : index
    %1 = vector.load %arg1[%c0_1, %c0_2] : memref<32x1024xf32, #tpu.memory_space<vmem>>, vector<32x1024xf32>
    %cst = arith.constant dense<0.000000e+00> : vector<16x1024xf32>
    %2 = tpu.matmul %0, %1, %cst {dimension_numbers = #tpu.dot_dimension_numbers<[1], [0], [0], [1], [0, 0, 1, 1], [], []>} : vector<16x32xf32>, vector<32x1024xf32>, vector<16x1024xf32> -> vector<16x1024xf32>
    %c0_3 = arith.constant 0 : index
    %c0_4 = arith.constant 0 : index
    %3 = vector.load %arg3[%c0_3, %c0_4] : memref<16x1xf32, #tpu.memory_space<vmem>>, vector<16x1xf32>
    %4 = vector.broadcast %3 : vector<16x1xf32> to vector<16x1024xf32>
    %5 = arith.addf %2, %4 : vector<16x1024xf32>
    %c0_5 = arith.constant 0 : index
    %c0_6 = arith.constant 0 : index
    %6 = vector.load %arg4[%c0_5, %c0_6] : memref<16x1024xf32, #tpu.memory_space<vmem>>, vector<16x1024xf32>
    tpu.vector_store %arg4[%c0_5, %c0_6], %5 {strides = array<i32>} : memref<16x1024xf32, #tpu.memory_space<vmem>>, vector<16x1024xf32>,
    return
  }
  func.func @transform_0(%arg0: i32) -> (i32, i32) {
    %c0_i32 = arith.constant 0 : i32
    %c0_i32_0 = arith.constant 0 : i32
    return %c0_i32, %arg0 : i32, i32
  }
  func.func @transform_1(%arg0: i32) -> (i32, i32) {
    %c0_i32 = arith.constant 0 : i32
    %c0_i32_0 = arith.constant 0 : i32
    %c0_i32_1 = arith.constant 0 : i32
    return %c0_i32, %c0_i32_0 : i32, i32
  }
  func.func @transform_2(%arg0: i32) -> (i32, i32) {
    %c0_i32 = arith.constant 0 : i32
    %c0_i32_0 = arith.constant 0 : i32
    %c0_i32_1 = arith.constant 0 : i32
    return %c0_i32, %c0_i32_0 : i32, i32
  }
  func.func @transform_3(%arg0: i32) -> (i32, i32) {
    %c0_i32 = arith.constant 0 : i32
    %c0_i32_0 = arith.constant 0 : i32
    return %c0_i32, %arg0 : i32, i32
  }
}

module attributes {stable_mosaic.version = 11 : i64} {
  func.func @_fused_conv_kernel(%arg0: i32, %arg1: memref<144x1024xf32, #tpu.memory_space<vmem>>, %arg2: memref<16x144xf32, #tpu.memory_space<vmem>>, %arg3: memref<16x1xf32, #tpu.memory_space<vmem>>, %arg4: memref<16x1024xf32, #tpu.memory_space<vmem>>) attributes {dimension_semantics = [#tpu.dimension_semantics<parallel>], iteration_bounds = array<i64: 2>, scalar_prefetch = 0 : i64, scratch_operands = 0 : i64, tpu.core_type = #tpu.core_type<tc>, window_params = [{transform_indices = @transform_0, window_bounds = array<i64: 144, 1024>}, {pipeline_mode = #tpu.pipeline_mode<synchronous>, transform_indices = @transform_1, window_bounds = array<i64: 16, 144>}, {pipeline_mode = #tpu.pipeline_mode<synchronous>, transform_indices = @transform_2, window_bounds = array<i64: 16, 1>}, {transform_indices = @transform_3, window_bounds = array<i64: 16, 1024>}]} {
    %c0 = arith.constant 0 : index
    %c0_0 = arith.constant 0 : index
    %0 = vector.load %arg2[%c0, %c0_0] : memref<16x144xf32, #tpu.memory_space<vmem>>, vector<16x144xf32>
    %c0_1 = arith.constant 0 : index
    %c0_2 = arith.constant 0 : index
    %1 = vector.load %arg1[%c0_1, %c0_2] : memref<144x1024xf32, #tpu.memory_space<vmem>>, vector<144x1024xf32>
    %cst = arith.constant dense<0.000000e+00> : vector<16x1024xf32>
    %2 = tpu.matmul %0, %1, %cst {dimension_numbers = #tpu.dot_dimension_numbers<[1], [0], [0], [1], [0, 0, 1, 1], [], []>} : vector<16x144xf32>, vector<144x1024xf32>, vector<16x1024xf32> -> vector<16x1024xf32>
    %c0_3 = arith.constant 0 : index
    %c0_4 = arith.constant 0 : index
    %3 = vector.load %arg3[%c0_3, %c0_4] : memref<16x1xf32, #tpu.memory_space<vmem>>, vector<16x1xf32>
    %4 = vector.broadcast %3 : vector<16x1xf32> to vector<16x1024xf32>
    %5 = arith.addf %2, %4 : vector<16x1024xf32>
    %cst_5 = arith.constant 0.000000e+00 : f32
    %6 = vector.broadcast %cst_5 : f32 to vector<16x1024xf32>
    %7 = arith.maximumf %5, %6 : vector<16x1024xf32>
    %c0_6 = arith.constant 0 : index
    %c0_7 = arith.constant 0 : index
    %8 = vector.load %arg4[%c0_6, %c0_7] : memref<16x1024xf32, #tpu.memory_space<vmem>>, vector<16x1024xf32>
    tpu.vector_store %arg4[%c0_6, %c0_7], %7 {strides = array<i32>} : memref<16x1024xf32, #tpu.memory_space<vmem>>, vector<16x1024xf32>,
    return
  }
  func.func @transform_0(%arg0: i32) -> (i32, i32) {
    %c0_i32 = arith.constant 0 : i32
    %c0_i32_0 = arith.constant 0 : i32
    return %c0_i32, %arg0 : i32, i32
  }
  func.func @transform_1(%arg0: i32) -> (i32, i32) {
    %c0_i32 = arith.constant 0 : i32
    %c0_i32_0 = arith.constant 0 : i32
    %c0_i32_1 = arith.constant 0 : i32
    return %c0_i32, %c0_i32_0 : i32, i32
  }
  func.func @transform_2(%arg0: i32) -> (i32, i32) {
    %c0_i32 = arith.constant 0 : i32
    %c0_i32_0 = arith.constant 0 : i32
    %c0_i32_1 = arith.constant 0 : i32
    return %c0_i32, %c0_i32_0 : i32, i32
  }
  func.func @transform_3(%arg0: i32) -> (i32, i32) {
    %c0_i32 = arith.constant 0 : i32
    %c0_i32_0 = arith.constant 0 : i32
    return %c0_i32, %arg0 : i32, i32
  }
}

module attributes {stable_mosaic.version = 11 : i64} {
  func.func @_fused_conv_kernel(%arg0: i32, %arg1: memref<144x1024xf32, #tpu.memory_space<vmem>>, %arg2: memref<16x144xf32, #tpu.memory_space<vmem>>, %arg3: memref<16x1xf32, #tpu.memory_space<vmem>>, %arg4: memref<16x1024xf32, #tpu.memory_space<vmem>>, %arg5: memref<16x1xf32, #tpu.memory_space<vmem>>, %arg6: memref<16x1024xf32, #tpu.memory_space<vmem>>) attributes {dimension_semantics = [#tpu.dimension_semantics<parallel>], iteration_bounds = array<i64: 2>, scalar_prefetch = 0 : i64, scratch_operands = 0 : i64, tpu.core_type = #tpu.core_type<tc>, window_params = [{transform_indices = @transform_0, window_bounds = array<i64: 144, 1024>}, {pipeline_mode = #tpu.pipeline_mode<synchronous>, transform_indices = @transform_1, window_bounds = array<i64: 16, 144>}, {pipeline_mode = #tpu.pipeline_mode<synchronous>, transform_indices = @transform_2, window_bounds = array<i64: 16, 1>}, {transform_indices = @transform_3, window_bounds = array<i64: 16, 1024>}, {pipeline_mode = #tpu.pipeline_mode<synchronous>, transform_indices = @transform_4, window_bounds = array<i64: 16, 1>}, {transform_indices = @transform_5, window_bounds = array<i64: 16, 1024>}]} {
    %c0 = arith.constant 0 : index
    %c0_0 = arith.constant 0 : index
    %0 = vector.load %arg2[%c0, %c0_0] : memref<16x144xf32, #tpu.memory_space<vmem>>, vector<16x144xf32>
    %c0_1 = arith.constant 0 : index
    %c0_2 = arith.constant 0 : index
    %1 = vector.load %arg1[%c0_1, %c0_2] : memref<144x1024xf32, #tpu.memory_space<vmem>>, vector<144x1024xf32>
    %cst = arith.constant dense<0.000000e+00> : vector<16x1024xf32>
    %2 = tpu.matmul %0, %1, %cst {dimension_numbers = #tpu.dot_dimension_numbers<[1], [0], [0], [1], [0, 0, 1, 1], [], []>} : vector<16x144xf32>, vector<144x1024xf32>, vector<16x1024xf32> -> vector<16x1024xf32>
    %c0_3 = arith.constant 0 : index
    %c0_4 = arith.constant 0 : index
    %3 = vector.load %arg3[%c0_3, %c0_4] : memref<16x1xf32, #tpu.memory_space<vmem>>, vector<16x1xf32>
    %4 = vector.broadcast %3 : vector<16x1xf32> to vector<16x1024xf32>
    %5 = arith.addf %2, %4 : vector<16x1024xf32>
    %c0_5 = arith.constant 0 : index
    %c0_6 = arith.constant 0 : index
    %6 = vector.load %arg4[%c0_5, %c0_6] : memref<16x1024xf32, #tpu.memory_space<vmem>>, vector<16x1024xf32>
    %7 = arith.addf %5, %6 : vector<16x1024xf32>
    %cst_7 = arith.constant 0.000000e+00 : f32
    %8 = vector.broadcast %cst_7 : f32 to vector<16x1024xf32>
    %9 = arith.maximumf %7, %8 : vector<16x1024xf32>
    %c0_8 = arith.constant 0 : index
    %c0_9 = arith.constant 0 : index
    %10 = vector.load %arg5[%c0_8, %c0_9] : memref<16x1xf32, #tpu.memory_space<vmem>>, vector<16x1xf32>
    %11 = vector.broadcast %10 : vector<16x1xf32> to vector<16x1024xf32>
    %12 = arith.mulf %9, %11 : vector<16x1024xf32>
    %c0_10 = arith.constant 0 : index
    %c0_11 = arith.constant 0 : index
    %13 = vector.load %arg6[%c0_10, %c0_11] : memref<16x1024xf32, #tpu.memory_space<vmem>>, vector<16x1024xf32>
    tpu.vector_store %arg6[%c0_10, %c0_11], %12 {strides = array<i32>} : memref<16x1024xf32, #tpu.memory_space<vmem>>, vector<16x1024xf32>,
    return
  }
  func.func @transform_0(%arg0: i32) -> (i32, i32) {
    %c0_i32 = arith.constant 0 : i32
    %c0_i32_0 = arith.constant 0 : i32
    return %c0_i32, %arg0 : i32, i32
  }
  func.func @transform_1(%arg0: i32) -> (i32, i32) {
    %c0_i32 = arith.constant 0 : i32
    %c0_i32_0 = arith.constant 0 : i32
    %c0_i32_1 = arith.constant 0 : i32
    return %c0_i32, %c0_i32_0 : i32, i32
  }
  func.func @transform_2(%arg0: i32) -> (i32, i32) {
    %c0_i32 = arith.constant 0 : i32
    %c0_i32_0 = arith.constant 0 : i32
    %c0_i32_1 = arith.constant 0 : i32
    return %c0_i32, %c0_i32_0 : i32, i32
  }
  func.func @transform_3(%arg0: i32) -> (i32, i32) {
    %c0_i32 = arith.constant 0 : i32
    %c0_i32_0 = arith.constant 0 : i32
    return %c0_i32, %arg0 : i32, i32
  }
  func.func @transform_4(%arg0: i32) -> (i32, i32) {
    %c0_i32 = arith.constant 0 : i32
    %c0_i32_0 = arith.constant 0 : i32
    %c0_i32_1 = arith.constant 0 : i32
    return %c0_i32, %c0_i32_0 : i32, i32
  }
  func.func @transform_5(%arg0: i32) -> (i32, i32) {
    %c0_i32 = arith.constant 0 : i32
    %c0_i32_0 = arith.constant 0 : i32
    return %c0_i32, %arg0 : i32, i32
  }
}

module attributes {stable_mosaic.version = 11 : i64} {
  func.func @_fused_conv_kernel(%arg0: i32, %arg1: memref<144x512xf32, #tpu.memory_space<vmem>>, %arg2: memref<32x144xf32, #tpu.memory_space<vmem>>, %arg3: memref<32x1xf32, #tpu.memory_space<vmem>>, %arg4: memref<32x512xf32, #tpu.memory_space<vmem>>) attributes {dimension_semantics = [#tpu.dimension_semantics<parallel>], iteration_bounds = array<i64: 1>, scalar_prefetch = 0 : i64, scratch_operands = 0 : i64, tpu.core_type = #tpu.core_type<tc>, window_params = [{transform_indices = @transform_0, window_bounds = array<i64: 144, 512>}, {pipeline_mode = #tpu.pipeline_mode<synchronous>, transform_indices = @transform_1, window_bounds = array<i64: 32, 144>}, {pipeline_mode = #tpu.pipeline_mode<synchronous>, transform_indices = @transform_2, window_bounds = array<i64: 32, 1>}, {transform_indices = @transform_3, window_bounds = array<i64: 32, 512>}]} {
    %c0 = arith.constant 0 : index
    %c0_0 = arith.constant 0 : index
    %0 = vector.load %arg2[%c0, %c0_0] : memref<32x144xf32, #tpu.memory_space<vmem>>, vector<32x144xf32>
    %c0_1 = arith.constant 0 : index
    %c0_2 = arith.constant 0 : index
    %1 = vector.load %arg1[%c0_1, %c0_2] : memref<144x512xf32, #tpu.memory_space<vmem>>, vector<144x512xf32>
    %cst = arith.constant dense<0.000000e+00> : vector<32x512xf32>
    %2 = tpu.matmul %0, %1, %cst {dimension_numbers = #tpu.dot_dimension_numbers<[1], [0], [0], [1], [0, 0, 1, 1], [], []>} : vector<32x144xf32>, vector<144x512xf32>, vector<32x512xf32> -> vector<32x512xf32>
    %c0_3 = arith.constant 0 : index
    %c0_4 = arith.constant 0 : index
    %3 = vector.load %arg3[%c0_3, %c0_4] : memref<32x1xf32, #tpu.memory_space<vmem>>, vector<32x1xf32>
    %4 = vector.broadcast %3 : vector<32x1xf32> to vector<32x512xf32>
    %5 = arith.addf %2, %4 : vector<32x512xf32>
    %cst_5 = arith.constant 0.000000e+00 : f32
    %6 = vector.broadcast %cst_5 : f32 to vector<32x512xf32>
    %7 = arith.maximumf %5, %6 : vector<32x512xf32>
    %c0_6 = arith.constant 0 : index
    %c0_7 = arith.constant 0 : index
    %8 = vector.load %arg4[%c0_6, %c0_7] : memref<32x512xf32, #tpu.memory_space<vmem>>, vector<32x512xf32>
    tpu.vector_store %arg4[%c0_6, %c0_7], %7 {strides = array<i32>} : memref<32x512xf32, #tpu.memory_space<vmem>>, vector<32x512xf32>,
    return
  }
  func.func @transform_0(%arg0: i32) -> (i32, i32) {
    %c0_i32 = arith.constant 0 : i32
    %c0_i32_0 = arith.constant 0 : i32
    return %c0_i32, %arg0 : i32, i32
  }
  func.func @transform_1(%arg0: i32) -> (i32, i32) {
    %c0_i32 = arith.constant 0 : i32
    %c0_i32_0 = arith.constant 0 : i32
    %c0_i32_1 = arith.constant 0 : i32
    return %c0_i32, %c0_i32_0 : i32, i32
  }
  func.func @transform_2(%arg0: i32) -> (i32, i32) {
    %c0_i32 = arith.constant 0 : i32
    %c0_i32_0 = arith.constant 0 : i32
    %c0_i32_1 = arith.constant 0 : i32
    return %c0_i32, %c0_i32_0 : i32, i32
  }
  func.func @transform_3(%arg0: i32) -> (i32, i32) {
    %c0_i32 = arith.constant 0 : i32
    %c0_i32_0 = arith.constant 0 : i32
    return %c0_i32, %arg0 : i32, i32
  }
}

module attributes {stable_mosaic.version = 11 : i64} {
  func.func @_fused_conv_kernel(%arg0: i32, %arg1: memref<304x512xf32, #tpu.memory_space<vmem>>, %arg2: memref<32x304xf32, #tpu.memory_space<vmem>>, %arg3: memref<32x1xf32, #tpu.memory_space<vmem>>, %arg4: memref<32x512xf32, #tpu.memory_space<vmem>>) attributes {dimension_semantics = [#tpu.dimension_semantics<parallel>], iteration_bounds = array<i64: 1>, scalar_prefetch = 0 : i64, scratch_operands = 0 : i64, tpu.core_type = #tpu.core_type<tc>, window_params = [{transform_indices = @transform_0, window_bounds = array<i64: 304, 512>}, {pipeline_mode = #tpu.pipeline_mode<synchronous>, transform_indices = @transform_1, window_bounds = array<i64: 32, 304>}, {pipeline_mode = #tpu.pipeline_mode<synchronous>, transform_indices = @transform_2, window_bounds = array<i64: 32, 1>}, {transform_indices = @transform_3, window_bounds = array<i64: 32, 512>}]} {
    %c0 = arith.constant 0 : index
    %c0_0 = arith.constant 0 : index
    %0 = vector.load %arg2[%c0, %c0_0] : memref<32x304xf32, #tpu.memory_space<vmem>>, vector<32x304xf32>
    %c0_1 = arith.constant 0 : index
    %c0_2 = arith.constant 0 : index
    %1 = vector.load %arg1[%c0_1, %c0_2] : memref<304x512xf32, #tpu.memory_space<vmem>>, vector<304x512xf32>
    %cst = arith.constant dense<0.000000e+00> : vector<32x512xf32>
    %2 = tpu.matmul %0, %1, %cst {dimension_numbers = #tpu.dot_dimension_numbers<[1], [0], [0], [1], [0, 0, 1, 1], [], []>} : vector<32x304xf32>, vector<304x512xf32>, vector<32x512xf32> -> vector<32x512xf32>
    %c0_3 = arith.constant 0 : index
    %c0_4 = arith.constant 0 : index
    %3 = vector.load %arg3[%c0_3, %c0_4] : memref<32x1xf32, #tpu.memory_space<vmem>>, vector<32x1xf32>
    %4 = vector.broadcast %3 : vector<32x1xf32> to vector<32x512xf32>
    %5 = arith.addf %2, %4 : vector<32x512xf32>
    %cst_5 = arith.constant 0.000000e+00 : f32
    %6 = vector.broadcast %cst_5 : f32 to vector<32x512xf32>
    %7 = arith.maximumf %5, %6 : vector<32x512xf32>
    %c0_6 = arith.constant 0 : index
    %c0_7 = arith.constant 0 : index
    %8 = vector.load %arg4[%c0_6, %c0_7] : memref<32x512xf32, #tpu.memory_space<vmem>>, vector<32x512xf32>
    tpu.vector_store %arg4[%c0_6, %c0_7], %7 {strides = array<i32>} : memref<32x512xf32, #tpu.memory_space<vmem>>, vector<32x512xf32>,
    return
  }
  func.func @transform_0(%arg0: i32) -> (i32, i32) {
    %c0_i32 = arith.constant 0 : i32
    %c0_i32_0 = arith.constant 0 : i32
    return %c0_i32, %arg0 : i32, i32
  }
  func.func @transform_1(%arg0: i32) -> (i32, i32) {
    %c0_i32 = arith.constant 0 : i32
    %c0_i32_0 = arith.constant 0 : i32
    %c0_i32_1 = arith.constant 0 : i32
    return %c0_i32, %c0_i32_0 : i32, i32
  }
  func.func @transform_2(%arg0: i32) -> (i32, i32) {
    %c0_i32 = arith.constant 0 : i32
    %c0_i32_0 = arith.constant 0 : i32
    %c0_i32_1 = arith.constant 0 : i32
    return %c0_i32, %c0_i32_0 : i32, i32
  }
  func.func @transform_3(%arg0: i32) -> (i32, i32) {
    %c0_i32 = arith.constant 0 : i32
    %c0_i32_0 = arith.constant 0 : i32
    return %c0_i32, %arg0 : i32, i32
  }
}

module attributes {stable_mosaic.version = 11 : i64} {
  func.func @_fused_conv_kernel(%arg0: i32, %arg1: memref<288x128xf32, #tpu.memory_space<vmem>>, %arg2: memref<64x288xf32, #tpu.memory_space<vmem>>, %arg3: memref<64x1xf32, #tpu.memory_space<vmem>>, %arg4: memref<64x128xf32, #tpu.memory_space<vmem>>) attributes {dimension_semantics = [#tpu.dimension_semantics<parallel>], iteration_bounds = array<i64: 1>, scalar_prefetch = 0 : i64, scratch_operands = 0 : i64, tpu.core_type = #tpu.core_type<tc>, window_params = [{transform_indices = @transform_0, window_bounds = array<i64: 288, 128>}, {pipeline_mode = #tpu.pipeline_mode<synchronous>, transform_indices = @transform_1, window_bounds = array<i64: 64, 288>}, {pipeline_mode = #tpu.pipeline_mode<synchronous>, transform_indices = @transform_2, window_bounds = array<i64: 64, 1>}, {transform_indices = @transform_3, window_bounds = array<i64: 64, 128>}]} {
    %c0 = arith.constant 0 : index
    %c0_0 = arith.constant 0 : index
    %0 = vector.load %arg2[%c0, %c0_0] : memref<64x288xf32, #tpu.memory_space<vmem>>, vector<64x288xf32>
    %c0_1 = arith.constant 0 : index
    %c0_2 = arith.constant 0 : index
    %1 = vector.load %arg1[%c0_1, %c0_2] : memref<288x128xf32, #tpu.memory_space<vmem>>, vector<288x128xf32>
    %cst = arith.constant dense<0.000000e+00> : vector<64x128xf32>
    %2 = tpu.matmul %0, %1, %cst {dimension_numbers = #tpu.dot_dimension_numbers<[1], [0], [0], [1], [0, 0, 1, 1], [], []>} : vector<64x288xf32>, vector<288x128xf32>, vector<64x128xf32> -> vector<64x128xf32>
    %c0_3 = arith.constant 0 : index
    %c0_4 = arith.constant 0 : index
    %3 = vector.load %arg3[%c0_3, %c0_4] : memref<64x1xf32, #tpu.memory_space<vmem>>, vector<64x1xf32>
    %4 = vector.broadcast %3 : vector<64x1xf32> to vector<64x128xf32>
    %5 = arith.addf %2, %4 : vector<64x128xf32>
    %cst_5 = arith.constant 0.000000e+00 : f32
    %6 = vector.broadcast %cst_5 : f32 to vector<64x128xf32>
    %7 = arith.maximumf %5, %6 : vector<64x128xf32>
    %c0_6 = arith.constant 0 : index
    %c0_7 = arith.constant 0 : index
    %8 = vector.load %arg4[%c0_6, %c0_7] : memref<64x128xf32, #tpu.memory_space<vmem>>, vector<64x128xf32>
    tpu.vector_store %arg4[%c0_6, %c0_7], %7 {strides = array<i32>} : memref<64x128xf32, #tpu.memory_space<vmem>>, vector<64x128xf32>,
    return
  }
  func.func @transform_0(%arg0: i32) -> (i32, i32) {
    %c0_i32 = arith.constant 0 : i32
    %c0_i32_0 = arith.constant 0 : i32
    return %c0_i32, %arg0 : i32, i32
  }
  func.func @transform_1(%arg0: i32) -> (i32, i32) {
    %c0_i32 = arith.constant 0 : i32
    %c0_i32_0 = arith.constant 0 : i32
    %c0_i32_1 = arith.constant 0 : i32
    return %c0_i32, %c0_i32_0 : i32, i32
  }
  func.func @transform_2(%arg0: i32) -> (i32, i32) {
    %c0_i32 = arith.constant 0 : i32
    %c0_i32_0 = arith.constant 0 : i32
    %c0_i32_1 = arith.constant 0 : i32
    return %c0_i32, %c0_i32_0 : i32, i32
  }
  func.func @transform_3(%arg0: i32) -> (i32, i32) {
    %c0_i32 = arith.constant 0 : i32
    %c0_i32_0 = arith.constant 0 : i32
    return %c0_i32, %arg0 : i32, i32
  }
}

module attributes {stable_mosaic.version = 11 : i64} {
  func.func @_fused_conv_kernel(%arg0: i32, %arg1: memref<608x128xf32, #tpu.memory_space<vmem>>, %arg2: memref<64x608xf32, #tpu.memory_space<vmem>>, %arg3: memref<64x1xf32, #tpu.memory_space<vmem>>, %arg4: memref<64x128xf32, #tpu.memory_space<vmem>>) attributes {dimension_semantics = [#tpu.dimension_semantics<parallel>], iteration_bounds = array<i64: 1>, scalar_prefetch = 0 : i64, scratch_operands = 0 : i64, tpu.core_type = #tpu.core_type<tc>, window_params = [{transform_indices = @transform_0, window_bounds = array<i64: 608, 128>}, {pipeline_mode = #tpu.pipeline_mode<synchronous>, transform_indices = @transform_1, window_bounds = array<i64: 64, 608>}, {pipeline_mode = #tpu.pipeline_mode<synchronous>, transform_indices = @transform_2, window_bounds = array<i64: 64, 1>}, {transform_indices = @transform_3, window_bounds = array<i64: 64, 128>}]} {
    %c0 = arith.constant 0 : index
    %c0_0 = arith.constant 0 : index
    %0 = vector.load %arg2[%c0, %c0_0] : memref<64x608xf32, #tpu.memory_space<vmem>>, vector<64x608xf32>
    %c0_1 = arith.constant 0 : index
    %c0_2 = arith.constant 0 : index
    %1 = vector.load %arg1[%c0_1, %c0_2] : memref<608x128xf32, #tpu.memory_space<vmem>>, vector<608x128xf32>
    %cst = arith.constant dense<0.000000e+00> : vector<64x128xf32>
    %2 = tpu.matmul %0, %1, %cst {dimension_numbers = #tpu.dot_dimension_numbers<[1], [0], [0], [1], [0, 0, 1, 1], [], []>} : vector<64x608xf32>, vector<608x128xf32>, vector<64x128xf32> -> vector<64x128xf32>
    %c0_3 = arith.constant 0 : index
    %c0_4 = arith.constant 0 : index
    %3 = vector.load %arg3[%c0_3, %c0_4] : memref<64x1xf32, #tpu.memory_space<vmem>>, vector<64x1xf32>
    %4 = vector.broadcast %3 : vector<64x1xf32> to vector<64x128xf32>
    %5 = arith.addf %2, %4 : vector<64x128xf32>
    %cst_5 = arith.constant 0.000000e+00 : f32
    %6 = vector.broadcast %cst_5 : f32 to vector<64x128xf32>
    %7 = arith.maximumf %5, %6 : vector<64x128xf32>
    %c0_6 = arith.constant 0 : index
    %c0_7 = arith.constant 0 : index
    %8 = vector.load %arg4[%c0_6, %c0_7] : memref<64x128xf32, #tpu.memory_space<vmem>>, vector<64x128xf32>
    tpu.vector_store %arg4[%c0_6, %c0_7], %7 {strides = array<i32>} : memref<64x128xf32, #tpu.memory_space<vmem>>, vector<64x128xf32>,
    return
  }
  func.func @transform_0(%arg0: i32) -> (i32, i32) {
    %c0_i32 = arith.constant 0 : i32
    %c0_i32_0 = arith.constant 0 : i32
    return %c0_i32, %arg0 : i32, i32
  }
  func.func @transform_1(%arg0: i32) -> (i32, i32) {
    %c0_i32 = arith.constant 0 : i32
    %c0_i32_0 = arith.constant 0 : i32
    %c0_i32_1 = arith.constant 0 : i32
    return %c0_i32, %c0_i32_0 : i32, i32
  }
  func.func @transform_2(%arg0: i32) -> (i32, i32) {
    %c0_i32 = arith.constant 0 : i32
    %c0_i32_0 = arith.constant 0 : i32
    %c0_i32_1 = arith.constant 0 : i32
    return %c0_i32, %c0_i32_0 : i32, i32
  }
  func.func @transform_3(%arg0: i32) -> (i32, i32) {
    %c0_i32 = arith.constant 0 : i32
    %c0_i32_0 = arith.constant 0 : i32
    return %c0_i32, %arg0 : i32, i32
  }
}

</mosaic_0001>

<llo_original>
// kernel: resnet_forward.7
$region0: #{resnet_forward.7}
  #allocation0 [shape = 'u32[]', space=smem, size = 0x4, offset = 0x4, fixed_abs, tag = 'smem constant byte address 0x4 - core index']
  #allocation1 [shape = 'u32[144,128]{1,0:T(1,128)}', space=vmem, size = 0x12000, scoped, tag = 'internal scratch']
  %s0 = inlined_call_operand.vmem [shape: f32[32,2048], index: 0, kind: input, shape index: {}]
  %s1 = inlined_call_operand.vmem [shape: f32[16,32], index: 1, kind: input, shape index: {}]
  %s2 = inlined_call_operand.vmem [shape: f32[16,1], index: 2, kind: input, shape index: {}]
  %s3 = inlined_call_operand.vmem [shape: f32[16,2048], index: 3, kind: output, shape index: {}]
  %s4 = sld [smem:[#allocation0]]
  $region87: #{resnet_forward.7} parent=0
    _
  %s6 = ssub.s32 1, %s4
  %s7 = scalar_select 0, %s6, %s4
  $region1: #{resnet_forward.7} parent=0
    #allocation2 [shape = 'u8[262144]{0}', space=vmem, size = 0x40000, scoped, tag = 'input window, operand 0']
    #allocation3 [shape = 'u8[131072]{0}', space=vmem, size = 0x20000, scoped, tag = 'output window, operand 0']
    loop: start=0, step=1, limit=4
    $region2: #{resnet_forward.7} parent=1 // loop_pre_header
      _
    $region3: #{resnet_forward.7} parent=1 // loop_header
      %s9 = sphi 0, %s13
      %p10 = scmp.ge.s32.totalorder %s9, 4
      %s19 = sphi 0, %s21
      %s22 = sphi 0, %s19
      %s23 = sphi 0, %s22
      %s39 = sphi 0, %s23
      %s43 = sphi 0, %s43
      %s45 = sphi 0, %s43
      %s46 = sphi 0, %s45
      %s60 = sphi 0, %s46
      %s64 = sphi 0, %s64
      %s66 = sphi 0, %s64
      %s67 = sphi 0, %s66
      %s81 = sphi 0, %s67
      %s87 = sphi 0, %s89
      %s90 = sphi 0, %s87
      %s91 = sphi 0, %s90
      %s107 = sphi 0, %s91
    $region4: #{resnet_forward.7} parent=1 // loop_header_branch
      %12 = sbr.rel (%p10) target = $region8
    $region5: #{resnet_forward.7} parent=1 // loop_body
      %s14 = ssub.s32 %s9, 1
      %s15 = ssub.s32 %s9, 2
      %s16 = sadd.s32 %s9, 1
      %s17 = ssub.s32 %s9, %s16
      %p18 = scmp.eq.s32.totalorder %s17, 0
      %s20 = sadd.s32 %s19, 1
      %s21 = scalar_select %p18, %s19, %s20
      %p24 = pneg %p18
      %p25 = scmp.eq.s32.totalorder %s9, 1
      %p26 = por %p24, %p25
      %p27 = scmp.ne.s32.totalorder %s19, %s22
      %p28 = scmp.eq.s32.totalorder %s9, 0
      %p29 = por %p27, %p28
      %p30 = scmp.ne.s32.totalorder %s19, %s22
      %p31 = scmp.eq.s32.totalorder %s14, 1
      %p32 = por %p30, %p31
      %p33 = scmp.ne.s32.totalorder %s22, %s23
      %p34 = scmp.eq.s32.totalorder %s14, 0
      %p35 = por %p33, %p34
      %p36 = scmp.ne.s32.totalorder %s22, %s23
      %p37 = scmp.eq.s32.totalorder %s15, 1
      %p38 = por %p36, %p37
      %p40 = scmp.ne.s32.totalorder %s23, %s39
      %p41 = scmp.eq.s32.totalorder %s15, 0
      %p42 = por %p40, %p41
      %s44 = sadd.s32 %s43, 1
      %p47 = scmp.eq.s32.totalorder %s9, 1
      %p48 = scmp.ne.s32.totalorder %s43, %s45
      %p49 = scmp.eq.s32.totalorder %s9, 0
      %p50 = por %p48, %p49
      %p51 = scmp.ne.s32.totalorder %s43, %s45
      %p52 = scmp.eq.s32.totalorder %s14, 1
      %p53 = por %p51, %p52
      %p54 = scmp.ne.s32.totalorder %s45, %s46
      %p55 = scmp.eq.s32.totalorder %s14, 0
      %p56 = por %p54, %p55
      %p57 = scmp.ne.s32.totalorder %s45, %s46
      %p58 = scmp.eq.s32.totalorder %s15, 1
      %p59 = por %p57, %p58
      %p61 = scmp.ne.s32.totalorder %s46, %s60
      %p62 = scmp.eq.s32.totalorder %s15, 0
      %p63 = por %p61, %p62
      %s65 = sadd.s32 %s64, 1
      %p68 = scmp.eq.s32.totalorder %s9, 1
      %p69 = scmp.ne.s32.totalorder %s64, %s66
      %p70 = scmp.eq.s32.totalorder %s9, 0
      %p71 = por %p69, %p70
      %p72 = scmp.ne.s32.totalorder %s64, %s66
      %p73 = scmp.eq.s32.totalorder %s14, 1
      %p74 = por %p72, %p73
      %p75 = scmp.ne.s32.totalorder %s66, %s67
      %p76 = scmp.eq.s32.totalorder %s14, 0
      %p77 = por %p75, %p76
      %p78 = scmp.ne.s32.totalorder %s66, %s67
      %p79 = scmp.eq.s32.totalorder %s15, 1
      %p80 = por %p78, %p79
      %p82 = scmp.ne.s32.totalorder %s67, %s81
      %p83 = scmp.eq.s32.totalorder %s15, 0
      %p84 = por %p82, %p83
      %s85 = ssub.s32 %s9, %s16
      %p86 = scmp.eq.s32.totalorder %s85, 0
      %s88 = sadd.s32 %s87, 1
      %s89 = scalar_select %p86, %s87, %s88
      %p92 = pneg %p86
      %p93 = scmp.eq.s32.totalorder %s9, 1
      %p94 = por %p92, %p93
      %p95 = scmp.ne.s32.totalorder %s87, %s90
      %p96 = scmp.eq.s32.totalorder %s9, 0
      %p97 = por %p95, %p96
      %p98 = scmp.ne.s32.totalorder %s87, %s90
      %p99 = scmp.eq.s32.totalorder %s14, 1
      %p100 = por %p98, %p99
      %p101 = scmp.ne.s32.totalorder %s90, %s91
      %p102 = scmp.eq.s32.totalorder %s14, 0
      %p103 = por %p101, %p102
      %p104 = scmp.ne.s32.totalorder %s90, %s91
      %p105 = scmp.eq.s32.totalorder %s15, 1
      %p106 = por %p104, %p105
      %p108 = scmp.ne.s32.totalorder %s91, %s107
      %p109 = scmp.eq.s32.totalorder %s15, 0
      %p110 = por %p108, %p109
      %p111 = scmp.le.s32.totalorder 1, %s9
      %p112 = scmp.lt.s32.totalorder %s9, 3
      %p113 = pnand %p111, %p112
      %p114 = pneg %p113
      // Predicated region
      $region9: #{resnet_forward.7} parent=5 // pred_check
        _
      $region10: #{resnet_forward.7} parent=5 // pred_check_branch
        %116 = sbr.rel (%p113) target = $region12
      $region11: #{resnet_forward.7} parent=5 // pred_region
        %s117 = ssub.s32 %s9, 1
        // Predicated region
        $region13: #{resnet_forward.7} parent=11 // pred_check
          %p118 = pneg %p56
        $region14: #{resnet_forward.7} parent=11 // pred_check_branch
          %120 = sbr.rel (%p118) target = $region16
        $region15: #{resnet_forward.7} parent=11 // pred_region
          _
        $region16: #{resnet_forward.7} parent=11 // pred_fallthru
          _
        // Predicated region
        $region17: #{resnet_forward.7} parent=11 // pred_check
          %p121 = pneg %p77
        $region18: #{resnet_forward.7} parent=11 // pred_check_branch
          %123 = sbr.rel (%p121) target = $region20
        $region19: #{resnet_forward.7} parent=11 // pred_region
          _
        $region20: #{resnet_forward.7} parent=11 // pred_fallthru
          _
      $region12: #{resnet_forward.7} parent=5 // pred_fallthru
        _
      %p124 = scmp.lt.s32.totalorder %s9, 2
      // Predicated region
      $region21: #{resnet_forward.7} parent=5 // pred_check
        %p125 = pneg %p124
      $region22: #{resnet_forward.7} parent=5 // pred_check_branch
        %127 = sbr.rel (%p125) target = $region24
      $region23: #{resnet_forward.7} parent=5 // pred_region
        // Predicated region
        $region25: #{resnet_forward.7} parent=23 // pred_check
          %p128 = pneg %p29
        $region26: #{resnet_forward.7} parent=23 // pred_check_branch
          %130 = sbr.rel (%p128) target = $region28
        $region27: #{resnet_forward.7} parent=23 // pred_region
          %s131 = sand.u32 %s19, 1
          %s132 = sand.u32 %s19, 1
          %s133 = smul.addr %s132, 256
          %s134 = scalar_lea.vmem [#allocation2], %s133
          %s135 = smul.u32 8, %s9
          %s136 = smul.addr %s135, 8
          %s137 = scalar_lea.vmem %s0, %s136
          // Predicated region
          $region29: #{resnet_forward.7} parent=27 // pred_check
            _
          $region30: #{resnet_forward.7} parent=27 // pred_check_branch
            %139 = sbr.rel (0) target = $region32
          $region31: #{resnet_forward.7} parent=27 // pred_region
            // Predicated region
            $region33: #{resnet_forward.7} parent=31 // pred_check
              _
            $region34: #{resnet_forward.7} parent=31 // pred_check_branch
              %141 = sbr.rel (0) target = $region36
            $region35: #{resnet_forward.7} parent=31 // pred_region
              loop: start=0, step=1, limit=1
              $region37: #{resnet_forward.7} parent=35 // loop_pre_header
                _
              $region38: #{resnet_forward.7} parent=35 // loop_header
                %s143 = sphi 0, %s147
                %p144 = scmp.ge.s32.totalorder %s143, 1
                %s148 = sphi %s137, %s137
                %s149 = sphi %s134, %s134
              $region39: #{resnet_forward.7} parent=35 // loop_header_branch
                %146 = sbr.rel (%p144) target = $region43
              $region40: #{resnet_forward.7} parent=35 // loop_body
                %v150 = vld [vmem:[%s148] sm:$0xff]
                %151 = vst [vmem:[%s149] sm:$0xff] %v150
                %v152 = vld [vmem:[%s148 + $0x8] sm:$0xff]
                %153 = vst [vmem:[%s149 + $0x8] sm:$0xff] %v152
                %v154 = vld [vmem:[%s148 + $0x10] sm:$0xff]
                %155 = vst [vmem:[%s149 + $0x10] sm:$0xff] %v154
                %v156 = vld [vmem:[%s148 + $0x18] sm:$0xff]
                %157 = vst [vmem:[%s149 + $0x18] sm:$0xff] %v156
                %v158 = vld [vmem:[%s148 + $0x20] sm:$0xff]
                %159 = vst [vmem:[%s149 + $0x20] sm:$0xff] %v158
                %v160 = vld [vmem:[%s148 + $0x28] sm:$0xff]
                %161 = vst [vmem:[%s149 + $0x28] sm:$0xff] %v160
                %v162 = vld [vmem:[%s148 + $0x30] sm:$0xff]
                %163 = vst [vmem:[%s149 + $0x30] sm:$0xff] %v162
                %v164 = vld [vmem:[%s148 + $0x38] sm:$0xff]
                %165 = vst [vmem:[%s149 + $0x38] sm:$0xff] %v164
                %v166 = vld [vmem:[%s148 + $0x80] sm:$0xff]
                %167 = vst [vmem:[%s149 + $0x40] sm:$0xff] %v166
                %v168 = vld [vmem:[%s148 + $0x88] sm:$0xff]
                %169 = vst [vmem:[%s149 + $0x48] sm:$0xff] %v168
                %v170 = vld [vmem:[%s148 + $0x90] sm:$0xff]
                %171 = vst [vmem:[%s149 + $0x50] sm:$0xff] %v170
                %v172 = vld [vmem:[%s148 + $0x98] sm:$0xff]
                %173 = vst [vmem:[%s149 + $0x58] sm:$0xff] %v172
                %v174 = vld [vmem:[%s148 + $0xa0] sm:$0xff]
                %175 = vst [vmem:[%s149 + $0x60] sm:$0xff] %v174
                %v176 = vld [vmem:[%s148 + $0xa8] sm:$0xff]
                %177 = vst [vmem:[%s149 + $0x68] sm:$0xff] %v176
                %v178 = vld [vmem:[%s148 + $0xb0] sm:$0xff]
                %179 = vst [vmem:[%s149 + $0x70] sm:$0xff] %v178
                %v180 = vld [vmem:[%s148 + $0xb8] sm:$0xff]
                %181 = vst [vmem:[%s149 + $0x78] sm:$0xff] %v180
                %v182 = vld [vmem:[%s148 + $0x100] sm:$0xff]
                %183 = vst [vmem:[%s149 + $0x80] sm:$0xff] %v182
                %v184 = vld [vmem:[%s148 + $0x108] sm:$0xff]
                %185 = vst [vmem:[%s149 + $0x88] sm:$0xff] %v184
                %v186 = vld [vmem:[%s148 + $0x110] sm:$0xff]
                %187 = vst [vmem:[%s149 + $0x90] sm:$0xff] %v186
                %v188 = vld [vmem:[%s148 + $0x118] sm:$0xff]
                %189 = vst [vmem:[%s149 + $0x98] sm:$0xff] %v188
                %v190 = vld [vmem:[%s148 + $0x120] sm:$0xff]
                %191 = vst [vmem:[%s149 + $0xa0] sm:$0xff] %v190
                %v192 = vld [vmem:[%s148 + $0x128] sm:$0xff]
                %193 = vst [vmem:[%s149 + $0xa8] sm:$0xff] %v192
                %v194 = vld [vmem:[%s148 + $0x130] sm:$0xff]
                %195 = vst [vmem:[%s149 + $0xb0] sm:$0xff] %v194
                %v196 = vld [vmem:[%s148 + $0x138] sm:$0xff]
                %197 = vst [vmem:[%s149 + $0xb8] sm:$0xff] %v196
                %v198 = vld [vmem:[%s148 + $0x180] sm:$0xff]
                %199 = vst [vmem:[%s149 + $0xc0] sm:$0xff] %v198
                %v200 = vld [vmem:[%s148 + $0x188] sm:$0xff]
                %201 = vst [vmem:[%s149 + $0xc8] sm:$0xff] %v200
                %v202 = vld [vmem:[%s148 + $0x190] sm:$0xff]
                %203 = vst [vmem:[%s149 + $0xd0] sm:$0xff] %v202
                %v204 = vld [vmem:[%s148 + $0x198] sm:$0xff]
                %205 = vst [vmem:[%s149 + $0xd8] sm:$0xff] %v204
                %v206 = vld [vmem:[%s148 + $0x1a0] sm:$0xff]
                %207 = vst [vmem:[%s149 + $0xe0] sm:$0xff] %v206
                %v208 = vld [vmem:[%s148 + $0x1a8] sm:$0xff]
                %209 = vst [vmem:[%s149 + $0xe8] sm:$0xff] %v208
                %v210 = vld [vmem:[%s148 + $0x1b0] sm:$0xff]
                %211 = vst [vmem:[%s149 + $0xf0] sm:$0xff] %v210
                %v212 = vld [vmem:[%s148 + $0x1b8] sm:$0xff]
                %213 = vst [vmem:[%s149 + $0xf8] sm:$0xff] %v212
              $region41: #{resnet_forward.7} parent=35 // loop_footer
                %s147 = sadd.s32 1, %s143
              $region42: #{resnet_forward.7} parent=35 // loop_footer_branch
                %142 = sbr.rel target = $region38
              $region43: #{resnet_forward.7} parent=35 // loop_exit
                _
            $region36: #{resnet_forward.7} parent=31 // pred_fallthru
              _
            // Predicated region
            $region44: #{resnet_forward.7} parent=31 // pred_check
              _
            $region45: #{resnet_forward.7} parent=31 // pred_check_branch
              %215 = sbr.rel target = $region47
            $region46: #{resnet_forward.7} parent=31 // pred_region
              _
            $region47: #{resnet_forward.7} parent=31 // pred_fallthru
              _
          $region32: #{resnet_forward.7} parent=27 // pred_fallthru
            _
          %216 = vnop
        $region28: #{resnet_forward.7} parent=23 // pred_fallthru
          _
      $region24: #{resnet_forward.7} parent=5 // pred_fallthru
        _
      %p217 = scmp.le.s32.totalorder 1, %s9
      %p218 = scmp.lt.s32.totalorder %s9, 3
      %p219 = pnand %p217, %p218
      %p220 = pneg %p219
      // Predicated region
      $region48: #{resnet_forward.7} parent=5 // pred_check
        _
      $region49: #{resnet_forward.7} parent=5 // pred_check_branch
        %222 = sbr.rel (%p219) target = $region51
      $region50: #{resnet_forward.7} parent=5 // pred_region
        %s223 = ssub.s32 %s9, 1
        %s224 = sand.u32 %s22, 1
        %s225 = sand.u32 %s22, 1
        %s226 = smul.addr %s225, 256
        %s227 = scalar_lea.vmem [#allocation2], %s226
        // Predicated region
        $region52: #{resnet_forward.7} parent=50 // pred_check
          %p228 = pneg %p35
        $region53: #{resnet_forward.7} parent=50 // pred_check_branch
          %230 = sbr.rel (%p228) target = $region55
        $region54: #{resnet_forward.7} parent=50 // pred_region
          _
        $region55: #{resnet_forward.7} parent=50 // pred_fallthru
          _
        %s231 = sand.u32 %s22, 1
        %s232 = sand.u32 %s22, 1
        %s233 = smul.addr %s232, 256
        %s234 = scalar_lea.vmem [#allocation2], %s233
        %p235 = pneg %p35
        %p236 = pneg %p32
        %p237 = pneg %p56
        %p238 = pneg %p53
        %p239 = pneg %p77
        %p240 = pneg %p74
        %p241 = pneg %p103
        %p242 = pneg %p100
        %s243 = sand.u32 %s90, 1
        %s244 = sand.u32 %s90, 1
        %s245 = smul.addr %s244, 128
        %s246 = scalar_lea.vmem [#allocation3], %s245
        %s247 = smul.u32 8, %s14
        %s248 = smul.u32 8, %s14
        %v249 = vld [vmem:[%s1] sm:$0xff]
        %v250 = vld [vmem:[%s1 + $0x8] sm:$0xff]
        %v251 = vld [vmem:[%s227] sm:$0xff]
        %v252 = vld [vmem:[%s227 + $0x8] sm:$0xff]
        %v253 = vld [vmem:[%s227 + $0x10] sm:$0xff]
        %v254 = vld [vmem:[%s227 + $0x18] sm:$0xff]
        %v255 = vld [vmem:[%s227 + $0x20] sm:$0xff]
        %v256 = vld [vmem:[%s227 + $0x28] sm:$0xff]
        %v257 = vld [vmem:[%s227 + $0x30] sm:$0xff]
        %v258 = vld [vmem:[%s227 + $0x38] sm:$0xff]
        %v259 = vld [vmem:[%s227 + $0x40] sm:$0xff]
        %v260 = vld [vmem:[%s227 + $0x48] sm:$0xff]
        %v261 = vld [vmem:[%s227 + $0x50] sm:$0xff]
        %v262 = vld [vmem:[%s227 + $0x58] sm:$0xff]
        %v263 = vld [vmem:[%s227 + $0x60] sm:$0xff]
        %v264 = vld [vmem:[%s227 + $0x68] sm:$0xff]
        %v265 = vld [vmem:[%s227 + $0x70] sm:$0xff]
        %v266 = vld [vmem:[%s227 + $0x78] sm:$0xff]
        %v267 = vld [vmem:[%s227 + $0x80] sm:$0xff]
        %v268 = vld [vmem:[%s227 + $0x88] sm:$0xff]
        %v269 = vld [vmem:[%s227 + $0x90] sm:$0xff]
        %v270 = vld [vmem:[%s227 + $0x98] sm:$0xff]
        %v271 = vld [vmem:[%s227 + $0xa0] sm:$0xff]
        %v272 = vld [vmem:[%s227 + $0xa8] sm:$0xff]
        %v273 = vld [vmem:[%s227 + $0xb0] sm:$0xff]
        %v274 = vld [vmem:[%s227 + $0xb8] sm:$0xff]
        %v275 = vld [vmem:[%s227 + $0xc0] sm:$0xff]
        %v276 = vld [vmem:[%s227 + $0xc8] sm:$0xff]
        %v277 = vld [vmem:[%s227 + $0xd0] sm:$0xff]
        %v278 = vld [vmem:[%s227 + $0xd8] sm:$0xff]
        %v279 = vld [vmem:[%s227 + $0xe0] sm:$0xff]
        %v280 = vld [vmem:[%s227 + $0xe8] sm:$0xff]
        %v281 = vld [vmem:[%s227 + $0xf0] sm:$0xff]
        %v282 = vld [vmem:[%s227 + $0xf8] sm:$0xff]
        %v283 = vld [vmem:[%s2] sm:$0xff]
        %v284 = vld [vmem:[%s2 + $0x8] sm:$0xff]
        %286 = vset.pattern.permute.xlu0 0
        %287 = vperm.xlu0 %286, %v283
        %v288 = vpop.permute.xlu0 %287
        %291 = vset.pattern.permute.xlu0 0
        %292 = vperm.xlu0 %291, %v284
        %v293 = vpop.permute.xlu0 %292
        %vm295 = vcmask 261120
        %v297 = vsel %vm295, %v249, 0
        %v300 = vsel %vm295, %v250, 0
        %302 = vmatprep.subr.mxu0 %v252
        %303 = vmatpush1.msra.mxu0 %v251
        %304 = vmatprep.subr.mxu0 %v260
        %305 = vmatpush1.msra.mxu0 %v259
        %306 = vmatprep.subr.mxu0 %v268
        %307 = vmatpush1.msra.mxu0 %v267
        %308 = vmatprep.subr.mxu0 %v276
        %309 = vmatpush1.msra.mxu0 %v275
        %310 = vmatprep.subr.mxu0 0.0
        %311 = vmatpush1.msra.mxu0 0.0
        %312 = vmatprep.subr.mxu0 0.0
        %313 = vmatpush1.msra.mxu0 0.0
        %314 = vmatprep.subr.mxu0 0.0
        %315 = vmatpush1.msra.mxu0 0.0
        %316 = vmatprep.subr.mxu0 0.0
        %317 = vmatpush1.msra.mxu0 0.0
        %318 = vmatprep.subr.mxu0 0.0
        %319 = vmatpush1.msra.mxu0 0.0
        %320 = vmatprep.subr.mxu0 0.0
        %321 = vmatpush1.msra.mxu0 0.0
        %322 = vmatprep.subr.mxu0 0.0
        %323 = vmatpush1.msra.mxu0 0.0
        %324 = vmatprep.subr.mxu0 0.0
        %325 = vmatpush1.msra.mxu0 0.0
        %326 = vmatprep.subr.mxu0 0.0
        %327 = vmatpush1.msra.mxu0 0.0
        %328 = vmatprep.subr.mxu0 0.0
        %329 = vmatpush1.msra.mxu0 0.0
        %330 = vmatprep.subr.mxu0 0.0
        %331 = vmatpush1.msra.mxu0 0.0
        %332 = vmatprep.subr.mxu0 0.0
        %333 = vmatpush1.msra.mxu0 0.0
        %334 = vmatprep.subr.mxu0 0.0
        %335 = vmatpush1.msra.mxu0 0.0
        %336 = vmatprep.subr.mxu0 0.0
        %337 = vmatpush1.msra.mxu0 0.0
        %338 = vmatprep.subr.mxu0 0.0
        %339 = vmatpush1.msra.mxu0 0.0
        %340 = vmatprep.subr.mxu0 0.0
        %341 = vmatpush1.msra.mxu0 0.0
        %342 = vmatprep.subr.mxu0 0.0
        %343 = vmatpush1.msra.mxu0 0.0
        %344 = vmatprep.subr.mxu0 0.0
        %345 = vmatpush1.msra.mxu0 0.0
        %346 = vmatprep.subr.mxu0 0.0
        %347 = vmatpush1.msra.mxu0 0.0
        %348 = vmatprep.subr.mxu0 0.0
        %349 = vmatpush1.msra.mxu0 0.0
        %350 = vmatprep.subr.mxu0 0.0
        %351 = vmatpush1.msra.mxu0 0.0
        %352 = vmatprep.subr.mxu0 0.0
        %353 = vmatpush1.msra.mxu0 0.0
        %354 = vmatprep.subr.mxu0 0.0
        %355 = vmatpush1.msra.mxu0 0.0
        %356 = vmatprep.subr.mxu0 0.0
        %357 = vmatpush1.msra.mxu0 0.0
        %358 = vmatprep.subr.mxu0 0.0
        %359 = vmatpush1.msra.mxu0 0.0
        %360 = vmatprep.subr.mxu0 0.0
        %361 = vmatpush1.msra.mxu0 0.0
        %362 = vmatprep.subr.mxu0 0.0
        %363 = vmatpush1.msra.mxu0 0.0
        %364 = vmatprep.subr.mxu0 0.0
        %365 = vmatpush1.msra.mxu0 0.0
        %366 = vmatprep.mubr.f32.mxu0 0.0
        %367 = vmatmul.mubr.f32.gmra.mrb[0].mxu0 %v297
        %v368 = vpop.f32.mrb[0].mxu0
        %v369 = vadd.f32 %v288, %v368
        %v370 = vpop.f32.mrb[0].mxu0
        %v371 = vadd.f32 %v288, %v370
        %372 = vmatprep.mubr.f32.mxu0 0.0
        %373 = vmatmul.mubr.f32.gmra.mrb[0].mxu0 %v300
        %v374 = vpop.f32.mrb[0].mxu0
        %v375 = vadd.f32 %v293, %v374
        %v376 = vpop.f32.mrb[0].mxu0
        %v377 = vadd.f32 %v293, %v376
        %378 = vdwg.mxu0
        %379 = vmatprep.subr.mxu0 %v254
        %380 = vmatpush1.msra.mxu0 %v253
        %381 = vmatprep.subr.mxu0 %v262
        %382 = vmatpush1.msra.mxu0 %v261
        %383 = vmatprep.subr.mxu0 %v270
        %384 = vmatpush1.msra.mxu0 %v269
        %385 = vmatprep.subr.mxu0 %v278
        %386 = vmatpush1.msra.mxu0 %v277
        %387 = vmatprep.subr.mxu0 0.0
        %388 = vmatpush1.msra.mxu0 0.0
        %389 = vmatprep.subr.mxu0 0.0
        %390 = vmatpush1.msra.mxu0 0.0
        %391 = vmatprep.subr.mxu0 0.0
        %392 = vmatpush1.msra.mxu0 0.0
        %393 = vmatprep.subr.mxu0 0.0
        %394 = vmatpush1.msra.mxu0 0.0
        %395 = vmatprep.subr.mxu0 0.0
        %396 = vmatpush1.msra.mxu0 0.0
        %397 = vmatprep.subr.mxu0 0.0
        %398 = vmatpush1.msra.mxu0 0.0
        %399 = vmatprep.subr.mxu0 0.0
        %400 = vmatpush1.msra.mxu0 0.0
        %401 = vmatprep.subr.mxu0 0.0
        %402 = vmatpush1.msra.mxu0 0.0
        %403 = vmatprep.subr.mxu0 0.0
        %404 = vmatpush1.msra.mxu0 0.0
        %405 = vmatprep.subr.mxu0 0.0
        %406 = vmatpush1.msra.mxu0 0.0
        %407 = vmatprep.subr.mxu0 0.0
        %408 = vmatpush1.msra.mxu0 0.0
        %409 = vmatprep.subr.mxu0 0.0
        %410 = vmatpush1.msra.mxu0 0.0
        %411 = vmatprep.subr.mxu0 0.0
        %412 = vmatpush1.msra.mxu0 0.0
        %413 = vmatprep.subr.mxu0 0.0
        %414 = vmatpush1.msra.mxu0 0.0
        %415 = vmatprep.subr.mxu0 0.0
        %416 = vmatpush1.msra.mxu0 0.0
        %417 = vmatprep.subr.mxu0 0.0
        %418 = vmatpush1.msra.mxu0 0.0
        %419 = vmatprep.subr.mxu0 0.0
        %420 = vmatpush1.msra.mxu0 0.0
        %421 = vmatprep.subr.mxu0 0.0
        %422 = vmatpush1.msra.mxu0 0.0
        %423 = vmatprep.subr.mxu0 0.0
        %424 = vmatpush1.msra.mxu0 0.0
        %425 = vmatprep.subr.mxu0 0.0
        %426 = vmatpush1.msra.mxu0 0.0
        %427 = vmatprep.subr.mxu0 0.0
        %428 = vmatpush1.msra.mxu0 0.0
        %429 = vmatprep.subr.mxu0 0.0
        %430 = vmatpush1.msra.mxu0 0.0
        %431 = vmatprep.subr.mxu0 0.0
        %432 = vmatpush1.msra.mxu0 0.0
        %433 = vmatprep.subr.mxu0 0.0
        %434 = vmatpush1.msra.mxu0 0.0
        %435 = vmatprep.subr.mxu0 0.0
        %436 = vmatpush1.msra.mxu0 0.0
        %437 = vmatprep.subr.mxu0 0.0
        %438 = vmatpush1.msra.mxu0 0.0
        %439 = vmatprep.subr.mxu0 0.0
        %440 = vmatpush1.msra.mxu0 0.0
        %441 = vmatprep.subr.mxu0 0.0
        %442 = vmatpush1.msra.mxu0 0.0
        %443 = vmatprep.mubr.f32.mxu0 0.0
        %444 = vmatmul.mubr.f32.gmra.mrb[0].mxu0 %v297
        %v445 = vpop.f32.mrb[0].mxu0
        %v446 = vadd.f32 %v288, %v445
        %v447 = vpop.f32.mrb[0].mxu0
        %v448 = vadd.f32 %v288, %v447
        %449 = vmatprep.mubr.f32.mxu0 0.0
        %450 = vmatmul.mubr.f32.gmra.mrb[0].mxu0 %v300
        %v451 = vpop.f32.mrb[0].mxu0
        %v452 = vadd.f32 %v293, %v451
        %v453 = vpop.f32.mrb[0].mxu0
        %v454 = vadd.f32 %v293, %v453
        %455 = vdwg.mxu0
        %456 = vmatprep.subr.mxu0 %v256
        %457 = vmatpush1.msra.mxu0 %v255
        %458 = vmatprep.subr.mxu0 %v264
        %459 = vmatpush1.msra.mxu0 %v263
        %460 = vmatprep.subr.mxu0 %v272
        %461 = vmatpush1.msra.mxu0 %v271
        %462 = vmatprep.subr.mxu0 %v280
        %463 = vmatpush1.msra.mxu0 %v279
        %464 = vmatprep.subr.mxu0 0.0
        %465 = vmatpush1.msra.mxu0 0.0
        %466 = vmatprep.subr.mxu0 0.0
        %467 = vmatpush1.msra.mxu0 0.0
        %468 = vmatprep.subr.mxu0 0.0
        %469 = vmatpush1.msra.mxu0 0.0
        %470 = vmatprep.subr.mxu0 0.0
        %471 = vmatpush1.msra.mxu0 0.0
        %472 = vmatprep.subr.mxu0 0.0
        %473 = vmatpush1.msra.mxu0 0.0
        %474 = vmatprep.subr.mxu0 0.0
        %475 = vmatpush1.msra.mxu0 0.0
        %476 = vmatprep.subr.mxu0 0.0
        %477 = vmatpush1.msra.mxu0 0.0
        %478 = vmatprep.subr.mxu0 0.0
        %479 = vmatpush1.msra.mxu0 0.0
        %480 = vmatprep.subr.mxu0 0.0
        %481 = vmatpush1.msra.mxu0 0.0
        %482 = vmatprep.subr.mxu0 0.0
        %483 = vmatpush1.msra.mxu0 0.0
        %484 = vmatprep.subr.mxu0 0.0
        %485 = vmatpush1.msra.mxu0 0.0
        %486 = vmatprep.subr.mxu0 0.0
        %487 = vmatpush1.msra.mxu0 0.0
        %488 = vmatprep.subr.mxu0 0.0
        %489 = vmatpush1.msra.mxu0 0.0
        %490 = vmatprep.subr.mxu0 0.0
        %491 = vmatpush1.msra.mxu0 0.0
        %492 = vmatprep.subr.mxu0 0.0
        %493 = vmatpush1.msra.mxu0 0.0
        %494 = vmatprep.subr.mxu0 0.0
        %495 = vmatpush1.msra.mxu0 0.0
        %496 = vmatprep.subr.mxu0 0.0
        %497 = vmatpush1.msra.mxu0 0.0
        %498 = vmatprep.subr.mxu0 0.0
        %499 = vmatpush1.msra.mxu0 0.0
        %500 = vmatprep.subr.mxu0 0.0
        %501 = vmatpush1.msra.mxu0 0.0
        %502 = vmatprep.subr.mxu0 0.0
        %503 = vmatpush1.msra.mxu0 0.0
        %504 = vmatprep.subr.mxu0 0.0
        %505 = vmatpush1.msra.mxu0 0.0
        %506 = vmatprep.subr.mxu0 0.0
        %507 = vmatpush1.msra.mxu0 0.0
        %508 = vmatprep.subr.mxu0 0.0
        %509 = vmatpush1.msra.mxu0 0.0
        %510 = vmatprep.subr.mxu0 0.0
        %511 = vmatpush1.msra.mxu0 0.0
        %512 = vmatprep.subr.mxu0 0.0
        %513 = vmatpush1.msra.mxu0 0.0
        %514 = vmatprep.subr.mxu0 0.0
        %515 = vmatpush1.msra.mxu0 0.0
        %516 = vmatprep.subr.mxu0 0.0
        %517 = vmatpush1.msra.mxu0 0.0
        %518 = vmatprep.subr.mxu0 0.0
        %519 = vmatpush1.msra.mxu0 0.0
        %520 = vmatprep.mubr.f32.mxu0 0.0
        %521 = vmatmul.mubr.f32.gmra.mrb[0].mxu0 %v297
        %v522 = vpop.f32.mrb[0].mxu0
        %v523 = vadd.f32 %v288, %v522
        %v524 = vpop.f32.mrb[0].mxu0
        %v525 = vadd.f32 %v288, %v524
        %526 = vmatprep.mubr.f32.mxu0 0.0
        %527 = vmatmul.mubr.f32.gmra.mrb[0].mxu0 %v300
        %v528 = vpop.f32.mrb[0].mxu0
        %v529 = vadd.f32 %v293, %v528
        %v530 = vpop.f32.mrb[0].mxu0
        %v531 = vadd.f32 %v293, %v530
        %532 = vdwg.mxu0
        %533 = vmatprep.subr.mxu0 %v258
        %534 = vmatpush1.msra.mxu0 %v257
        %535 = vmatprep.subr.mxu0 %v266
        %536 = vmatpush1.msra.mxu0 %v265
        %537 = vmatprep.subr.mxu0 %v274
        %538 = vmatpush1.msra.mxu0 %v273
        %539 = vmatprep.subr.mxu0 %v282
        %540 = vmatpush1.msra.mxu0 %v281
        %541 = vmatprep.subr.mxu0 0.0
        %542 = vmatpush1.msra.mxu0 0.0
        %543 = vmatprep.subr.mxu0 0.0
        %544 = vmatpush1.msra.mxu0 0.0
        %545 = vmatprep.subr.mxu0 0.0
        %546 = vmatpush1.msra.mxu0 0.0
        %547 = vmatprep.subr.mxu0 0.0
        %548 = vmatpush1.msra.mxu0 0.0
        %549 = vmatprep.subr.mxu0 0.0
        %550 = vmatpush1.msra.mxu0 0.0
        %551 = vmatprep.subr.mxu0 0.0
        %552 = vmatpush1.msra.mxu0 0.0
        %553 = vmatprep.subr.mxu0 0.0
        %554 = vmatpush1.msra.mxu0 0.0
        %555 = vmatprep.subr.mxu0 0.0
        %556 = vmatpush1.msra.mxu0 0.0
        %557 = vmatprep.subr.mxu0 0.0
        %558 = vmatpush1.msra.mxu0 0.0
        %559 = vmatprep.subr.mxu0 0.0
        %560 = vmatpush1.msra.mxu0 0.0
        %561 = vmatprep.subr.mxu0 0.0
        %562 = vmatpush1.msra.mxu0 0.0
        %563 = vmatprep.subr.mxu0 0.0
        %564 = vmatpush1.msra.mxu0 0.0
        %565 = vmatprep.subr.mxu0 0.0
        %566 = vmatpush1.msra.mxu0 0.0
        %567 = vmatprep.subr.mxu0 0.0
        %568 = vmatpush1.msra.mxu0 0.0
        %569 = vmatprep.subr.mxu0 0.0
        %570 = vmatpush1.msra.mxu0 0.0
        %571 = vmatprep.subr.mxu0 0.0
        %572 = vmatpush1.msra.mxu0 0.0
        %573 = vmatprep.subr.mxu0 0.0
        %574 = vmatpush1.msra.mxu0 0.0
        %575 = vmatprep.subr.mxu0 0.0
        %576 = vmatpush1.msra.mxu0 0.0
        %577 = vmatprep.subr.mxu0 0.0
        %578 = vmatpush1.msra.mxu0 0.0
        %579 = vmatprep.subr.mxu0 0.0
        %580 = vmatpush1.msra.mxu0 0.0
        %581 = vmatprep.subr.mxu0 0.0
        %582 = vmatpush1.msra.mxu0 0.0
        %583 = vmatprep.subr.mxu0 0.0
        %584 = vmatpush1.msra.mxu0 0.0
        %585 = vmatprep.subr.mxu0 0.0
        %586 = vmatpush1.msra.mxu0 0.0
        %587 = vmatprep.subr.mxu0 0.0
        %588 = vmatpush1.msra.mxu0 0.0
        %589 = vmatprep.subr.mxu0 0.0
        %590 = vmatpush1.msra.mxu0 0.0
        %591 = vmatprep.subr.mxu0 0.0
        %592 = vmatpush1.msra.mxu0 0.0
        %593 = vmatprep.subr.mxu0 0.0
        %594 = vmatpush1.msra.mxu0 0.0
        %595 = vmatprep.subr.mxu0 0.0
        %596 = vmatpush1.msra.mxu0 0.0
        %597 = vmatprep.mubr.f32.mxu0 0.0
        %598 = vmatmul.mubr.f32.gmra.mrb[0].mxu0 %v297
        %v599 = vpop.f32.mrb[0].mxu0
        %v600 = vadd.f32 %v288, %v599
        %v601 = vpop.f32.mrb[0].mxu0
        %v602 = vadd.f32 %v288, %v601
        %603 = vmatprep.mubr.f32.mxu0 0.0
        %604 = vmatmul.mubr.f32.gmra.mrb[0].mxu0 %v300
        %v605 = vpop.f32.mrb[0].mxu0
        %v606 = vadd.f32 %v293, %v605
        %v607 = vpop.f32.mrb[0].mxu0
        %v608 = vadd.f32 %v293, %v607
        %609 = vdwg.mxu0
        %610 = vst [vmem:[%s246] sm:$0xff] %v369
        %611 = vst [vmem:[%s246 + $0x8] sm:$0xff] %v371
        %612 = vst [vmem:[%s246 + $0x10] sm:$0xff] %v446
        %613 = vst [vmem:[%s246 + $0x18] sm:$0xff] %v448
        %614 = vst [vmem:[%s246 + $0x20] sm:$0xff] %v523
        %615 = vst [vmem:[%s246 + $0x28] sm:$0xff] %v525
        %616 = vst [vmem:[%s246 + $0x30] sm:$0xff] %v600
        %617 = vst [vmem:[%s246 + $0x38] sm:$0xff] %v602
        %618 = vst [vmem:[%s246 + $0x40] sm:$0xff] %v375
        %619 = vst [vmem:[%s246 + $0x48] sm:$0xff] %v377
        %620 = vst [vmem:[%s246 + $0x50] sm:$0xff] %v452
        %621 = vst [vmem:[%s246 + $0x58] sm:$0xff] %v454
        %622 = vst [vmem:[%s246 + $0x60] sm:$0xff] %v529
        %623 = vst [vmem:[%s246 + $0x68] sm:$0xff] %v531
        %624 = vst [vmem:[%s246 + $0x70] sm:$0xff] %v606
        %625 = vst [vmem:[%s246 + $0x78] sm:$0xff] %v608
        %s626 = sand.u32 %s90, 1
        %s627 = sand.u32 %s90, 1
        %s628 = smul.addr %s627, 128
        %s629 = scalar_lea.vmem [#allocation3], %s628
        // Predicated region
        $region56: #{resnet_forward.7} parent=50 // pred_check
          %p630 = pneg %p100
        $region57: #{resnet_forward.7} parent=50 // pred_check_branch
          %632 = sbr.rel (%p630) target = $region59
        $region58: #{resnet_forward.7} parent=50 // pred_region
          %s633 = smul.u32 8, %s14
          %s634 = smul.addr %s633, 8
          %s635 = scalar_lea.vmem %s3, %s634
          // Predicated region
          $region60: #{resnet_forward.7} parent=58 // pred_check
            _
          $region61: #{resnet_forward.7} parent=58 // pred_check_branch
            %637 = sbr.rel (0) target = $region63
          $region62: #{resnet_forward.7} parent=58 // pred_region
            // Predicated region
            $region64: #{resnet_forward.7} parent=62 // pred_check
              _
            $region65: #{resnet_forward.7} parent=62 // pred_check_branch
              %639 = sbr.rel (0) target = $region67
            $region66: #{resnet_forward.7} parent=62 // pred_region
              loop: start=0, step=1, limit=1
              $region68: #{resnet_forward.7} parent=66 // loop_pre_header
                _
              $region69: #{resnet_forward.7} parent=66 // loop_header
                %s641 = sphi 0, %s645
                %p642 = scmp.ge.s32.totalorder %s641, 1
                %s646 = sphi %s629, %s629
                %s647 = sphi %s635, %s635
              $region70: #{resnet_forward.7} parent=66 // loop_header_branch
                %644 = sbr.rel (%p642) target = $region74
              $region71: #{resnet_forward.7} parent=66 // loop_body
                %v648 = vld [vmem:[%s646] sm:$0xff]
                %649 = vst [vmem:[%s647] sm:$0xff] %v648
                %v650 = vld [vmem:[%s646 + $0x8] sm:$0xff]
                %651 = vst [vmem:[%s647 + $0x8] sm:$0xff] %v650
                %v652 = vld [vmem:[%s646 + $0x10] sm:$0xff]
                %653 = vst [vmem:[%s647 + $0x10] sm:$0xff] %v652
                %v654 = vld [vmem:[%s646 + $0x18] sm:$0xff]
                %655 = vst [vmem:[%s647 + $0x18] sm:$0xff] %v654
                %v656 = vld [vmem:[%s646 + $0x20] sm:$0xff]
                %657 = vst [vmem:[%s647 + $0x20] sm:$0xff] %v656
                %v658 = vld [vmem:[%s646 + $0x28] sm:$0xff]
                %659 = vst [vmem:[%s647 + $0x28] sm:$0xff] %v658
                %v660 = vld [vmem:[%s646 + $0x30] sm:$0xff]
                %661 = vst [vmem:[%s647 + $0x30] sm:$0xff] %v660
                %v662 = vld [vmem:[%s646 + $0x38] sm:$0xff]
                %663 = vst [vmem:[%s647 + $0x38] sm:$0xff] %v662
                %v664 = vld [vmem:[%s646 + $0x40] sm:$0xff]
                %665 = vst [vmem:[%s647 + $0x80] sm:$0xff] %v664
                %v666 = vld [vmem:[%s646 + $0x48] sm:$0xff]
                %667 = vst [vmem:[%s647 + $0x88] sm:$0xff] %v666
                %v668 = vld [vmem:[%s646 + $0x50] sm:$0xff]
                %669 = vst [vmem:[%s647 + $0x90] sm:$0xff] %v668
                %v670 = vld [vmem:[%s646 + $0x58] sm:$0xff]
                %671 = vst [vmem:[%s647 + $0x98] sm:$0xff] %v670
                %v672 = vld [vmem:[%s646 + $0x60] sm:$0xff]
                %673 = vst [vmem:[%s647 + $0xa0] sm:$0xff] %v672
                %v674 = vld [vmem:[%s646 + $0x68] sm:$0xff]
                %675 = vst [vmem:[%s647 + $0xa8] sm:$0xff] %v674
                %v676 = vld [vmem:[%s646 + $0x70] sm:$0xff]
                %677 = vst [vmem:[%s647 + $0xb0] sm:$0xff] %v676
                %v678 = vld [vmem:[%s646 + $0x78] sm:$0xff]
                %679 = vst [vmem:[%s647 + $0xb8] sm:$0xff] %v678
              $region72: #{resnet_forward.7} parent=66 // loop_footer
                %s645 = sadd.s32 1, %s641
              $region73: #{resnet_forward.7} parent=66 // loop_footer_branch
                %640 = sbr.rel target = $region69
              $region74: #{resnet_forward.7} parent=66 // loop_exit
                _
            $region67: #{resnet_forward.7} parent=62 // pred_fallthru
              _
            // Predicated region
            $region75: #{resnet_forward.7} parent=62 // pred_check
              _
            $region76: #{resnet_forward.7} parent=62 // pred_check_branch
              %681 = sbr.rel target = $region78
            $region77: #{resnet_forward.7} parent=62 // pred_region
              _
            $region78: #{resnet_forward.7} parent=62 // pred_fallthru
              _
          $region63: #{resnet_forward.7} parent=58 // pred_fallthru
            _
          %682 = vnop
        $region59: #{resnet_forward.7} parent=50 // pred_fallthru
          _
      $region51: #{resnet_forward.7} parent=5 // pred_fallthru
        _
      %p683 = scmp.le.s32.totalorder 2, %s9
      // Predicated region
      $region79: #{resnet_forward.7} parent=5 // pred_check
        %p684 = pneg %p683
      $region80: #{resnet_forward.7} parent=5 // pred_check_branch
        %686 = sbr.rel (%p684) target = $region82
      $region81: #{resnet_forward.7} parent=5 // pred_region
        %s687 = ssub.s32 %s9, 2
        // Predicated region
        $region83: #{resnet_forward.7} parent=81 // pred_check
          %p688 = pneg %p106
        $region84: #{resnet_forward.7} parent=81 // pred_check_branch
          %690 = sbr.rel (%p688) target = $region86
        $region85: #{resnet_forward.7} parent=81 // pred_region
          %s691 = sand.u32 %s91, 1
          %s692 = sand.u32 %s91, 1
          %s693 = smul.addr %s692, 128
          %s694 = scalar_lea.vmem [#allocation3], %s693
        $region86: #{resnet_forward.7} parent=81 // pred_fallthru
          _
      $region82: #{resnet_forward.7} parent=5 // pred_fallthru
        _
    $region6: #{resnet_forward.7} parent=1 // loop_footer
      %s13 = sadd.s32 1, %s9
    $region7: #{resnet_forward.7} parent=1 // loop_footer_branch
      %8 = sbr.rel target = $region3
    $region8: #{resnet_forward.7} parent=1 // loop_exit
      _

// kernel: resnet_forward.8
$region0: #{resnet_forward.8}
  #allocation0 [shape = 'u32[]', space=smem, size = 0x4, offset = 0x4, fixed_abs, tag = 'smem constant byte address 0x4 - core index']
  #allocation1 [shape = 'u32[144,128]{1,0:T(1,128)}', space=vmem, size = 0x12000, scoped, tag = 'internal scratch']
  %s0 = inlined_call_operand.vmem [shape: f32[144,2048], index: 0, kind: input, shape index: {}]
  %s1 = inlined_call_operand.vmem [shape: f32[16,144], index: 1, kind: input, shape index: {}]
  %s2 = inlined_call_operand.vmem [shape: f32[16,1], index: 2, kind: input, shape index: {}]
  %s3 = inlined_call_operand.vmem [shape: f32[16,2048], index: 3, kind: output, shape index: {}]
  %s4 = sld [smem:[#allocation0]]
  $region87: #{resnet_forward.8} parent=0
    _
  %s6 = ssub.s32 1, %s4
  %s7 = scalar_select 0, %s6, %s4
  $region1: #{resnet_forward.8} parent=0
    #allocation2 [shape = 'u8[1179648]{0}', space=vmem, size = 0x120000, scoped, tag = 'input window, operand 0']
    #allocation3 [shape = 'u8[131072]{0}', space=vmem, size = 0x20000, scoped, tag = 'output window, operand 0']
    loop: start=0, step=1, limit=4
    $region2: #{resnet_forward.8} parent=1 // loop_pre_header
      _
    $region3: #{resnet_forward.8} parent=1 // loop_header
      %s9 = sphi 0, %s13
      %p10 = scmp.ge.s32.totalorder %s9, 4
      %s19 = sphi 0, %s21
      %s22 = sphi 0, %s19
      %s23 = sphi 0, %s22
      %s39 = sphi 0, %s23
      %s43 = sphi 0, %s43
      %s45 = sphi 0, %s43
      %s46 = sphi 0, %s45
      %s60 = sphi 0, %s46
      %s64 = sphi 0, %s64
      %s66 = sphi 0, %s64
      %s67 = sphi 0, %s66
      %s81 = sphi 0, %s67
      %s87 = sphi 0, %s89
      %s90 = sphi 0, %s87
      %s91 = sphi 0, %s90
      %s107 = sphi 0, %s91
    $region4: #{resnet_forward.8} parent=1 // loop_header_branch
      %12 = sbr.rel (%p10) target = $region8
    $region5: #{resnet_forward.8} parent=1 // loop_body
      %s14 = ssub.s32 %s9, 1
      %s15 = ssub.s32 %s9, 2
      %s16 = sadd.s32 %s9, 1
      %s17 = ssub.s32 %s9, %s16
      %p18 = scmp.eq.s32.totalorder %s17, 0
      %s20 = sadd.s32 %s19, 1
      %s21 = scalar_select %p18, %s19, %s20
      %p24 = pneg %p18
      %p25 = scmp.eq.s32.totalorder %s9, 1
      %p26 = por %p24, %p25
      %p27 = scmp.ne.s32.totalorder %s19, %s22
      %p28 = scmp.eq.s32.totalorder %s9, 0
      %p29 = por %p27, %p28
      %p30 = scmp.ne.s32.totalorder %s19, %s22
      %p31 = scmp.eq.s32.totalorder %s14, 1
      %p32 = por %p30, %p31
      %p33 = scmp.ne.s32.totalorder %s22, %s23
      %p34 = scmp.eq.s32.totalorder %s14, 0
      %p35 = por %p33, %p34
      %p36 = scmp.ne.s32.totalorder %s22, %s23
      %p37 = scmp.eq.s32.totalorder %s15, 1
      %p38 = por %p36, %p37
      %p40 = scmp.ne.s32.totalorder %s23, %s39
      %p41 = scmp.eq.s32.totalorder %s15, 0
      %p42 = por %p40, %p41
      %s44 = sadd.s32 %s43, 1
      %p47 = scmp.eq.s32.totalorder %s9, 1
      %p48 = scmp.ne.s32.totalorder %s43, %s45
      %p49 = scmp.eq.s32.totalorder %s9, 0
      %p50 = por %p48, %p49
      %p51 = scmp.ne.s32.totalorder %s43, %s45
      %p52 = scmp.eq.s32.totalorder %s14, 1
      %p53 = por %p51, %p52
      %p54 = scmp.ne.s32.totalorder %s45, %s46
      %p55 = scmp.eq.s32.totalorder %s14, 0
      %p56 = por %p54, %p55
      %p57 = scmp.ne.s32.totalorder %s45, %s46
      %p58 = scmp.eq.s32.totalorder %s15, 1
      %p59 = por %p57, %p58
      %p61 = scmp.ne.s32.totalorder %s46, %s60
      %p62 = scmp.eq.s32.totalorder %s15, 0
      %p63 = por %p61, %p62
      %s65 = sadd.s32 %s64, 1
      %p68 = scmp.eq.s32.totalorder %s9, 1
      %p69 = scmp.ne.s32.totalorder %s64, %s66
      %p70 = scmp.eq.s32.totalorder %s9, 0
      %p71 = por %p69, %p70
      %p72 = scmp.ne.s32.totalorder %s64, %s66
      %p73 = scmp.eq.s32.totalorder %s14, 1
      %p74 = por %p72, %p73
      %p75 = scmp.ne.s32.totalorder %s66, %s67
      %p76 = scmp.eq.s32.totalorder %s14, 0
      %p77 = por %p75, %p76
      %p78 = scmp.ne.s32.totalorder %s66, %s67
      %p79 = scmp.eq.s32.totalorder %s15, 1
      %p80 = por %p78, %p79
      %p82 = scmp.ne.s32.totalorder %s67, %s81
      %p83 = scmp.eq.s32.totalorder %s15, 0
      %p84 = por %p82, %p83
      %s85 = ssub.s32 %s9, %s16
      %p86 = scmp.eq.s32.totalorder %s85, 0
      %s88 = sadd.s32 %s87, 1
      %s89 = scalar_select %p86, %s87, %s88
      %p92 = pneg %p86
      %p93 = scmp.eq.s32.totalorder %s9, 1
      %p94 = por %p92, %p93
      %p95 = scmp.ne.s32.totalorder %s87, %s90
      %p96 = scmp.eq.s32.totalorder %s9, 0
      %p97 = por %p95, %p96
      %p98 = scmp.ne.s32.totalorder %s87, %s90
      %p99 = scmp.eq.s32.totalorder %s14, 1
      %p100 = por %p98, %p99
      %p101 = scmp.ne.s32.totalorder %s90, %s91
      %p102 = scmp.eq.s32.totalorder %s14, 0
      %p103 = por %p101, %p102
      %p104 = scmp.ne.s32.totalorder %s90, %s91
      %p105 = scmp.eq.s32.totalorder %s15, 1
      %p106 = por %p104, %p105
      %p108 = scmp.ne.s32.totalorder %s91, %s107
      %p109 = scmp.eq.s32.totalorder %s15, 0
      %p110 = por %p108, %p109
      %p111 = scmp.le.s32.totalorder 1, %s9
      %p112 = scmp.lt.s32.totalorder %s9, 3
      %p113 = pnand %p111, %p112
      %p114 = pneg %p113
      // Predicated region
      $region9: #{resnet_forward.8} parent=5 // pred_check
        _
      $region10: #{resnet_forward.8} parent=5 // pred_check_branch
        %116 = sbr.rel (%p113) target = $region12
      $region11: #{resnet_forward.8} parent=5 // pred_region
        %s117 = ssub.s32 %s9, 1
        // Predicated region
        $region13: #{resnet_forward.8} parent=11 // pred_check
          %p118 = pneg %p56
        $region14: #{resnet_forward.8} parent=11 // pred_check_branch
          %120 = sbr.rel (%p118) target = $region16
        $region15: #{resnet_forward.8} parent=11 // pred_region
          _
        $region16: #{resnet_forward.8} parent=11 // pred_fallthru
          _
        // Predicated region
        $region17: #{resnet_forward.8} parent=11 // pred_check
          %p121 = pneg %p77
        $region18: #{resnet_forward.8} parent=11 // pred_check_branch
          %123 = sbr.rel (%p121) target = $region20
        $region19: #{resnet_forward.8} parent=11 // pred_region
          _
        $region20: #{resnet_forward.8} parent=11 // pred_fallthru
          _
      $region12: #{resnet_forward.8} parent=5 // pred_fallthru
        _
      %p124 = scmp.lt.s32.totalorder %s9, 2
      // Predicated region
      $region21: #{resnet_forward.8} parent=5 // pred_check
        %p125 = pneg %p124
      $region22: #{resnet_forward.8} parent=5 // pred_check_branch
        %127 = sbr.rel (%p125) target = $region24
      $region23: #{resnet_forward.8} parent=5 // pred_region
        // Predicated region
        $region25: #{resnet_forward.8} parent=23 // pred_check
          %p128 = pneg %p29
        $region26: #{resnet_forward.8} parent=23 // pred_check_branch
          %130 = sbr.rel (%p128) target = $region28
        $region27: #{resnet_forward.8} parent=23 // pred_region
          %s131 = sand.u32 %s19, 1
          %s132 = sand.u32 %s19, 1
          %s133 = smul.addr %s132, 1152
          %s134 = scalar_lea.vmem [#allocation2], %s133
          %s135 = smul.u32 8, %s9
          %s136 = smul.addr %s135, 8
          %s137 = scalar_lea.vmem %s0, %s136
          // Predicated region
          $region29: #{resnet_forward.8} parent=27 // pred_check
            _
          $region30: #{resnet_forward.8} parent=27 // pred_check_branch
            %139 = sbr.rel (0) target = $region32
          $region31: #{resnet_forward.8} parent=27 // pred_region
            // Predicated region
            $region33: #{resnet_forward.8} parent=31 // pred_check
              _
            $region34: #{resnet_forward.8} parent=31 // pred_check_branch
              %141 = sbr.rel (0) target = $region36
            $region35: #{resnet_forward.8} parent=31 // pred_region
              loop: start=0, step=1, limit=1
              $region37: #{resnet_forward.8} parent=35 // loop_pre_header
                _
              $region38: #{resnet_forward.8} parent=35 // loop_header
                %s143 = sphi 0, %s147
                %p144 = scmp.ge.s32.totalorder %s143, 1
                %s148 = sphi %s137, %s137
                %s149 = sphi %s134, %s134
              $region39: #{resnet_forward.8} parent=35 // loop_header_branch
                %146 = sbr.rel (%p144) target = $region43
              $region40: #{resnet_forward.8} parent=35 // loop_body
                %v150 = vld [vmem:[%s148] sm:$0xff]
                %151 = vst [vmem:[%s149] sm:$0xff] %v150
                %v152 = vld [vmem:[%s148 + $0x8] sm:$0xff]
                %153 = vst [vmem:[%s149 + $0x8] sm:$0xff] %v152
                %v154 = vld [vmem:[%s148 + $0x10] sm:$0xff]
                %155 = vst [vmem:[%s149 + $0x10] sm:$0xff] %v154
                %v156 = vld [vmem:[%s148 + $0x18] sm:$0xff]
                %157 = vst [vmem:[%s149 + $0x18] sm:$0xff] %v156
                %v158 = vld [vmem:[%s148 + $0x20] sm:$0xff]
                %159 = vst [vmem:[%s149 + $0x20] sm:$0xff] %v158
                %v160 = vld [vmem:[%s148 + $0x28] sm:$0xff]
                %161 = vst [vmem:[%s149 + $0x28] sm:$0xff] %v160
                %v162 = vld [vmem:[%s148 + $0x30] sm:$0xff]
                %163 = vst [vmem:[%s149 + $0x30] sm:$0xff] %v162
                %v164 = vld [vmem:[%s148 + $0x38] sm:$0xff]
                %165 = vst [vmem:[%s149 + $0x38] sm:$0xff] %v164
                %v166 = vld [vmem:[%s148 + $0x80] sm:$0xff]
                %167 = vst [vmem:[%s149 + $0x40] sm:$0xff] %v166
                %v168 = vld [vmem:[%s148 + $0x88] sm:$0xff]
                %169 = vst [vmem:[%s149 + $0x48] sm:$0xff] %v168
                %v170 = vld [vmem:[%s148 + $0x90] sm:$0xff]
                %171 = vst [vmem:[%s149 + $0x50] sm:$0xff] %v170
                %v172 = vld [vmem:[%s148 + $0x98] sm:$0xff]
                %173 = vst [vmem:[%s149 + $0x58] sm:$0xff] %v172
                %v174 = vld [vmem:[%s148 + $0xa0] sm:$0xff]
                %175 = vst [vmem:[%s149 + $0x60] sm:$0xff] %v174
                %v176 = vld [vmem:[%s148 + $0xa8] sm:$0xff]
                %177 = vst [vmem:[%s149 + $0x68] sm:$0xff] %v176
                %v178 = vld [vmem:[%s148 + $0xb0] sm:$0xff]
                %179 = vst [vmem:[%s149 + $0x70] sm:$0xff] %v178
                %v180 = vld [vmem:[%s148 + $0xb8] sm:$0xff]
                %181 = vst [vmem:[%s149 + $0x78] sm:$0xff] %v180
                %v182 = vld [vmem:[%s148 + $0x100] sm:$0xff]
                %183 = vst [vmem:[%s149 + $0x80] sm:$0xff] %v182
                %v184 = vld [vmem:[%s148 + $0x108] sm:$0xff]
                %185 = vst [vmem:[%s149 + $0x88] sm:$0xff] %v184
                %v186 = vld [vmem:[%s148 + $0x110] sm:$0xff]
                %187 = vst [vmem:[%s149 + $0x90] sm:$0xff] %v186
                %v188 = vld [vmem:[%s148 + $0x118] sm:$0xff]
                %189 = vst [vmem:[%s149 + $0x98] sm:$0xff] %v188
                %v190 = vld [vmem:[%s148 + $0x120] sm:$0xff]
                %191 = vst [vmem:[%s149 + $0xa0] sm:$0xff] %v190
                %v192 = vld [vmem:[%s148 + $0x128] sm:$0xff]
                %193 = vst [vmem:[%s149 + $0xa8] sm:$0xff] %v192
                %v194 = vld [vmem:[%s148 + $0x130] sm:$0xff]
                %195 = vst [vmem:[%s149 + $0xb0] sm:$0xff] %v194
                %v196 = vld [vmem:[%s148 + $0x138] sm:$0xff]
                %197 = vst [vmem:[%s149 + $0xb8] sm:$0xff] %v196
                %v198 = vld [vmem:[%s148 + $0x180] sm:$0xff]
                %199 = vst [vmem:[%s149 + $0xc0] sm:$0xff] %v198
                %v200 = vld [vmem:[%s148 + $0x188] sm:$0xff]
                %201 = vst [vmem:[%s149 + $0xc8] sm:$0xff] %v200
                %v202 = vld [vmem:[%s148 + $0x190] sm:$0xff]
                %203 = vst [vmem:[%s149 + $0xd0] sm:$0xff] %v202
                %v204 = vld [vmem:[%s148 + $0x198] sm:$0xff]
                %205 = vst [vmem:[%s149 + $0xd8] sm:$0xff] %v204
                %v206 = vld [vmem:[%s148 + $0x1a0] sm:$0xff]
                %207 = vst [vmem:[%s149 + $0xe0] sm:$0xff] %v206
                %v208 = vld [vmem:[%s148 + $0x1a8] sm:$0xff]
                %209 = vst [vmem:[%s149 + $0xe8] sm:$0xff] %v208
                %v210 = vld [vmem:[%s148 + $0x1b0] sm:$0xff]
                %211 = vst [vmem:[%s149 + $0xf0] sm:$0xff] %v210
                %v212 = vld [vmem:[%s148 + $0x1b8] sm:$0xff]
                %213 = vst [vmem:[%s149 + $0xf8] sm:$0xff] %v212
                %v214 = vld [vmem:[%s148 + $0x200] sm:$0xff]
                %215 = vst [vmem:[%s149 + $0x100] sm:$0xff] %v214
                %v216 = vld [vmem:[%s148 + $0x208] sm:$0xff]
                %217 = vst [vmem:[%s149 + $0x108] sm:$0xff] %v216
                %v218 = vld [vmem:[%s148 + $0x210] sm:$0xff]
                %219 = vst [vmem:[%s149 + $0x110] sm:$0xff] %v218
                %v220 = vld [vmem:[%s148 + $0x218] sm:$0xff]
                %221 = vst [vmem:[%s149 + $0x118] sm:$0xff] %v220
                %v222 = vld [vmem:[%s148 + $0x220] sm:$0xff]
                %223 = vst [vmem:[%s149 + $0x120] sm:$0xff] %v222
                %v224 = vld [vmem:[%s148 + $0x228] sm:$0xff]
                %225 = vst [vmem:[%s149 + $0x128] sm:$0xff] %v224
                %v226 = vld [vmem:[%s148 + $0x230] sm:$0xff]
                %227 = vst [vmem:[%s149 + $0x130] sm:$0xff] %v226
                %v228 = vld [vmem:[%s148 + $0x238] sm:$0xff]
                %229 = vst [vmem:[%s149 + $0x138] sm:$0xff] %v228
                %v230 = vld [vmem:[%s148 + $0x280] sm:$0xff]
                %231 = vst [vmem:[%s149 + $0x140] sm:$0xff] %v230
                %v232 = vld [vmem:[%s148 + $0x288] sm:$0xff]
                %233 = vst [vmem:[%s149 + $0x148] sm:$0xff] %v232
                %v234 = vld [vmem:[%s148 + $0x290] sm:$0xff]
                %235 = vst [vmem:[%s149 + $0x150] sm:$0xff] %v234
                %v236 = vld [vmem:[%s148 + $0x298] sm:$0xff]
                %237 = vst [vmem:[%s149 + $0x158] sm:$0xff] %v236
                %v238 = vld [vmem:[%s148 + $0x2a0] sm:$0xff]
                %239 = vst [vmem:[%s149 + $0x160] sm:$0xff] %v238
                %v240 = vld [vmem:[%s148 + $0x2a8] sm:$0xff]
                %241 = vst [vmem:[%s149 + $0x168] sm:$0xff] %v240
                %v242 = vld [vmem:[%s148 + $0x2b0] sm:$0xff]
                %243 = vst [vmem:[%s149 + $0x170] sm:$0xff] %v242
                %v244 = vld [vmem:[%s148 + $0x2b8] sm:$0xff]
                %245 = vst [vmem:[%s149 + $0x178] sm:$0xff] %v244
                %v246 = vld [vmem:[%s148 + $0x300] sm:$0xff]
                %247 = vst [vmem:[%s149 + $0x180] sm:$0xff] %v246
                %v248 = vld [vmem:[%s148 + $0x308] sm:$0xff]
                %249 = vst [vmem:[%s149 + $0x188] sm:$0xff] %v248
                %v250 = vld [vmem:[%s148 + $0x310] sm:$0xff]
                %251 = vst [vmem:[%s149 + $0x190] sm:$0xff] %v250
                %v252 = vld [vmem:[%s148 + $0x318] sm:$0xff]
                %253 = vst [vmem:[%s149 + $0x198] sm:$0xff] %v252
                %v254 = vld [vmem:[%s148 + $0x320] sm:$0xff]
                %255 = vst [vmem:[%s149 + $0x1a0] sm:$0xff] %v254
                %v256 = vld [vmem:[%s148 + $0x328] sm:$0xff]
                %257 = vst [vmem:[%s149 + $0x1a8] sm:$0xff] %v256
                %v258 = vld [vmem:[%s148 + $0x330] sm:$0xff]
                %259 = vst [vmem:[%s149 + $0x1b0] sm:$0xff] %v258
                %v260 = vld [vmem:[%s148 + $0x338] sm:$0xff]
                %261 = vst [vmem:[%s149 + $0x1b8] sm:$0xff] %v260
                %v262 = vld [vmem:[%s148 + $0x380] sm:$0xff]
                %263 = vst [vmem:[%s149 + $0x1c0] sm:$0xff] %v262
                %v264 = vld [vmem:[%s148 + $0x388] sm:$0xff]
                %265 = vst [vmem:[%s149 + $0x1c8] sm:$0xff] %v264
                %v266 = vld [vmem:[%s148 + $0x390] sm:$0xff]
                %267 = vst [vmem:[%s149 + $0x1d0] sm:$0xff] %v266
                %v268 = vld [vmem:[%s148 + $0x398] sm:$0xff]
                %269 = vst [vmem:[%s149 + $0x1d8] sm:$0xff] %v268
                %v270 = vld [vmem:[%s148 + $0x3a0] sm:$0xff]
                %271 = vst [vmem:[%s149 + $0x1e0] sm:$0xff] %v270
                %v272 = vld [vmem:[%s148 + $0x3a8] sm:$0xff]
                %273 = vst [vmem:[%s149 + $0x1e8] sm:$0xff] %v272
                %v274 = vld [vmem:[%s148 + $0x3b0] sm:$0xff]
                %275 = vst [vmem:[%s149 + $0x1f0] sm:$0xff] %v274
                %v276 = vld [vmem:[%s148 + $0x3b8] sm:$0xff]
                %277 = vst [vmem:[%s149 + $0x1f8] sm:$0xff] %v276
                %v278 = vld [vmem:[%s148 + $0x400] sm:$0xff]
                %279 = vst [vmem:[%s149 + $0x200] sm:$0xff] %v278
                %v280 = vld [vmem:[%s148 + $0x408] sm:$0xff]
                %281 = vst [vmem:[%s149 + $0x208] sm:$0xff] %v280
                %v282 = vld [vmem:[%s148 + $0x410] sm:$0xff]
                %283 = vst [vmem:[%s149 + $0x210] sm:$0xff] %v282
                %v284 = vld [vmem:[%s148 + $0x418] sm:$0xff]
                %285 = vst [vmem:[%s149 + $0x218] sm:$0xff] %v284
                %v286 = vld [vmem:[%s148 + $0x420] sm:$0xff]
                %287 = vst [vmem:[%s149 + $0x220] sm:$0xff] %v286
                %v288 = vld [vmem:[%s148 + $0x428] sm:$0xff]
                %289 = vst [vmem:[%s149 + $0x228] sm:$0xff] %v288
                %v290 = vld [vmem:[%s148 + $0x430] sm:$0xff]
                %291 = vst [vmem:[%s149 + $0x230] sm:$0xff] %v290
                %v292 = vld [vmem:[%s148 + $0x438] sm:$0xff]
                %293 = vst [vmem:[%s149 + $0x238] sm:$0xff] %v292
                %v294 = vld [vmem:[%s148 + $0x480] sm:$0xff]
                %295 = vst [vmem:[%s149 + $0x240] sm:$0xff] %v294
                %v296 = vld [vmem:[%s148 + $0x488] sm:$0xff]
                %297 = vst [vmem:[%s149 + $0x248] sm:$0xff] %v296
                %v298 = vld [vmem:[%s148 + $0x490] sm:$0xff]
                %299 = vst [vmem:[%s149 + $0x250] sm:$0xff] %v298
                %v300 = vld [vmem:[%s148 + $0x498] sm:$0xff]
                %301 = vst [vmem:[%s149 + $0x258] sm:$0xff] %v300
                %v302 = vld [vmem:[%s148 + $0x4a0] sm:$0xff]
                %303 = vst [vmem:[%s149 + $0x260] sm:$0xff] %v302
                %v304 = vld [vmem:[%s148 + $0x4a8] sm:$0xff]
                %305 = vst [vmem:[%s149 + $0x268] sm:$0xff] %v304
                %v306 = vld [vmem:[%s148 + $0x4b0] sm:$0xff]
                %307 = vst [vmem:[%s149 + $0x270] sm:$0xff] %v306
                %v308 = vld [vmem:[%s148 + $0x4b8] sm:$0xff]
                %309 = vst [vmem:[%s149 + $0x278] sm:$0xff] %v308
                %v310 = vld [vmem:[%s148 + $0x500] sm:$0xff]
                %311 = vst [vmem:[%s149 + $0x280] sm:$0xff] %v310
                %v312 = vld [vmem:[%s148 + $0x508] sm:$0xff]
                %313 = vst [vmem:[%s149 + $0x288] sm:$0xff] %v312
                %v314 = vld [vmem:[%s148 + $0x510] sm:$0xff]
                %315 = vst [vmem:[%s149 + $0x290] sm:$0xff] %v314
                %v316 = vld [vmem:[%s148 + $0x518] sm:$0xff]
                %317 = vst [vmem:[%s149 + $0x298] sm:$0xff] %v316
                %v318 = vld [vmem:[%s148 + $0x520] sm:$0xff]
                %319 = vst [vmem:[%s149 + $0x2a0] sm:$0xff] %v318
                %v320 = vld [vmem:[%s148 + $0x528] sm:$0xff]
                %321 = vst [vmem:[%s149 + $0x2a8] sm:$0xff] %v320
                %v322 = vld [vmem:[%s148 + $0x530] sm:$0xff]
                %323 = vst [vmem:[%s149 + $0x2b0] sm:$0xff] %v322
                %v324 = vld [vmem:[%s148 + $0x538] sm:$0xff]
                %325 = vst [vmem:[%s149 + $0x2b8] sm:$0xff] %v324
                %v326 = vld [vmem:[%s148 + $0x580] sm:$0xff]
                %327 = vst [vmem:[%s149 + $0x2c0] sm:$0xff] %v326
                %v328 = vld [vmem:[%s148 + $0x588] sm:$0xff]
                %329 = vst [vmem:[%s149 + $0x2c8] sm:$0xff] %v328
                %v330 = vld [vmem:[%s148 + $0x590] sm:$0xff]
                %331 = vst [vmem:[%s149 + $0x2d0] sm:$0xff] %v330
                %v332 = vld [vmem:[%s148 + $0x598] sm:$0xff]
                %333 = vst [vmem:[%s149 + $0x2d8] sm:$0xff] %v332
                %v334 = vld [vmem:[%s148 + $0x5a0] sm:$0xff]
                %335 = vst [vmem:[%s149 + $0x2e0] sm:$0xff] %v334
                %v336 = vld [vmem:[%s148 + $0x5a8] sm:$0xff]
                %337 = vst [vmem:[%s149 + $0x2e8] sm:$0xff] %v336
                %v338 = vld [vmem:[%s148 + $0x5b0] sm:$0xff]
                %339 = vst [vmem:[%s149 + $0x2f0] sm:$0xff] %v338
                %v340 = vld [vmem:[%s148 + $0x5b8] sm:$0xff]
                %341 = vst [vmem:[%s149 + $0x2f8] sm:$0xff] %v340
                %v342 = vld [vmem:[%s148 + $0x600] sm:$0xff]
                %343 = vst [vmem:[%s149 + $0x300] sm:$0xff] %v342
                %v344 = vld [vmem:[%s148 + $0x608] sm:$0xff]
                %345 = vst [vmem:[%s149 + $0x308] sm:$0xff] %v344
                %v346 = vld [vmem:[%s148 + $0x610] sm:$0xff]
                %347 = vst [vmem:[%s149 + $0x310] sm:$0xff] %v346
                %v348 = vld [vmem:[%s148 + $0x618] sm:$0xff]
                %349 = vst [vmem:[%s149 + $0x318] sm:$0xff] %v348
                %v350 = vld [vmem:[%s148 + $0x620] sm:$0xff]
                %351 = vst [vmem:[%s149 + $0x320] sm:$0xff] %v350
                %v352 = vld [vmem:[%s148 + $0x628] sm:$0xff]
                %353 = vst [vmem:[%s149 + $0x328] sm:$0xff] %v352
                %v354 = vld [vmem:[%s148 + $0x630] sm:$0xff]
                %355 = vst [vmem:[%s149 + $0x330] sm:$0xff] %v354
                %v356 = vld [vmem:[%s148 + $0x638] sm:$0xff]
                %357 = vst [vmem:[%s149 + $0x338] sm:$0xff] %v356
                %v358 = vld [vmem:[%s148 + $0x680] sm:$0xff]
                %359 = vst [vmem:[%s149 + $0x340] sm:$0xff] %v358
                %v360 = vld [vmem:[%s148 + $0x688] sm:$0xff]
                %361 = vst [vmem:[%s149 + $0x348] sm:$0xff] %v360
                %v362 = vld [vmem:[%s148 + $0x690] sm:$0xff]
                %363 = vst [vmem:[%s149 + $0x350] sm:$0xff] %v362
                %v364 = vld [vmem:[%s148 + $0x698] sm:$0xff]
                %365 = vst [vmem:[%s149 + $0x358] sm:$0xff] %v364
                %v366 = vld [vmem:[%s148 + $0x6a0] sm:$0xff]
                %367 = vst [vmem:[%s149 + $0x360] sm:$0xff] %v366
                %v368 = vld [vmem:[%s148 + $0x6a8] sm:$0xff]
                %369 = vst [vmem:[%s149 + $0x368] sm:$0xff] %v368
                %v370 = vld [vmem:[%s148 + $0x6b0] sm:$0xff]
                %371 = vst [vmem:[%s149 + $0x370] sm:$0xff] %v370
                %v372 = vld [vmem:[%s148 + $0x6b8] sm:$0xff]
                %373 = vst [vmem:[%s149 + $0x378] sm:$0xff] %v372
                %v374 = vld [vmem:[%s148 + $0x700] sm:$0xff]
                %375 = vst [vmem:[%s149 + $0x380] sm:$0xff] %v374
                %v376 = vld [vmem:[%s148 + $0x708] sm:$0xff]
                %377 = vst [vmem:[%s149 + $0x388] sm:$0xff] %v376
                %v378 = vld [vmem:[%s148 + $0x710] sm:$0xff]
                %379 = vst [vmem:[%s149 + $0x390] sm:$0xff] %v378
                %v380 = vld [vmem:[%s148 + $0x718] sm:$0xff]
                %381 = vst [vmem:[%s149 + $0x398] sm:$0xff] %v380
                %v382 = vld [vmem:[%s148 + $0x720] sm:$0xff]
                %383 = vst [vmem:[%s149 + $0x3a0] sm:$0xff] %v382
                %v384 = vld [vmem:[%s148 + $0x728] sm:$0xff]
                %385 = vst [vmem:[%s149 + $0x3a8] sm:$0xff] %v384
                %v386 = vld [vmem:[%s148 + $0x730] sm:$0xff]
                %387 = vst [vmem:[%s149 + $0x3b0] sm:$0xff] %v386
                %v388 = vld [vmem:[%s148 + $0x738] sm:$0xff]
                %389 = vst [vmem:[%s149 + $0x3b8] sm:$0xff] %v388
                %v390 = vld [vmem:[%s148 + $0x780] sm:$0xff]
                %391 = vst [vmem:[%s149 + $0x3c0] sm:$0xff] %v390
                %v392 = vld [vmem:[%s148 + $0x788] sm:$0xff]
                %393 = vst [vmem:[%s149 + $0x3c8] sm:$0xff] %v392
                %v394 = vld [vmem:[%s148 + $0x790] sm:$0xff]
                %395 = vst [vmem:[%s149 + $0x3d0] sm:$0xff] %v394
                %v396 = vld [vmem:[%s148 + $0x798] sm:$0xff]
                %397 = vst [vmem:[%s149 + $0x3d8] sm:$0xff] %v396
                %v398 = vld [vmem:[%s148 + $0x7a0] sm:$0xff]
                %399 = vst [vmem:[%s149 + $0x3e0] sm:$0xff] %v398
                %v400 = vld [vmem:[%s148 + $0x7a8] sm:$0xff]
                %401 = vst [vmem:[%s149 + $0x3e8] sm:$0xff] %v400
                %v402 = vld [vmem:[%s148 + $0x7b0] sm:$0xff]
                %403 = vst [vmem:[%s149 + $0x3f0] sm:$0xff] %v402
                %v404 = vld [vmem:[%s148 + $0x7b8] sm:$0xff]
                %405 = vst [vmem:[%s149 + $0x3f8] sm:$0xff] %v404
                %v406 = vld [vmem:[%s148 + $0x800] sm:$0xff]
                %407 = vst [vmem:[%s149 + $0x400] sm:$0xff] %v406
                %v408 = vld [vmem:[%s148 + $0x808] sm:$0xff]
                %409 = vst [vmem:[%s149 + $0x408] sm:$0xff] %v408
                %v410 = vld [vmem:[%s148 + $0x810] sm:$0xff]
                %411 = vst [vmem:[%s149 + $0x410] sm:$0xff] %v410
                %v412 = vld [vmem:[%s148 + $0x818] sm:$0xff]
                %413 = vst [vmem:[%s149 + $0x418] sm:$0xff] %v412
                %v414 = vld [vmem:[%s148 + $0x820] sm:$0xff]
                %415 = vst [vmem:[%s149 + $0x420] sm:$0xff] %v414
                %v416 = vld [vmem:[%s148 + $0x828] sm:$0xff]
                %417 = vst [vmem:[%s149 + $0x428] sm:$0xff] %v416
                %v418 = vld [vmem:[%s148 + $0x830] sm:$0xff]
                %419 = vst [vmem:[%s149 + $0x430] sm:$0xff] %v418
                %v420 = vld [vmem:[%s148 + $0x838] sm:$0xff]
                %421 = vst [vmem:[%s149 + $0x438] sm:$0xff] %v420
                %v422 = vld [vmem:[%s148 + $0x880] sm:$0xff]
                %423 = vst [vmem:[%s149 + $0x440] sm:$0xff] %v422
                %v424 = vld [vmem:[%s148 + $0x888] sm:$0xff]
                %425 = vst [vmem:[%s149 + $0x448] sm:$0xff] %v424
                %v426 = vld [vmem:[%s148 + $0x890] sm:$0xff]
                %427 = vst [vmem:[%s149 + $0x450] sm:$0xff] %v426
                %v428 = vld [vmem:[%s148 + $0x898] sm:$0xff]
                %429 = vst [vmem:[%s149 + $0x458] sm:$0xff] %v428
                %v430 = vld [vmem:[%s148 + $0x8a0] sm:$0xff]
                %431 = vst [vmem:[%s149 + $0x460] sm:$0xff] %v430
                %v432 = vld [vmem:[%s148 + $0x8a8] sm:$0xff]
                %433 = vst [vmem:[%s149 + $0x468] sm:$0xff] %v432
                %v434 = vld [vmem:[%s148 + $0x8b0] sm:$0xff]
                %435 = vst [vmem:[%s149 + $0x470] sm:$0xff] %v434
                %v436 = vld [vmem:[%s148 + $0x8b8] sm:$0xff]
                %437 = vst [vmem:[%s149 + $0x478] sm:$0xff] %v436
              $region41: #{resnet_forward.8} parent=35 // loop_footer
                %s147 = sadd.s32 1, %s143
              $region42: #{resnet_forward.8} parent=35 // loop_footer_branch
                %142 = sbr.rel target = $region38
              $region43: #{resnet_forward.8} parent=35 // loop_exit
                _
            $region36: #{resnet_forward.8} parent=31 // pred_fallthru
              _
            // Predicated region
            $region44: #{resnet_forward.8} parent=31 // pred_check
              _
            $region45: #{resnet_forward.8} parent=31 // pred_check_branch
              %439 = sbr.rel target = $region47
            $region46: #{resnet_forward.8} parent=31 // pred_region
              _
            $region47: #{resnet_forward.8} parent=31 // pred_fallthru
              _
          $region32: #{resnet_forward.8} parent=27 // pred_fallthru
            _
          %440 = vnop
        $region28: #{resnet_forward.8} parent=23 // pred_fallthru
          _
      $region24: #{resnet_forward.8} parent=5 // pred_fallthru
        _
      %p441 = scmp.le.s32.totalorder 1, %s9
      %p442 = scmp.lt.s32.totalorder %s9, 3
      %p443 = pnand %p441, %p442
      %p444 = pneg %p443
      // Predicated region
      $region48: #{resnet_forward.8} parent=5 // pred_check
        _
      $region49: #{resnet_forward.8} parent=5 // pred_check_branch
        %446 = sbr.rel (%p443) target = $region51
      $region50: #{resnet_forward.8} parent=5 // pred_region
        %s447 = ssub.s32 %s9, 1
        %s448 = sand.u32 %s22, 1
        %s449 = sand.u32 %s22, 1
        %s450 = smul.addr %s449, 1152
        %s451 = scalar_lea.vmem [#allocation2], %s450
        // Predicated region
        $region52: #{resnet_forward.8} parent=50 // pred_check
          %p452 = pneg %p35
        $region53: #{resnet_forward.8} parent=50 // pred_check_branch
          %454 = sbr.rel (%p452) target = $region55
        $region54: #{resnet_forward.8} parent=50 // pred_region
          _
        $region55: #{resnet_forward.8} parent=50 // pred_fallthru
          _
        %s455 = sand.u32 %s22, 1
        %s456 = sand.u32 %s22, 1
        %s457 = smul.addr %s456, 1152
        %s458 = scalar_lea.vmem [#allocation2], %s457
        %p459 = pneg %p35
        %p460 = pneg %p32
        %p461 = pneg %p56
        %p462 = pneg %p53
        %p463 = pneg %p77
        %p464 = pneg %p74
        %p465 = pneg %p103
        %p466 = pneg %p100
        %s467 = sand.u32 %s90, 1
        %s468 = sand.u32 %s90, 1
        %s469 = smul.addr %s468, 128
        %s470 = scalar_lea.vmem [#allocation3], %s469
        %s471 = smul.u32 8, %s14
        %s472 = smul.u32 8, %s14
        %v473 = vld [vmem:[%s1] sm:$0xff]
        %v474 = vld [vmem:[%s1 + $0x8] sm:$0xff]
        %v475 = vld [vmem:[%s1 + $0x10] sm:$0xff]
        %v476 = vld [vmem:[%s1 + $0x18] sm:$0xff]
        %v477 = vld [vmem:[%s451] sm:$0xff]
        %v478 = vld [vmem:[%s451 + $0x8] sm:$0xff]
        %v479 = vld [vmem:[%s451 + $0x10] sm:$0xff]
        %v480 = vld [vmem:[%s451 + $0x18] sm:$0xff]
        %v481 = vld [vmem:[%s451 + $0x20] sm:$0xff]
        %v482 = vld [vmem:[%s451 + $0x28] sm:$0xff]
        %v483 = vld [vmem:[%s451 + $0x30] sm:$0xff]
        %v484 = vld [vmem:[%s451 + $0x38] sm:$0xff]
        %v485 = vld [vmem:[%s451 + $0x40] sm:$0xff]
        %v486 = vld [vmem:[%s451 + $0x48] sm:$0xff]
        %v487 = vld [vmem:[%s451 + $0x50] sm:$0xff]
        %v488 = vld [vmem:[%s451 + $0x58] sm:$0xff]
        %v489 = vld [vmem:[%s451 + $0x60] sm:$0xff]
        %v490 = vld [vmem:[%s451 + $0x68] sm:$0xff]
        %v491 = vld [vmem:[%s451 + $0x70] sm:$0xff]
        %v492 = vld [vmem:[%s451 + $0x78] sm:$0xff]
        %v493 = vld [vmem:[%s451 + $0x80] sm:$0xff]
        %v494 = vld [vmem:[%s451 + $0x88] sm:$0xff]
        %v495 = vld [vmem:[%s451 + $0x90] sm:$0xff]
        %v496 = vld [vmem:[%s451 + $0x98] sm:$0xff]
        %v497 = vld [vmem:[%s451 + $0xa0] sm:$0xff]
        %v498 = vld [vmem:[%s451 + $0xa8] sm:$0xff]
        %v499 = vld [vmem:[%s451 + $0xb0] sm:$0xff]
        %v500 = vld [vmem:[%s451 + $0xb8] sm:$0xff]
        %v501 = vld [vmem:[%s451 + $0xc0] sm:$0xff]
        %v502 = vld [vmem:[%s451 + $0xc8] sm:$0xff]
        %v503 = vld [vmem:[%s451 + $0xd0] sm:$0xff]
        %v504 = vld [vmem:[%s451 + $0xd8] sm:$0xff]
        %v505 = vld [vmem:[%s451 + $0xe0] sm:$0xff]
        %v506 = vld [vmem:[%s451 + $0xe8] sm:$0xff]
        %v507 = vld [vmem:[%s451 + $0xf0] sm:$0xff]
        %v508 = vld [vmem:[%s451 + $0xf8] sm:$0xff]
        %v509 = vld [vmem:[%s451 + $0x100] sm:$0xff]
        %v510 = vld [vmem:[%s451 + $0x108] sm:$0xff]
        %v511 = vld [vmem:[%s451 + $0x110] sm:$0xff]
        %v512 = vld [vmem:[%s451 + $0x118] sm:$0xff]
        %v513 = vld [vmem:[%s451 + $0x120] sm:$0xff]
        %v514 = vld [vmem:[%s451 + $0x128] sm:$0xff]
        %v515 = vld [vmem:[%s451 + $0x130] sm:$0xff]
        %v516 = vld [vmem:[%s451 + $0x138] sm:$0xff]
        %v517 = vld [vmem:[%s451 + $0x140] sm:$0xff]
        %v518 = vld [vmem:[%s451 + $0x148] sm:$0xff]
        %v519 = vld [vmem:[%s451 + $0x150] sm:$0xff]
        %v520 = vld [vmem:[%s451 + $0x158] sm:$0xff]
        %v521 = vld [vmem:[%s451 + $0x160] sm:$0xff]
        %v522 = vld [vmem:[%s451 + $0x168] sm:$0xff]
        %v523 = vld [vmem:[%s451 + $0x170] sm:$0xff]
        %v524 = vld [vmem:[%s451 + $0x178] sm:$0xff]
        %v525 = vld [vmem:[%s451 + $0x180] sm:$0xff]
        %v526 = vld [vmem:[%s451 + $0x188] sm:$0xff]
        %v527 = vld [vmem:[%s451 + $0x190] sm:$0xff]
        %v528 = vld [vmem:[%s451 + $0x198] sm:$0xff]
        %v529 = vld [vmem:[%s451 + $0x1a0] sm:$0xff]
        %v530 = vld [vmem:[%s451 + $0x1a8] sm:$0xff]
        %v531 = vld [vmem:[%s451 + $0x1b0] sm:$0xff]
        %v532 = vld [vmem:[%s451 + $0x1b8] sm:$0xff]
        %v533 = vld [vmem:[%s451 + $0x1c0] sm:$0xff]
        %v534 = vld [vmem:[%s451 + $0x1c8] sm:$0xff]
        %v535 = vld [vmem:[%s451 + $0x1d0] sm:$0xff]
        %v536 = vld [vmem:[%s451 + $0x1d8] sm:$0xff]
        %v537 = vld [vmem:[%s451 + $0x1e0] sm:$0xff]
        %v538 = vld [vmem:[%s451 + $0x1e8] sm:$0xff]
        %v539 = vld [vmem:[%s451 + $0x1f0] sm:$0xff]
        %v540 = vld [vmem:[%s451 + $0x1f8] sm:$0xff]
        %v541 = vld [vmem:[%s451 + $0x200] sm:$0xff]
        %v542 = vld [vmem:[%s451 + $0x208] sm:$0xff]
        %v543 = vld [vmem:[%s451 + $0x210] sm:$0xff]
        %v544 = vld [vmem:[%s451 + $0x218] sm:$0xff]
        %v545 = vld [vmem:[%s451 + $0x220] sm:$0xff]
        %v546 = vld [vmem:[%s451 + $0x228] sm:$0xff]
        %v547 = vld [vmem:[%s451 + $0x230] sm:$0xff]
        %v548 = vld [vmem:[%s451 + $0x238] sm:$0xff]
        %v549 = vld [vmem:[%s451 + $0x240] sm:$0xff]
        %v550 = vld [vmem:[%s451 + $0x248] sm:$0xff]
        %v551 = vld [vmem:[%s451 + $0x250] sm:$0xff]
        %v552 = vld [vmem:[%s451 + $0x258] sm:$0xff]
        %v553 = vld [vmem:[%s451 + $0x260] sm:$0xff]
        %v554 = vld [vmem:[%s451 + $0x268] sm:$0xff]
        %v555 = vld [vmem:[%s451 + $0x270] sm:$0xff]
        %v556 = vld [vmem:[%s451 + $0x278] sm:$0xff]
        %v557 = vld [vmem:[%s451 + $0x280] sm:$0xff]
        %v558 = vld [vmem:[%s451 + $0x288] sm:$0xff]
        %v559 = vld [vmem:[%s451 + $0x290] sm:$0xff]
        %v560 = vld [vmem:[%s451 + $0x298] sm:$0xff]
        %v561 = vld [vmem:[%s451 + $0x2a0] sm:$0xff]
        %v562 = vld [vmem:[%s451 + $0x2a8] sm:$0xff]
        %v563 = vld [vmem:[%s451 + $0x2b0] sm:$0xff]
        %v564 = vld [vmem:[%s451 + $0x2b8] sm:$0xff]
        %v565 = vld [vmem:[%s451 + $0x2c0] sm:$0xff]
        %v566 = vld [vmem:[%s451 + $0x2c8] sm:$0xff]
        %v567 = vld [vmem:[%s451 + $0x2d0] sm:$0xff]
        %v568 = vld [vmem:[%s451 + $0x2d8] sm:$0xff]
        %v569 = vld [vmem:[%s451 + $0x2e0] sm:$0xff]
        %v570 = vld [vmem:[%s451 + $0x2e8] sm:$0xff]
        %v571 = vld [vmem:[%s451 + $0x2f0] sm:$0xff]
        %v572 = vld [vmem:[%s451 + $0x2f8] sm:$0xff]
        %v573 = vld [vmem:[%s451 + $0x300] sm:$0xff]
        %v574 = vld [vmem:[%s451 + $0x308] sm:$0xff]
        %v575 = vld [vmem:[%s451 + $0x310] sm:$0xff]
        %v576 = vld [vmem:[%s451 + $0x318] sm:$0xff]
        %v577 = vld [vmem:[%s451 + $0x320] sm:$0xff]
        %v578 = vld [vmem:[%s451 + $0x328] sm:$0xff]
        %v579 = vld [vmem:[%s451 + $0x330] sm:$0xff]
        %v580 = vld [vmem:[%s451 + $0x338] sm:$0xff]
        %v581 = vld [vmem:[%s451 + $0x340] sm:$0xff]
        %v582 = vld [vmem:[%s451 + $0x348] sm:$0xff]
        %v583 = vld [vmem:[%s451 + $0x350] sm:$0xff]
        %v584 = vld [vmem:[%s451 + $0x358] sm:$0xff]
        %v585 = vld [vmem:[%s451 + $0x360] sm:$0xff]
        %v586 = vld [vmem:[%s451 + $0x368] sm:$0xff]
        %v587 = vld [vmem:[%s451 + $0x370] sm:$0xff]
        %v588 = vld [vmem:[%s451 + $0x378] sm:$0xff]
        %v589 = vld [vmem:[%s451 + $0x380] sm:$0xff]
        %v590 = vld [vmem:[%s451 + $0x388] sm:$0xff]
        %v591 = vld [vmem:[%s451 + $0x390] sm:$0xff]
        %v592 = vld [vmem:[%s451 + $0x398] sm:$0xff]
        %v593 = vld [vmem:[%s451 + $0x3a0] sm:$0xff]
        %v594 = vld [vmem:[%s451 + $0x3a8] sm:$0xff]
        %v595 = vld [vmem:[%s451 + $0x3b0] sm:$0xff]
        %v596 = vld [vmem:[%s451 + $0x3b8] sm:$0xff]
        %v597 = vld [vmem:[%s451 + $0x3c0] sm:$0xff]
        %v598 = vld [vmem:[%s451 + $0x3c8] sm:$0xff]
        %v599 = vld [vmem:[%s451 + $0x3d0] sm:$0xff]
        %v600 = vld [vmem:[%s451 + $0x3d8] sm:$0xff]
        %v601 = vld [vmem:[%s451 + $0x3e0] sm:$0xff]
        %v602 = vld [vmem:[%s451 + $0x3e8] sm:$0xff]
        %v603 = vld [vmem:[%s451 + $0x3f0] sm:$0xff]
        %v604 = vld [vmem:[%s451 + $0x3f8] sm:$0xff]
        %v605 = vld [vmem:[%s451 + $0x400] sm:$0xff]
        %v606 = vld [vmem:[%s451 + $0x408] sm:$0xff]
        %v607 = vld [vmem:[%s451 + $0x410] sm:$0xff]
        %v608 = vld [vmem:[%s451 + $0x418] sm:$0xff]
        %v609 = vld [vmem:[%s451 + $0x420] sm:$0xff]
        %v610 = vld [vmem:[%s451 + $0x428] sm:$0xff]
        %v611 = vld [vmem:[%s451 + $0x430] sm:$0xff]
        %v612 = vld [vmem:[%s451 + $0x438] sm:$0xff]
        %v613 = vld [vmem:[%s451 + $0x440] sm:$0xff]
        %v614 = vld [vmem:[%s451 + $0x448] sm:$0xff]
        %v615 = vld [vmem:[%s451 + $0x450] sm:$0xff]
        %v616 = vld [vmem:[%s451 + $0x458] sm:$0xff]
        %v617 = vld [vmem:[%s451 + $0x460] sm:$0xff]
        %v618 = vld [vmem:[%s451 + $0x468] sm:$0xff]
        %v619 = vld [vmem:[%s451 + $0x470] sm:$0xff]
        %v620 = vld [vmem:[%s451 + $0x478] sm:$0xff]
        %v621 = vld [vmem:[%s2] sm:$0xff]
        %v622 = vld [vmem:[%s2 + $0x8] sm:$0xff]
        %624 = vset.pattern.permute.xlu0 0
        %625 = vperm.xlu0 %624, %v621
        %v626 = vpop.permute.xlu0 %625
        %629 = vset.pattern.permute.xlu0 0
        %630 = vperm.xlu0 %629, %v622
        %v631 = vpop.permute.xlu0 %630
        %vm633 = vcmask 130048
        %v635 = vsel %vm633, %v474, 0
        %v638 = vsel %vm633, %v476, 0
        %640 = vmatprep.subr.mxu0 %v478
        %641 = vmatpush1.msra.mxu0 %v477
        %642 = vmatprep.subr.mxu0 %v486
        %643 = vmatpush1.msra.mxu0 %v485
        %644 = vmatprep.subr.mxu0 %v494
        %645 = vmatpush1.msra.mxu0 %v493
        %646 = vmatprep.subr.mxu0 %v502
        %647 = vmatpush1.msra.mxu0 %v501
        %648 = vmatprep.subr.mxu0 %v510
        %649 = vmatpush1.msra.mxu0 %v509
        %650 = vmatprep.subr.mxu0 %v518
        %651 = vmatpush1.msra.mxu0 %v517
        %652 = vmatprep.subr.mxu0 %v526
        %653 = vmatpush1.msra.mxu0 %v525
        %654 = vmatprep.subr.mxu0 %v534
        %655 = vmatpush1.msra.mxu0 %v533
        %656 = vmatprep.subr.mxu0 %v542
        %657 = vmatpush1.msra.mxu0 %v541
        %658 = vmatprep.subr.mxu0 %v550
        %659 = vmatpush1.msra.mxu0 %v549
        %660 = vmatprep.subr.mxu0 %v558
        %661 = vmatpush1.msra.mxu0 %v557
        %662 = vmatprep.subr.mxu0 %v566
        %663 = vmatpush1.msra.mxu0 %v565
        %664 = vmatprep.subr.mxu0 %v574
        %665 = vmatpush1.msra.mxu0 %v573
        %666 = vmatprep.subr.mxu0 %v582
        %667 = vmatpush1.msra.mxu0 %v581
        %668 = vmatprep.subr.mxu0 %v590
        %669 = vmatpush1.msra.mxu0 %v589
        %670 = vmatprep.subr.mxu0 %v598
        %671 = vmatpush1.msra.mxu0 %v597
        %672 = vmatprep.subr.mxu0 %v606
        %673 = vmatpush1.msra.mxu0 %v605
        %674 = vmatprep.subr.mxu0 %v614
        %675 = vmatpush1.msra.mxu0 %v613
        %676 = vmatprep.subr.mxu0 0.0
        %677 = vmatpush1.msra.mxu0 0.0
        %678 = vmatprep.subr.mxu0 0.0
        %679 = vmatpush1.msra.mxu0 0.0
        %680 = vmatprep.subr.mxu0 0.0
        %681 = vmatpush1.msra.mxu0 0.0
        %682 = vmatprep.subr.mxu0 0.0
        %683 = vmatpush1.msra.mxu0 0.0
        %684 = vmatprep.subr.mxu0 0.0
        %685 = vmatpush1.msra.mxu0 0.0
        %686 = vmatprep.subr.mxu0 0.0
        %687 = vmatpush1.msra.mxu0 0.0
        %688 = vmatprep.subr.mxu0 0.0
        %689 = vmatpush1.msra.mxu0 0.0
        %690 = vmatprep.subr.mxu0 0.0
        %691 = vmatpush1.msra.mxu0 0.0
        %692 = vmatprep.subr.mxu0 0.0
        %693 = vmatpush1.msra.mxu0 0.0
        %694 = vmatprep.subr.mxu0 0.0
        %695 = vmatpush1.msra.mxu0 0.0
        %696 = vmatprep.subr.mxu0 0.0
        %697 = vmatpush1.msra.mxu0 0.0
        %698 = vmatprep.subr.mxu0 0.0
        %699 = vmatpush1.msra.mxu0 0.0
        %700 = vmatprep.subr.mxu0 0.0
        %701 = vmatpush1.msra.mxu0 0.0
        %702 = vmatprep.subr.mxu0 0.0
        %703 = vmatpush1.msra.mxu0 0.0
        %704 = vmatprep.mubr.f32.mxu0 %v635
        %705 = vmatmul.mubr.f32.gmra.mrb[0].mxu0 %v473
        %v706 = vpop.f32.mrb[0].mxu0
        %v707 = vadd.f32 %v626, %v706
        %v708 = vpop.f32.mrb[0].mxu0
        %v709 = vadd.f32 %v626, %v708
        %710 = vmatprep.mubr.f32.mxu0 %v638
        %711 = vmatmul.mubr.f32.gmra.mrb[0].mxu0 %v475
        %v712 = vpop.f32.mrb[0].mxu0
        %v713 = vadd.f32 %v631, %v712
        %v714 = vpop.f32.mrb[0].mxu0
        %v715 = vadd.f32 %v631, %v714
        %716 = vdwg.mxu0
        %717 = vmatprep.subr.mxu0 %v480
        %718 = vmatpush1.msra.mxu0 %v479
        %719 = vmatprep.subr.mxu0 %v488
        %720 = vmatpush1.msra.mxu0 %v487
        %721 = vmatprep.subr.mxu0 %v496
        %722 = vmatpush1.msra.mxu0 %v495
        %723 = vmatprep.subr.mxu0 %v504
        %724 = vmatpush1.msra.mxu0 %v503
        %725 = vmatprep.subr.mxu0 %v512
        %726 = vmatpush1.msra.mxu0 %v511
        %727 = vmatprep.subr.mxu0 %v520
        %728 = vmatpush1.msra.mxu0 %v519
        %729 = vmatprep.subr.mxu0 %v528
        %730 = vmatpush1.msra.mxu0 %v527
        %731 = vmatprep.subr.mxu0 %v536
        %732 = vmatpush1.msra.mxu0 %v535
        %733 = vmatprep.subr.mxu0 %v544
        %734 = vmatpush1.msra.mxu0 %v543
        %735 = vmatprep.subr.mxu0 %v552
        %736 = vmatpush1.msra.mxu0 %v551
        %737 = vmatprep.subr.mxu0 %v560
        %738 = vmatpush1.msra.mxu0 %v559
        %739 = vmatprep.subr.mxu0 %v568
        %740 = vmatpush1.msra.mxu0 %v567
        %741 = vmatprep.subr.mxu0 %v576
        %742 = vmatpush1.msra.mxu0 %v575
        %743 = vmatprep.subr.mxu0 %v584
        %744 = vmatpush1.msra.mxu0 %v583
        %745 = vmatprep.subr.mxu0 %v592
        %746 = vmatpush1.msra.mxu0 %v591
        %747 = vmatprep.subr.mxu0 %v600
        %748 = vmatpush1.msra.mxu0 %v599
        %749 = vmatprep.subr.mxu0 %v608
        %750 = vmatpush1.msra.mxu0 %v607
        %751 = vmatprep.subr.mxu0 %v616
        %752 = vmatpush1.msra.mxu0 %v615
        %753 = vmatprep.subr.mxu0 0.0
        %754 = vmatpush1.msra.mxu0 0.0
        %755 = vmatprep.subr.mxu0 0.0
        %756 = vmatpush1.msra.mxu0 0.0
        %757 = vmatprep.subr.mxu0 0.0
        %758 = vmatpush1.msra.mxu0 0.0
        %759 = vmatprep.subr.mxu0 0.0
        %760 = vmatpush1.msra.mxu0 0.0
        %761 = vmatprep.subr.mxu0 0.0
        %762 = vmatpush1.msra.mxu0 0.0
        %763 = vmatprep.subr.mxu0 0.0
        %764 = vmatpush1.msra.mxu0 0.0
        %765 = vmatprep.subr.mxu0 0.0
        %766 = vmatpush1.msra.mxu0 0.0
        %767 = vmatprep.subr.mxu0 0.0
        %768 = vmatpush1.msra.mxu0 0.0
        %769 = vmatprep.subr.mxu0 0.0
        %770 = vmatpush1.msra.mxu0 0.0
        %771 = vmatprep.subr.mxu0 0.0
        %772 = vmatpush1.msra.mxu0 0.0
        %773 = vmatprep.subr.mxu0 0.0
        %774 = vmatpush1.msra.mxu0 0.0
        %775 = vmatprep.subr.mxu0 0.0
        %776 = vmatpush1.msra.mxu0 0.0
        %777 = vmatprep.subr.mxu0 0.0
        %778 = vmatpush1.msra.mxu0 0.0
        %779 = vmatprep.subr.mxu0 0.0
        %780 = vmatpush1.msra.mxu0 0.0
        %781 = vmatprep.mubr.f32.mxu0 %v635
        %782 = vmatmul.mubr.f32.gmra.mrb[0].mxu0 %v473
        %v783 = vpop.f32.mrb[0].mxu0
        %v784 = vadd.f32 %v626, %v783
        %v785 = vpop.f32.mrb[0].mxu0
        %v786 = vadd.f32 %v626, %v785
        %787 = vmatprep.mubr.f32.mxu0 %v638
        %788 = vmatmul.mubr.f32.gmra.mrb[0].mxu0 %v475
        %v789 = vpop.f32.mrb[0].mxu0
        %v790 = vadd.f32 %v631, %v789
        %v791 = vpop.f32.mrb[0].mxu0
        %v792 = vadd.f32 %v631, %v791
        %793 = vdwg.mxu0
        %794 = vmatprep.subr.mxu0 %v482
        %795 = vmatpush1.msra.mxu0 %v481
        %796 = vmatprep.subr.mxu0 %v490
        %797 = vmatpush1.msra.mxu0 %v489
        %798 = vmatprep.subr.mxu0 %v498
        %799 = vmatpush1.msra.mxu0 %v497
        %800 = vmatprep.subr.mxu0 %v506
        %801 = vmatpush1.msra.mxu0 %v505
        %802 = vmatprep.subr.mxu0 %v514
        %803 = vmatpush1.msra.mxu0 %v513
        %804 = vmatprep.subr.mxu0 %v522
        %805 = vmatpush1.msra.mxu0 %v521
        %806 = vmatprep.subr.mxu0 %v530
        %807 = vmatpush1.msra.mxu0 %v529
        %808 = vmatprep.subr.mxu0 %v538
        %809 = vmatpush1.msra.mxu0 %v537
        %810 = vmatprep.subr.mxu0 %v546
        %811 = vmatpush1.msra.mxu0 %v545
        %812 = vmatprep.subr.mxu0 %v554
        %813 = vmatpush1.msra.mxu0 %v553
        %814 = vmatprep.subr.mxu0 %v562
        %815 = vmatpush1.msra.mxu0 %v561
        %816 = vmatprep.subr.mxu0 %v570
        %817 = vmatpush1.msra.mxu0 %v569
        %818 = vmatprep.subr.mxu0 %v578
        %819 = vmatpush1.msra.mxu0 %v577
        %820 = vmatprep.subr.mxu0 %v586
        %821 = vmatpush1.msra.mxu0 %v585
        %822 = vmatprep.subr.mxu0 %v594
        %823 = vmatpush1.msra.mxu0 %v593
        %824 = vmatprep.subr.mxu0 %v602
        %825 = vmatpush1.msra.mxu0 %v601
        %826 = vmatprep.subr.mxu0 %v610
        %827 = vmatpush1.msra.mxu0 %v609
        %828 = vmatprep.subr.mxu0 %v618
        %829 = vmatpush1.msra.mxu0 %v617
        %830 = vmatprep.subr.mxu0 0.0
        %831 = vmatpush1.msra.mxu0 0.0
        %832 = vmatprep.subr.mxu0 0.0
        %833 = vmatpush1.msra.mxu0 0.0
        %834 = vmatprep.subr.mxu0 0.0
        %835 = vmatpush1.msra.mxu0 0.0
        %836 = vmatprep.subr.mxu0 0.0
        %837 = vmatpush1.msra.mxu0 0.0
        %838 = vmatprep.subr.mxu0 0.0
        %839 = vmatpush1.msra.mxu0 0.0
        %840 = vmatprep.subr.mxu0 0.0
        %841 = vmatpush1.msra.mxu0 0.0
        %842 = vmatprep.subr.mxu0 0.0
        %843 = vmatpush1.msra.mxu0 0.0
        %844 = vmatprep.subr.mxu0 0.0
        %845 = vmatpush1.msra.mxu0 0.0
        %846 = vmatprep.subr.mxu0 0.0
        %847 = vmatpush1.msra.mxu0 0.0
        %848 = vmatprep.subr.mxu0 0.0
        %849 = vmatpush1.msra.mxu0 0.0
        %850 = vmatprep.subr.mxu0 0.0
        %851 = vmatpush1.msra.mxu0 0.0
        %852 = vmatprep.subr.mxu0 0.0
        %853 = vmatpush1.msra.mxu0 0.0
        %854 = vmatprep.subr.mxu0 0.0
        %855 = vmatpush1.msra.mxu0 0.0
        %856 = vmatprep.subr.mxu0 0.0
        %857 = vmatpush1.msra.mxu0 0.0
        %858 = vmatprep.mubr.f32.mxu0 %v635
        %859 = vmatmul.mubr.f32.gmra.mrb[0].mxu0 %v473
        %v860 = vpop.f32.mrb[0].mxu0
        %v861 = vadd.f32 %v626, %v860
        %v862 = vpop.f32.mrb[0].mxu0
        %v863 = vadd.f32 %v626, %v862
        %864 = vmatprep.mubr.f32.mxu0 %v638
        %865 = vmatmul.mubr.f32.gmra.mrb[0].mxu0 %v475
        %v866 = vpop.f32.mrb[0].mxu0
        %v867 = vadd.f32 %v631, %v866
        %v868 = vpop.f32.mrb[0].mxu0
        %v869 = vadd.f32 %v631, %v868
        %870 = vdwg.mxu0
        %871 = vmatprep.subr.mxu0 %v484
        %872 = vmatpush1.msra.mxu0 %v483
        %873 = vmatprep.subr.mxu0 %v492
        %874 = vmatpush1.msra.mxu0 %v491
        %875 = vmatprep.subr.mxu0 %v500
        %876 = vmatpush1.msra.mxu0 %v499
        %877 = vmatprep.subr.mxu0 %v508
        %878 = vmatpush1.msra.mxu0 %v507
        %879 = vmatprep.subr.mxu0 %v516
        %880 = vmatpush1.msra.mxu0 %v515
        %881 = vmatprep.subr.mxu0 %v524
        %882 = vmatpush1.msra.mxu0 %v523
        %883 = vmatprep.subr.mxu0 %v532
        %884 = vmatpush1.msra.mxu0 %v531
        %885 = vmatprep.subr.mxu0 %v540
        %886 = vmatpush1.msra.mxu0 %v539
        %887 = vmatprep.subr.mxu0 %v548
        %888 = vmatpush1.msra.mxu0 %v547
        %889 = vmatprep.subr.mxu0 %v556
        %890 = vmatpush1.msra.mxu0 %v555
        %891 = vmatprep.subr.mxu0 %v564
        %892 = vmatpush1.msra.mxu0 %v563
        %893 = vmatprep.subr.mxu0 %v572
        %894 = vmatpush1.msra.mxu0 %v571
        %895 = vmatprep.subr.mxu0 %v580
        %896 = vmatpush1.msra.mxu0 %v579
        %897 = vmatprep.subr.mxu0 %v588
        %898 = vmatpush1.msra.mxu0 %v587
        %899 = vmatprep.subr.mxu0 %v596
        %900 = vmatpush1.msra.mxu0 %v595
        %901 = vmatprep.subr.mxu0 %v604
        %902 = vmatpush1.msra.mxu0 %v603
        %903 = vmatprep.subr.mxu0 %v612
        %904 = vmatpush1.msra.mxu0 %v611
        %905 = vmatprep.subr.mxu0 %v620
        %906 = vmatpush1.msra.mxu0 %v619
        %907 = vmatprep.subr.mxu0 0.0
        %908 = vmatpush1.msra.mxu0 0.0
        %909 = vmatprep.subr.mxu0 0.0
        %910 = vmatpush1.msra.mxu0 0.0
        %911 = vmatprep.subr.mxu0 0.0
        %912 = vmatpush1.msra.mxu0 0.0
        %913 = vmatprep.subr.mxu0 0.0
        %914 = vmatpush1.msra.mxu0 0.0
        %915 = vmatprep.subr.mxu0 0.0
        %916 = vmatpush1.msra.mxu0 0.0
        %917 = vmatprep.subr.mxu0 0.0
        %918 = vmatpush1.msra.mxu0 0.0
        %919 = vmatprep.subr.mxu0 0.0
        %920 = vmatpush1.msra.mxu0 0.0
        %921 = vmatprep.subr.mxu0 0.0
        %922 = vmatpush1.msra.mxu0 0.0
        %923 = vmatprep.subr.mxu0 0.0
        %924 = vmatpush1.msra.mxu0 0.0
        %925 = vmatprep.subr.mxu0 0.0
        %926 = vmatpush1.msra.mxu0 0.0
        %927 = vmatprep.subr.mxu0 0.0
        %928 = vmatpush1.msra.mxu0 0.0
        %929 = vmatprep.subr.mxu0 0.0
        %930 = vmatpush1.msra.mxu0 0.0
        %931 = vmatprep.subr.mxu0 0.0
        %932 = vmatpush1.msra.mxu0 0.0
        %933 = vmatprep.subr.mxu0 0.0
        %934 = vmatpush1.msra.mxu0 0.0
        %935 = vmatprep.mubr.f32.mxu0 %v635
        %936 = vmatmul.mubr.f32.gmra.mrb[0].mxu0 %v473
        %v937 = vpop.f32.mrb[0].mxu0
        %v938 = vadd.f32 %v626, %v937
        %v939 = vpop.f32.mrb[0].mxu0
        %v940 = vadd.f32 %v626, %v939
        %941 = vmatprep.mubr.f32.mxu0 %v638
        %942 = vmatmul.mubr.f32.gmra.mrb[0].mxu0 %v475
        %v943 = vpop.f32.mrb[0].mxu0
        %v944 = vadd.f32 %v631, %v943
        %v945 = vpop.f32.mrb[0].mxu0
        %v946 = vadd.f32 %v631, %v945
        %947 = vdwg.mxu0
        %v948 = vmax.f32 %v707, 0.0
        %v949 = vmax.f32 %v709, 0.0
        %v950 = vmax.f32 %v784, 0.0
        %v951 = vmax.f32 %v786, 0.0
        %v952 = vmax.f32 %v861, 0.0
        %v953 = vmax.f32 %v863, 0.0
        %v954 = vmax.f32 %v938, 0.0
        %v955 = vmax.f32 %v940, 0.0
        %v956 = vmax.f32 %v713, 0.0
        %v957 = vmax.f32 %v715, 0.0
        %v958 = vmax.f32 %v790, 0.0
        %v959 = vmax.f32 %v792, 0.0
        %v960 = vmax.f32 %v867, 0.0
        %v961 = vmax.f32 %v869, 0.0
        %v962 = vmax.f32 %v944, 0.0
        %v963 = vmax.f32 %v946, 0.0
        %964 = vst [vmem:[%s470] sm:$0xff] %v948
        %965 = vst [vmem:[%s470 + $0x8] sm:$0xff] %v949
        %966 = vst [vmem:[%s470 + $0x10] sm:$0xff] %v950
        %967 = vst [vmem:[%s470 + $0x18] sm:$0xff] %v951
        %968 = vst [vmem:[%s470 + $0x20] sm:$0xff] %v952
        %969 = vst [vmem:[%s470 + $0x28] sm:$0xff] %v953
        %970 = vst [vmem:[%s470 + $0x30] sm:$0xff] %v954
        %971 = vst [vmem:[%s470 + $0x38] sm:$0xff] %v955
        %972 = vst [vmem:[%s470 + $0x40] sm:$0xff] %v956
        %973 = vst [vmem:[%s470 + $0x48] sm:$0xff] %v957
        %974 = vst [vmem:[%s470 + $0x50] sm:$0xff] %v958
        %975 = vst [vmem:[%s470 + $0x58] sm:$0xff] %v959
        %976 = vst [vmem:[%s470 + $0x60] sm:$0xff] %v960
        %977 = vst [vmem:[%s470 + $0x68] sm:$0xff] %v961
        %978 = vst [vmem:[%s470 + $0x70] sm:$0xff] %v962
        %979 = vst [vmem:[%s470 + $0x78] sm:$0xff] %v963
        %s980 = sand.u32 %s90, 1
        %s981 = sand.u32 %s90, 1
        %s982 = smul.addr %s981, 128
        %s983 = scalar_lea.vmem [#allocation3], %s982
        // Predicated region
        $region56: #{resnet_forward.8} parent=50 // pred_check
          %p984 = pneg %p100
        $region57: #{resnet_forward.8} parent=50 // pred_check_branch
          %986 = sbr.rel (%p984) target = $region59
        $region58: #{resnet_forward.8} parent=50 // pred_region
          %s987 = smul.u32 8, %s14
          %s988 = smul.addr %s987, 8
          %s989 = scalar_lea.vmem %s3, %s988
          // Predicated region
          $region60: #{resnet_forward.8} parent=58 // pred_check
            _
          $region61: #{resnet_forward.8} parent=58 // pred_check_branch
            %991 = sbr.rel (0) target = $region63
          $region62: #{resnet_forward.8} parent=58 // pred_region
            // Predicated region
            $region64: #{resnet_forward.8} parent=62 // pred_check
              _
            $region65: #{resnet_forward.8} parent=62 // pred_check_branch
              %993 = sbr.rel (0) target = $region67
            $region66: #{resnet_forward.8} parent=62 // pred_region
              loop: start=0, step=1, limit=1
              $region68: #{resnet_forward.8} parent=66 // loop_pre_header
                _
              $region69: #{resnet_forward.8} parent=66 // loop_header
                %s995 = sphi 0, %s999
                %p996 = scmp.ge.s32.totalorder %s995, 1
                %s1000 = sphi %s983, %s983
                %s1001 = sphi %s989, %s989
              $region70: #{resnet_forward.8} parent=66 // loop_header_branch
                %998 = sbr.rel (%p996) target = $region74
              $region71: #{resnet_forward.8} parent=66 // loop_body
                %v1002 = vld [vmem:[%s1000] sm:$0xff]
                %1003 = vst [vmem:[%s1001] sm:$0xff] %v1002
                %v1004 = vld [vmem:[%s1000 + $0x8] sm:$0xff]
                %1005 = vst [vmem:[%s1001 + $0x8] sm:$0xff] %v1004
                %v1006 = vld [vmem:[%s1000 + $0x10] sm:$0xff]
                %1007 = vst [vmem:[%s1001 + $0x10] sm:$0xff] %v1006
                %v1008 = vld [vmem:[%s1000 + $0x18] sm:$0xff]
                %1009 = vst [vmem:[%s1001 + $0x18] sm:$0xff] %v1008
                %v1010 = vld [vmem:[%s1000 + $0x20] sm:$0xff]
                %1011 = vst [vmem:[%s1001 + $0x20] sm:$0xff] %v1010
                %v1012 = vld [vmem:[%s1000 + $0x28] sm:$0xff]
                %1013 = vst [vmem:[%s1001 + $0x28] sm:$0xff] %v1012
                %v1014 = vld [vmem:[%s1000 + $0x30] sm:$0xff]
                %1015 = vst [vmem:[%s1001 + $0x30] sm:$0xff] %v1014
                %v1016 = vld [vmem:[%s1000 + $0x38] sm:$0xff]
                %1017 = vst [vmem:[%s1001 + $0x38] sm:$0xff] %v1016
                %v1018 = vld [vmem:[%s1000 + $0x40] sm:$0xff]
                %1019 = vst [vmem:[%s1001 + $0x80] sm:$0xff] %v1018
                %v1020 = vld [vmem:[%s1000 + $0x48] sm:$0xff]
                %1021 = vst [vmem:[%s1001 + $0x88] sm:$0xff] %v1020
                %v1022 = vld [vmem:[%s1000 + $0x50] sm:$0xff]
                %1023 = vst [vmem:[%s1001 + $0x90] sm:$0xff] %v1022
                %v1024 = vld [vmem:[%s1000 + $0x58] sm:$0xff]
                %1025 = vst [vmem:[%s1001 + $0x98] sm:$0xff] %v1024
                %v1026 = vld [vmem:[%s1000 + $0x60] sm:$0xff]
                %1027 = vst [vmem:[%s1001 + $0xa0] sm:$0xff] %v1026
                %v1028 = vld [vmem:[%s1000 + $0x68] sm:$0xff]
                %1029 = vst [vmem:[%s1001 + $0xa8] sm:$0xff] %v1028
                %v1030 = vld [vmem:[%s1000 + $0x70] sm:$0xff]
                %1031 = vst [vmem:[%s1001 + $0xb0] sm:$0xff] %v1030
                %v1032 = vld [vmem:[%s1000 + $0x78] sm:$0xff]
                %1033 = vst [vmem:[%s1001 + $0xb8] sm:$0xff] %v1032
              $region72: #{resnet_forward.8} parent=66 // loop_footer
                %s999 = sadd.s32 1, %s995
              $region73: #{resnet_forward.8} parent=66 // loop_footer_branch
                %994 = sbr.rel target = $region69
              $region74: #{resnet_forward.8} parent=66 // loop_exit
                _
            $region67: #{resnet_forward.8} parent=62 // pred_fallthru
              _
            // Predicated region
            $region75: #{resnet_forward.8} parent=62 // pred_check
              _
            $region76: #{resnet_forward.8} parent=62 // pred_check_branch
              %1035 = sbr.rel target = $region78
            $region77: #{resnet_forward.8} parent=62 // pred_region
              _
            $region78: #{resnet_forward.8} parent=62 // pred_fallthru
              _
          $region63: #{resnet_forward.8} parent=58 // pred_fallthru
            _
          %1036 = vnop
        $region59: #{resnet_forward.8} parent=50 // pred_fallthru
          _
      $region51: #{resnet_forward.8} parent=5 // pred_fallthru
        _
      %p1037 = scmp.le.s32.totalorder 2, %s9
      // Predicated region
      $region79: #{resnet_forward.8} parent=5 // pred_check
        %p1038 = pneg %p1037
      $region80: #{resnet_forward.8} parent=5 // pred_check_branch
        %1040 = sbr.rel (%p1038) target = $region82
      $region81: #{resnet_forward.8} parent=5 // pred_region
        %s1041 = ssub.s32 %s9, 2
        // Predicated region
        $region83: #{resnet_forward.8} parent=81 // pred_check
          %p1042 = pneg %p106
        $region84: #{resnet_forward.8} parent=81 // pred_check_branch
          %1044 = sbr.rel (%p1042) target = $region86
        $region85: #{resnet_forward.8} parent=81 // pred_region
          %s1045 = sand.u32 %s91, 1
          %s1046 = sand.u32 %s91, 1
          %s1047 = smul.addr %s1046, 128
          %s1048 = scalar_lea.vmem [#allocation3], %s1047
        $region86: #{resnet_forward.8} parent=81 // pred_fallthru
          _
      $region82: #{resnet_forward.8} parent=5 // pred_fallthru
        _
    $region6: #{resnet_forward.8} parent=1 // loop_footer
      %s13 = sadd.s32 1, %s9
    $region7: #{resnet_forward.8} parent=1 // loop_footer_branch
      %8 = sbr.rel target = $region3
    $region8: #{resnet_forward.8} parent=1 // loop_exit
      _

// kernel: resnet_forward.9
$region0: #{resnet_forward.9}
  #allocation0 [shape = 'u32[]', space=smem, size = 0x4, offset = 0x4, fixed_abs, tag = 'smem constant byte address 0x4 - core index']
  #allocation1 [shape = 'u32[144,128]{1,0:T(1,128)}', space=vmem, size = 0x12000, scoped, tag = 'internal scratch']
  %s0 = inlined_call_operand.vmem [shape: f32[144,2048], index: 0, kind: input, shape index: {}]
  %s1 = inlined_call_operand.vmem [shape: f32[16,144], index: 1, kind: input, shape index: {}]
  %s2 = inlined_call_operand.vmem [shape: f32[16,1], index: 2, kind: input, shape index: {}]
  %s3 = inlined_call_operand.vmem [shape: f32[16,2048], index: 3, kind: input, shape index: {}]
  %s4 = inlined_call_operand.vmem [shape: f32[16,1], index: 4, kind: input, shape index: {}]
  %s5 = inlined_call_operand.vmem [shape: f32[16,2048], index: 5, kind: output, shape index: {}]
  %s6 = sld [smem:[#allocation0]]
  $region118: #{resnet_forward.9} parent=0
    _
  %s8 = ssub.s32 1, %s6
  %s9 = scalar_select 0, %s8, %s6
  $region1: #{resnet_forward.9} parent=0
    #allocation2 [shape = 'u8[1179648]{0}', space=vmem, size = 0x120000, scoped, tag = 'input window, operand 0']
    #allocation3 [shape = 'u8[131072]{0}', space=vmem, size = 0x20000, scoped, tag = 'input window, operand 3']
    #allocation4 [shape = 'u8[131072]{0}', space=vmem, size = 0x20000, scoped, tag = 'output window, operand 0']
    loop: start=0, step=1, limit=4
    $region2: #{resnet_forward.9} parent=1 // loop_pre_header
      _
    $region3: #{resnet_forward.9} parent=1 // loop_header
      %s11 = sphi 0, %s15
      %p12 = scmp.ge.s32.totalorder %s11, 4
      %s21 = sphi 0, %s23
      %s24 = sphi 0, %s21
      %s25 = sphi 0, %s24
      %s41 = sphi 0, %s25
      %s45 = sphi 0, %s45
      %s47 = sphi 0, %s45
      %s48 = sphi 0, %s47
      %s62 = sphi 0, %s48
      %s66 = sphi 0, %s66
      %s68 = sphi 0, %s66
      %s69 = sphi 0, %s68
      %s83 = sphi 0, %s69
      %s89 = sphi 0, %s91
      %s92 = sphi 0, %s89
      %s93 = sphi 0, %s92
      %s109 = sphi 0, %s93
      %s113 = sphi 0, %s113
      %s115 = sphi 0, %s113
      %s116 = sphi 0, %s115
      %s130 = sphi 0, %s116
      %s136 = sphi 0, %s138
      %s139 = sphi 0, %s136
      %s140 = sphi 0, %s139
      %s156 = sphi 0, %s140
    $region4: #{resnet_forward.9} parent=1 // loop_header_branch
      %14 = sbr.rel (%p12) target = $region8
    $region5: #{resnet_forward.9} parent=1 // loop_body
      %s16 = ssub.s32 %s11, 1
      %s17 = ssub.s32 %s11, 2
      %s18 = sadd.s32 %s11, 1
      %s19 = ssub.s32 %s11, %s18
      %p20 = scmp.eq.s32.totalorder %s19, 0
      %s22 = sadd.s32 %s21, 1
      %s23 = scalar_select %p20, %s21, %s22
      %p26 = pneg %p20
      %p27 = scmp.eq.s32.totalorder %s11, 1
      %p28 = por %p26, %p27
      %p29 = scmp.ne.s32.totalorder %s21, %s24
      %p30 = scmp.eq.s32.totalorder %s11, 0
      %p31 = por %p29, %p30
      %p32 = scmp.ne.s32.totalorder %s21, %s24
      %p33 = scmp.eq.s32.totalorder %s16, 1
      %p34 = por %p32, %p33
      %p35 = scmp.ne.s32.totalorder %s24, %s25
      %p36 = scmp.eq.s32.totalorder %s16, 0
      %p37 = por %p35, %p36
      %p38 = scmp.ne.s32.totalorder %s24, %s25
      %p39 = scmp.eq.s32.totalorder %s17, 1
      %p40 = por %p38, %p39
      %p42 = scmp.ne.s32.totalorder %s25, %s41
      %p43 = scmp.eq.s32.totalorder %s17, 0
      %p44 = por %p42, %p43
      %s46 = sadd.s32 %s45, 1
      %p49 = scmp.eq.s32.totalorder %s11, 1
      %p50 = scmp.ne.s32.totalorder %s45, %s47
      %p51 = scmp.eq.s32.totalorder %s11, 0
      %p52 = por %p50, %p51
      %p53 = scmp.ne.s32.totalorder %s45, %s47
      %p54 = scmp.eq.s32.totalorder %s16, 1
      %p55 = por %p53, %p54
      %p56 = scmp.ne.s32.totalorder %s47, %s48
      %p57 = scmp.eq.s32.totalorder %s16, 0
      %p58 = por %p56, %p57
      %p59 = scmp.ne.s32.totalorder %s47, %s48
      %p60 = scmp.eq.s32.totalorder %s17, 1
      %p61 = por %p59, %p60
      %p63 = scmp.ne.s32.totalorder %s48, %s62
      %p64 = scmp.eq.s32.totalorder %s17, 0
      %p65 = por %p63, %p64
      %s67 = sadd.s32 %s66, 1
      %p70 = scmp.eq.s32.totalorder %s11, 1
      %p71 = scmp.ne.s32.totalorder %s66, %s68
      %p72 = scmp.eq.s32.totalorder %s11, 0
      %p73 = por %p71, %p72
      %p74 = scmp.ne.s32.totalorder %s66, %s68
      %p75 = scmp.eq.s32.totalorder %s16, 1
      %p76 = por %p74, %p75
      %p77 = scmp.ne.s32.totalorder %s68, %s69
      %p78 = scmp.eq.s32.totalorder %s16, 0
      %p79 = por %p77, %p78
      %p80 = scmp.ne.s32.totalorder %s68, %s69
      %p81 = scmp.eq.s32.totalorder %s17, 1
      %p82 = por %p80, %p81
      %p84 = scmp.ne.s32.totalorder %s69, %s83
      %p85 = scmp.eq.s32.totalorder %s17, 0
      %p86 = por %p84, %p85
      %s87 = ssub.s32 %s11, %s18
      %p88 = scmp.eq.s32.totalorder %s87, 0
      %s90 = sadd.s32 %s89, 1
      %s91 = scalar_select %p88, %s89, %s90
      %p94 = pneg %p88
      %p95 = scmp.eq.s32.totalorder %s11, 1
      %p96 = por %p94, %p95
      %p97 = scmp.ne.s32.totalorder %s89, %s92
      %p98 = scmp.eq.s32.totalorder %s11, 0
      %p99 = por %p97, %p98
      %p100 = scmp.ne.s32.totalorder %s89, %s92
      %p101 = scmp.eq.s32.totalorder %s16, 1
      %p102 = por %p100, %p101
      %p103 = scmp.ne.s32.totalorder %s92, %s93
      %p104 = scmp.eq.s32.totalorder %s16, 0
      %p105 = por %p103, %p104
      %p106 = scmp.ne.s32.totalorder %s92, %s93
      %p107 = scmp.eq.s32.totalorder %s17, 1
      %p108 = por %p106, %p107
      %p110 = scmp.ne.s32.totalorder %s93, %s109
      %p111 = scmp.eq.s32.totalorder %s17, 0
      %p112 = por %p110, %p111
      %s114 = sadd.s32 %s113, 1
      %p117 = scmp.eq.s32.totalorder %s11, 1
      %p118 = scmp.ne.s32.totalorder %s113, %s115
      %p119 = scmp.eq.s32.totalorder %s11, 0
      %p120 = por %p118, %p119
      %p121 = scmp.ne.s32.totalorder %s113, %s115
      %p122 = scmp.eq.s32.totalorder %s16, 1
      %p123 = por %p121, %p122
      %p124 = scmp.ne.s32.totalorder %s115, %s116
      %p125 = scmp.eq.s32.totalorder %s16, 0
      %p126 = por %p124, %p125
      %p127 = scmp.ne.s32.totalorder %s115, %s116
      %p128 = scmp.eq.s32.totalorder %s17, 1
      %p129 = por %p127, %p128
      %p131 = scmp.ne.s32.totalorder %s116, %s130
      %p132 = scmp.eq.s32.totalorder %s17, 0
      %p133 = por %p131, %p132
      %s134 = ssub.s32 %s11, %s18
      %p135 = scmp.eq.s32.totalorder %s134, 0
      %s137 = sadd.s32 %s136, 1
      %s138 = scalar_select %p135, %s136, %s137
      %p141 = pneg %p135
      %p142 = scmp.eq.s32.totalorder %s11, 1
      %p143 = por %p141, %p142
      %p144 = scmp.ne.s32.totalorder %s136, %s139
      %p145 = scmp.eq.s32.totalorder %s11, 0
      %p146 = por %p144, %p145
      %p147 = scmp.ne.s32.totalorder %s136, %s139
      %p148 = scmp.eq.s32.totalorder %s16, 1
      %p149 = por %p147, %p148
      %p150 = scmp.ne.s32.totalorder %s139, %s140
      %p151 = scmp.eq.s32.totalorder %s16, 0
      %p152 = por %p150, %p151
      %p153 = scmp.ne.s32.totalorder %s139, %s140
      %p154 = scmp.eq.s32.totalorder %s17, 1
      %p155 = por %p153, %p154
      %p157 = scmp.ne.s32.totalorder %s140, %s156
      %p158 = scmp.eq.s32.totalorder %s17, 0
      %p159 = por %p157, %p158
      %p160 = scmp.le.s32.totalorder 1, %s11
      %p161 = scmp.lt.s32.totalorder %s11, 3
      %p162 = pnand %p160, %p161
      %p163 = pneg %p162
      // Predicated region
      $region9: #{resnet_forward.9} parent=5 // pred_check
        _
      $region10: #{resnet_forward.9} parent=5 // pred_check_branch
        %165 = sbr.rel (%p162) target = $region12
      $region11: #{resnet_forward.9} parent=5 // pred_region
        %s166 = ssub.s32 %s11, 1
        // Predicated region
        $region13: #{resnet_forward.9} parent=11 // pred_check
          %p167 = pneg %p58
        $region14: #{resnet_forward.9} parent=11 // pred_check_branch
          %169 = sbr.rel (%p167) target = $region16
        $region15: #{resnet_forward.9} parent=11 // pred_region
          _
        $region16: #{resnet_forward.9} parent=11 // pred_fallthru
          _
        // Predicated region
        $region17: #{resnet_forward.9} parent=11 // pred_check
          %p170 = pneg %p79
        $region18: #{resnet_forward.9} parent=11 // pred_check_branch
          %172 = sbr.rel (%p170) target = $region20
        $region19: #{resnet_forward.9} parent=11 // pred_region
          _
        $region20: #{resnet_forward.9} parent=11 // pred_fallthru
          _
        // Predicated region
        $region21: #{resnet_forward.9} parent=11 // pred_check
          %p173 = pneg %p126
        $region22: #{resnet_forward.9} parent=11 // pred_check_branch
          %175 = sbr.rel (%p173) target = $region24
        $region23: #{resnet_forward.9} parent=11 // pred_region
          _
        $region24: #{resnet_forward.9} parent=11 // pred_fallthru
          _
      $region12: #{resnet_forward.9} parent=5 // pred_fallthru
        _
      %p176 = scmp.lt.s32.totalorder %s11, 2
      // Predicated region
      $region25: #{resnet_forward.9} parent=5 // pred_check
        %p177 = pneg %p176
      $region26: #{resnet_forward.9} parent=5 // pred_check_branch
        %179 = sbr.rel (%p177) target = $region28
      $region27: #{resnet_forward.9} parent=5 // pred_region
        // Predicated region
        $region29: #{resnet_forward.9} parent=27 // pred_check
          %p180 = pneg %p31
        $region30: #{resnet_forward.9} parent=27 // pred_check_branch
          %182 = sbr.rel (%p180) target = $region32
        $region31: #{resnet_forward.9} parent=27 // pred_region
          %s183 = sand.u32 %s21, 1
          %s184 = sand.u32 %s21, 1
          %s185 = smul.addr %s184, 1152
          %s186 = scalar_lea.vmem [#allocation2], %s185
          %s187 = smul.u32 8, %s11
          %s188 = smul.addr %s187, 8
          %s189 = scalar_lea.vmem %s0, %s188
          // Predicated region
          $region33: #{resnet_forward.9} parent=31 // pred_check
            _
          $region34: #{resnet_forward.9} parent=31 // pred_check_branch
            %191 = sbr.rel (0) target = $region36
          $region35: #{resnet_forward.9} parent=31 // pred_region
            // Predicated region
            $region37: #{resnet_forward.9} parent=35 // pred_check
              _
            $region38: #{resnet_forward.9} parent=35 // pred_check_branch
              %193 = sbr.rel (0) target = $region40
            $region39: #{resnet_forward.9} parent=35 // pred_region
              loop: start=0, step=1, limit=1
              $region41: #{resnet_forward.9} parent=39 // loop_pre_header
                _
              $region42: #{resnet_forward.9} parent=39 // loop_header
                %s195 = sphi 0, %s199
                %p196 = scmp.ge.s32.totalorder %s195, 1
                %s200 = sphi %s189, %s189
                %s201 = sphi %s186, %s186
              $region43: #{resnet_forward.9} parent=39 // loop_header_branch
                %198 = sbr.rel (%p196) target = $region47
              $region44: #{resnet_forward.9} parent=39 // loop_body
                %v202 = vld [vmem:[%s200] sm:$0xff]
                %203 = vst [vmem:[%s201] sm:$0xff] %v202
                %v204 = vld [vmem:[%s200 + $0x8] sm:$0xff]
                %205 = vst [vmem:[%s201 + $0x8] sm:$0xff] %v204
                %v206 = vld [vmem:[%s200 + $0x10] sm:$0xff]
                %207 = vst [vmem:[%s201 + $0x10] sm:$0xff] %v206
                %v208 = vld [vmem:[%s200 + $0x18] sm:$0xff]
                %209 = vst [vmem:[%s201 + $0x18] sm:$0xff] %v208
                %v210 = vld [vmem:[%s200 + $0x20] sm:$0xff]
                %211 = vst [vmem:[%s201 + $0x20] sm:$0xff] %v210
                %v212 = vld [vmem:[%s200 + $0x28] sm:$0xff]
                %213 = vst [vmem:[%s201 + $0x28] sm:$0xff] %v212
                %v214 = vld [vmem:[%s200 + $0x30] sm:$0xff]
                %215 = vst [vmem:[%s201 + $0x30] sm:$0xff] %v214
                %v216 = vld [vmem:[%s200 + $0x38] sm:$0xff]
                %217 = vst [vmem:[%s201 + $0x38] sm:$0xff] %v216
                %v218 = vld [vmem:[%s200 + $0x80] sm:$0xff]
                %219 = vst [vmem:[%s201 + $0x40] sm:$0xff] %v218
                %v220 = vld [vmem:[%s200 + $0x88] sm:$0xff]
                %221 = vst [vmem:[%s201 + $0x48] sm:$0xff] %v220
                %v222 = vld [vmem:[%s200 + $0x90] sm:$0xff]
                %223 = vst [vmem:[%s201 + $0x50] sm:$0xff] %v222
                %v224 = vld [vmem:[%s200 + $0x98] sm:$0xff]
                %225 = vst [vmem:[%s201 + $0x58] sm:$0xff] %v224
                %v226 = vld [vmem:[%s200 + $0xa0] sm:$0xff]
                %227 = vst [vmem:[%s201 + $0x60] sm:$0xff] %v226
                %v228 = vld [vmem:[%s200 + $0xa8] sm:$0xff]
                %229 = vst [vmem:[%s201 + $0x68] sm:$0xff] %v228
                %v230 = vld [vmem:[%s200 + $0xb0] sm:$0xff]
                %231 = vst [vmem:[%s201 + $0x70] sm:$0xff] %v230
                %v232 = vld [vmem:[%s200 + $0xb8] sm:$0xff]
                %233 = vst [vmem:[%s201 + $0x78] sm:$0xff] %v232
                %v234 = vld [vmem:[%s200 + $0x100] sm:$0xff]
                %235 = vst [vmem:[%s201 + $0x80] sm:$0xff] %v234
                %v236 = vld [vmem:[%s200 + $0x108] sm:$0xff]
                %237 = vst [vmem:[%s201 + $0x88] sm:$0xff] %v236
                %v238 = vld [vmem:[%s200 + $0x110] sm:$0xff]
                %239 = vst [vmem:[%s201 + $0x90] sm:$0xff] %v238
                %v240 = vld [vmem:[%s200 + $0x118] sm:$0xff]
                %241 = vst [vmem:[%s201 + $0x98] sm:$0xff] %v240
                %v242 = vld [vmem:[%s200 + $0x120] sm:$0xff]
                %243 = vst [vmem:[%s201 + $0xa0] sm:$0xff] %v242
                %v244 = vld [vmem:[%s200 + $0x128] sm:$0xff]
                %245 = vst [vmem:[%s201 + $0xa8] sm:$0xff] %v244
                %v246 = vld [vmem:[%s200 + $0x130] sm:$0xff]
                %247 = vst [vmem:[%s201 + $0xb0] sm:$0xff] %v246
                %v248 = vld [vmem:[%s200 + $0x138] sm:$0xff]
                %249 = vst [vmem:[%s201 + $0xb8] sm:$0xff] %v248
                %v250 = vld [vmem:[%s200 + $0x180] sm:$0xff]
                %251 = vst [vmem:[%s201 + $0xc0] sm:$0xff] %v250
                %v252 = vld [vmem:[%s200 + $0x188] sm:$0xff]
                %253 = vst [vmem:[%s201 + $0xc8] sm:$0xff] %v252
                %v254 = vld [vmem:[%s200 + $0x190] sm:$0xff]
                %255 = vst [vmem:[%s201 + $0xd0] sm:$0xff] %v254
                %v256 = vld [vmem:[%s200 + $0x198] sm:$0xff]
                %257 = vst [vmem:[%s201 + $0xd8] sm:$0xff] %v256
                %v258 = vld [vmem:[%s200 + $0x1a0] sm:$0xff]
                %259 = vst [vmem:[%s201 + $0xe0] sm:$0xff] %v258
                %v260 = vld [vmem:[%s200 + $0x1a8] sm:$0xff]
                %261 = vst [vmem:[%s201 + $0xe8] sm:$0xff] %v260
                %v262 = vld [vmem:[%s200 + $0x1b0] sm:$0xff]
                %263 = vst [vmem:[%s201 + $0xf0] sm:$0xff] %v262
                %v264 = vld [vmem:[%s200 + $0x1b8] sm:$0xff]
                %265 = vst [vmem:[%s201 + $0xf8] sm:$0xff] %v264
                %v266 = vld [vmem:[%s200 + $0x200] sm:$0xff]
                %267 = vst [vmem:[%s201 + $0x100] sm:$0xff] %v266
                %v268 = vld [vmem:[%s200 + $0x208] sm:$0xff]
                %269 = vst [vmem:[%s201 + $0x108] sm:$0xff] %v268
                %v270 = vld [vmem:[%s200 + $0x210] sm:$0xff]
                %271 = vst [vmem:[%s201 + $0x110] sm:$0xff] %v270
                %v272 = vld [vmem:[%s200 + $0x218] sm:$0xff]
                %273 = vst [vmem:[%s201 + $0x118] sm:$0xff] %v272
                %v274 = vld [vmem:[%s200 + $0x220] sm:$0xff]
                %275 = vst [vmem:[%s201 + $0x120] sm:$0xff] %v274
                %v276 = vld [vmem:[%s200 + $0x228] sm:$0xff]
                %277 = vst [vmem:[%s201 + $0x128] sm:$0xff] %v276
                %v278 = vld [vmem:[%s200 + $0x230] sm:$0xff]
                %279 = vst [vmem:[%s201 + $0x130] sm:$0xff] %v278
                %v280 = vld [vmem:[%s200 + $0x238] sm:$0xff]
                %281 = vst [vmem:[%s201 + $0x138] sm:$0xff] %v280
                %v282 = vld [vmem:[%s200 + $0x280] sm:$0xff]
                %283 = vst [vmem:[%s201 + $0x140] sm:$0xff] %v282
                %v284 = vld [vmem:[%s200 + $0x288] sm:$0xff]
                %285 = vst [vmem:[%s201 + $0x148] sm:$0xff] %v284
                %v286 = vld [vmem:[%s200 + $0x290] sm:$0xff]
                %287 = vst [vmem:[%s201 + $0x150] sm:$0xff] %v286
                %v288 = vld [vmem:[%s200 + $0x298] sm:$0xff]
                %289 = vst [vmem:[%s201 + $0x158] sm:$0xff] %v288
                %v290 = vld [vmem:[%s200 + $0x2a0] sm:$0xff]
                %291 = vst [vmem:[%s201 + $0x160] sm:$0xff] %v290
                %v292 = vld [vmem:[%s200 + $0x2a8] sm:$0xff]
                %293 = vst [vmem:[%s201 + $0x168] sm:$0xff] %v292
                %v294 = vld [vmem:[%s200 + $0x2b0] sm:$0xff]
                %295 = vst [vmem:[%s201 + $0x170] sm:$0xff] %v294
                %v296 = vld [vmem:[%s200 + $0x2b8] sm:$0xff]
                %297 = vst [vmem:[%s201 + $0x178] sm:$0xff] %v296
                %v298 = vld [vmem:[%s200 + $0x300] sm:$0xff]
                %299 = vst [vmem:[%s201 + $0x180] sm:$0xff] %v298
                %v300 = vld [vmem:[%s200 + $0x308] sm:$0xff]
                %301 = vst [vmem:[%s201 + $0x188] sm:$0xff] %v300
                %v302 = vld [vmem:[%s200 + $0x310] sm:$0xff]
                %303 = vst [vmem:[%s201 + $0x190] sm:$0xff] %v302
                %v304 = vld [vmem:[%s200 + $0x318] sm:$0xff]
                %305 = vst [vmem:[%s201 + $0x198] sm:$0xff] %v304
                %v306 = vld [vmem:[%s200 + $0x320] sm:$0xff]
                %307 = vst [vmem:[%s201 + $0x1a0] sm:$0xff] %v306
                %v308 = vld [vmem:[%s200 + $0x328] sm:$0xff]
                %309 = vst [vmem:[%s201 + $0x1a8] sm:$0xff] %v308
                %v310 = vld [vmem:[%s200 + $0x330] sm:$0xff]
                %311 = vst [vmem:[%s201 + $0x1b0] sm:$0xff] %v310
                %v312 = vld [vmem:[%s200 + $0x338] sm:$0xff]
                %313 = vst [vmem:[%s201 + $0x1b8] sm:$0xff] %v312
                %v314 = vld [vmem:[%s200 + $0x380] sm:$0xff]
                %315 = vst [vmem:[%s201 + $0x1c0] sm:$0xff] %v314
                %v316 = vld [vmem:[%s200 + $0x388] sm:$0xff]
                %317 = vst [vmem:[%s201 + $0x1c8] sm:$0xff] %v316
                %v318 = vld [vmem:[%s200 + $0x390] sm:$0xff]
                %319 = vst [vmem:[%s201 + $0x1d0] sm:$0xff] %v318
                %v320 = vld [vmem:[%s200 + $0x398] sm:$0xff]
                %321 = vst [vmem:[%s201 + $0x1d8] sm:$0xff] %v320
                %v322 = vld [vmem:[%s200 + $0x3a0] sm:$0xff]
                %323 = vst [vmem:[%s201 + $0x1e0] sm:$0xff] %v322
                %v324 = vld [vmem:[%s200 + $0x3a8] sm:$0xff]
                %325 = vst [vmem:[%s201 + $0x1e8] sm:$0xff] %v324
                %v326 = vld [vmem:[%s200 + $0x3b0] sm:$0xff]
                %327 = vst [vmem:[%s201 + $0x1f0] sm:$0xff] %v326
                %v328 = vld [vmem:[%s200 + $0x3b8] sm:$0xff]
                %329 = vst [vmem:[%s201 + $0x1f8] sm:$0xff] %v328
                %v330 = vld [vmem:[%s200 + $0x400] sm:$0xff]
                %331 = vst [vmem:[%s201 + $0x200] sm:$0xff] %v330
                %v332 = vld [vmem:[%s200 + $0x408] sm:$0xff]
                %333 = vst [vmem:[%s201 + $0x208] sm:$0xff] %v332
                %v334 = vld [vmem:[%s200 + $0x410] sm:$0xff]
                %335 = vst [vmem:[%s201 + $0x210] sm:$0xff] %v334
                %v336 = vld [vmem:[%s200 + $0x418] sm:$0xff]
                %337 = vst [vmem:[%s201 + $0x218] sm:$0xff] %v336
                %v338 = vld [vmem:[%s200 + $0x420] sm:$0xff]
                %339 = vst [vmem:[%s201 + $0x220] sm:$0xff] %v338
                %v340 = vld [vmem:[%s200 + $0x428] sm:$0xff]
                %341 = vst [vmem:[%s201 + $0x228] sm:$0xff] %v340
                %v342 = vld [vmem:[%s200 + $0x430] sm:$0xff]
                %343 = vst [vmem:[%s201 + $0x230] sm:$0xff] %v342
                %v344 = vld [vmem:[%s200 + $0x438] sm:$0xff]
                %345 = vst [vmem:[%s201 + $0x238] sm:$0xff] %v344
                %v346 = vld [vmem:[%s200 + $0x480] sm:$0xff]
                %347 = vst [vmem:[%s201 + $0x240] sm:$0xff] %v346
                %v348 = vld [vmem:[%s200 + $0x488] sm:$0xff]
                %349 = vst [vmem:[%s201 + $0x248] sm:$0xff] %v348
                %v350 = vld [vmem:[%s200 + $0x490] sm:$0xff]
                %351 = vst [vmem:[%s201 + $0x250] sm:$0xff] %v350
                %v352 = vld [vmem:[%s200 + $0x498] sm:$0xff]
                %353 = vst [vmem:[%s201 + $0x258] sm:$0xff] %v352
                %v354 = vld [vmem:[%s200 + $0x4a0] sm:$0xff]
                %355 = vst [vmem:[%s201 + $0x260] sm:$0xff] %v354
                %v356 = vld [vmem:[%s200 + $0x4a8] sm:$0xff]
                %357 = vst [vmem:[%s201 + $0x268] sm:$0xff] %v356
                %v358 = vld [vmem:[%s200 + $0x4b0] sm:$0xff]
                %359 = vst [vmem:[%s201 + $0x270] sm:$0xff] %v358
                %v360 = vld [vmem:[%s200 + $0x4b8] sm:$0xff]
                %361 = vst [vmem:[%s201 + $0x278] sm:$0xff] %v360
                %v362 = vld [vmem:[%s200 + $0x500] sm:$0xff]
                %363 = vst [vmem:[%s201 + $0x280] sm:$0xff] %v362
                %v364 = vld [vmem:[%s200 + $0x508] sm:$0xff]
                %365 = vst [vmem:[%s201 + $0x288] sm:$0xff] %v364
                %v366 = vld [vmem:[%s200 + $0x510] sm:$0xff]
                %367 = vst [vmem:[%s201 + $0x290] sm:$0xff] %v366
                %v368 = vld [vmem:[%s200 + $0x518] sm:$0xff]
                %369 = vst [vmem:[%s201 + $0x298] sm:$0xff] %v368
                %v370 = vld [vmem:[%s200 + $0x520] sm:$0xff]
                %371 = vst [vmem:[%s201 + $0x2a0] sm:$0xff] %v370
                %v372 = vld [vmem:[%s200 + $0x528] sm:$0xff]
                %373 = vst [vmem:[%s201 + $0x2a8] sm:$0xff] %v372
                %v374 = vld [vmem:[%s200 + $0x530] sm:$0xff]
                %375 = vst [vmem:[%s201 + $0x2b0] sm:$0xff] %v374
                %v376 = vld [vmem:[%s200 + $0x538] sm:$0xff]
                %377 = vst [vmem:[%s201 + $0x2b8] sm:$0xff] %v376
                %v378 = vld [vmem:[%s200 + $0x580] sm:$0xff]
                %379 = vst [vmem:[%s201 + $0x2c0] sm:$0xff] %v378
                %v380 = vld [vmem:[%s200 + $0x588] sm:$0xff]
                %381 = vst [vmem:[%s201 + $0x2c8] sm:$0xff] %v380
                %v382 = vld [vmem:[%s200 + $0x590] sm:$0xff]
                %383 = vst [vmem:[%s201 + $0x2d0] sm:$0xff] %v382
                %v384 = vld [vmem:[%s200 + $0x598] sm:$0xff]
                %385 = vst [vmem:[%s201 + $0x2d8] sm:$0xff] %v384
                %v386 = vld [vmem:[%s200 + $0x5a0] sm:$0xff]
                %387 = vst [vmem:[%s201 + $0x2e0] sm:$0xff] %v386
                %v388 = vld [vmem:[%s200 + $0x5a8] sm:$0xff]
                %389 = vst [vmem:[%s201 + $0x2e8] sm:$0xff] %v388
                %v390 = vld [vmem:[%s200 + $0x5b0] sm:$0xff]
                %391 = vst [vmem:[%s201 + $0x2f0] sm:$0xff] %v390
                %v392 = vld [vmem:[%s200 + $0x5b8] sm:$0xff]
                %393 = vst [vmem:[%s201 + $0x2f8] sm:$0xff] %v392
                %v394 = vld [vmem:[%s200 + $0x600] sm:$0xff]
                %395 = vst [vmem:[%s201 + $0x300] sm:$0xff] %v394
                %v396 = vld [vmem:[%s200 + $0x608] sm:$0xff]
                %397 = vst [vmem:[%s201 + $0x308] sm:$0xff] %v396
                %v398 = vld [vmem:[%s200 + $0x610] sm:$0xff]
                %399 = vst [vmem:[%s201 + $0x310] sm:$0xff] %v398
                %v400 = vld [vmem:[%s200 + $0x618] sm:$0xff]
                %401 = vst [vmem:[%s201 + $0x318] sm:$0xff] %v400
                %v402 = vld [vmem:[%s200 + $0x620] sm:$0xff]
                %403 = vst [vmem:[%s201 + $0x320] sm:$0xff] %v402
                %v404 = vld [vmem:[%s200 + $0x628] sm:$0xff]
                %405 = vst [vmem:[%s201 + $0x328] sm:$0xff] %v404
                %v406 = vld [vmem:[%s200 + $0x630] sm:$0xff]
                %407 = vst [vmem:[%s201 + $0x330] sm:$0xff] %v406
                %v408 = vld [vmem:[%s200 + $0x638] sm:$0xff]
                %409 = vst [vmem:[%s201 + $0x338] sm:$0xff] %v408
                %v410 = vld [vmem:[%s200 + $0x680] sm:$0xff]
                %411 = vst [vmem:[%s201 + $0x340] sm:$0xff] %v410
                %v412 = vld [vmem:[%s200 + $0x688] sm:$0xff]
                %413 = vst [vmem:[%s201 + $0x348] sm:$0xff] %v412
                %v414 = vld [vmem:[%s200 + $0x690] sm:$0xff]
                %415 = vst [vmem:[%s201 + $0x350] sm:$0xff] %v414
                %v416 = vld [vmem:[%s200 + $0x698] sm:$0xff]
                %417 = vst [vmem:[%s201 + $0x358] sm:$0xff] %v416
                %v418 = vld [vmem:[%s200 + $0x6a0] sm:$0xff]
                %419 = vst [vmem:[%s201 + $0x360] sm:$0xff] %v418
                %v420 = vld [vmem:[%s200 + $0x6a8] sm:$0xff]
                %421 = vst [vmem:[%s201 + $0x368] sm:$0xff] %v420
                %v422 = vld [vmem:[%s200 + $0x6b0] sm:$0xff]
                %423 = vst [vmem:[%s201 + $0x370] sm:$0xff] %v422
                %v424 = vld [vmem:[%s200 + $0x6b8] sm:$0xff]
                %425 = vst [vmem:[%s201 + $0x378] sm:$0xff] %v424
                %v426 = vld [vmem:[%s200 + $0x700] sm:$0xff]
                %427 = vst [vmem:[%s201 + $0x380] sm:$0xff] %v426
                %v428 = vld [vmem:[%s200 + $0x708] sm:$0xff]
                %429 = vst [vmem:[%s201 + $0x388] sm:$0xff] %v428
                %v430 = vld [vmem:[%s200 + $0x710] sm:$0xff]
                %431 = vst [vmem:[%s201 + $0x390] sm:$0xff] %v430
                %v432 = vld [vmem:[%s200 + $0x718] sm:$0xff]
                %433 = vst [vmem:[%s201 + $0x398] sm:$0xff] %v432
                %v434 = vld [vmem:[%s200 + $0x720] sm:$0xff]
                %435 = vst [vmem:[%s201 + $0x3a0] sm:$0xff] %v434
                %v436 = vld [vmem:[%s200 + $0x728] sm:$0xff]
                %437 = vst [vmem:[%s201 + $0x3a8] sm:$0xff] %v436
                %v438 = vld [vmem:[%s200 + $0x730] sm:$0xff]
                %439 = vst [vmem:[%s201 + $0x3b0] sm:$0xff] %v438
                %v440 = vld [vmem:[%s200 + $0x738] sm:$0xff]
                %441 = vst [vmem:[%s201 + $0x3b8] sm:$0xff] %v440
                %v442 = vld [vmem:[%s200 + $0x780] sm:$0xff]
                %443 = vst [vmem:[%s201 + $0x3c0] sm:$0xff] %v442
                %v444 = vld [vmem:[%s200 + $0x788] sm:$0xff]
                %445 = vst [vmem:[%s201 + $0x3c8] sm:$0xff] %v444
                %v446 = vld [vmem:[%s200 + $0x790] sm:$0xff]
                %447 = vst [vmem:[%s201 + $0x3d0] sm:$0xff] %v446
                %v448 = vld [vmem:[%s200 + $0x798] sm:$0xff]
                %449 = vst [vmem:[%s201 + $0x3d8] sm:$0xff] %v448
                %v450 = vld [vmem:[%s200 + $0x7a0] sm:$0xff]
                %451 = vst [vmem:[%s201 + $0x3e0] sm:$0xff] %v450
                %v452 = vld [vmem:[%s200 + $0x7a8] sm:$0xff]
                %453 = vst [vmem:[%s201 + $0x3e8] sm:$0xff] %v452
                %v454 = vld [vmem:[%s200 + $0x7b0] sm:$0xff]
                %455 = vst [vmem:[%s201 + $0x3f0] sm:$0xff] %v454
                %v456 = vld [vmem:[%s200 + $0x7b8] sm:$0xff]
                %457 = vst [vmem:[%s201 + $0x3f8] sm:$0xff] %v456
                %v458 = vld [vmem:[%s200 + $0x800] sm:$0xff]
                %459 = vst [vmem:[%s201 + $0x400] sm:$0xff] %v458
                %v460 = vld [vmem:[%s200 + $0x808] sm:$0xff]
                %461 = vst [vmem:[%s201 + $0x408] sm:$0xff] %v460
                %v462 = vld [vmem:[%s200 + $0x810] sm:$0xff]
                %463 = vst [vmem:[%s201 + $0x410] sm:$0xff] %v462
                %v464 = vld [vmem:[%s200 + $0x818] sm:$0xff]
                %465 = vst [vmem:[%s201 + $0x418] sm:$0xff] %v464
                %v466 = vld [vmem:[%s200 + $0x820] sm:$0xff]
                %467 = vst [vmem:[%s201 + $0x420] sm:$0xff] %v466
                %v468 = vld [vmem:[%s200 + $0x828] sm:$0xff]
                %469 = vst [vmem:[%s201 + $0x428] sm:$0xff] %v468
                %v470 = vld [vmem:[%s200 + $0x830] sm:$0xff]
                %471 = vst [vmem:[%s201 + $0x430] sm:$0xff] %v470
                %v472 = vld [vmem:[%s200 + $0x838] sm:$0xff]
                %473 = vst [vmem:[%s201 + $0x438] sm:$0xff] %v472
                %v474 = vld [vmem:[%s200 + $0x880] sm:$0xff]
                %475 = vst [vmem:[%s201 + $0x440] sm:$0xff] %v474
                %v476 = vld [vmem:[%s200 + $0x888] sm:$0xff]
                %477 = vst [vmem:[%s201 + $0x448] sm:$0xff] %v476
                %v478 = vld [vmem:[%s200 + $0x890] sm:$0xff]
                %479 = vst [vmem:[%s201 + $0x450] sm:$0xff] %v478
                %v480 = vld [vmem:[%s200 + $0x898] sm:$0xff]
                %481 = vst [vmem:[%s201 + $0x458] sm:$0xff] %v480
                %v482 = vld [vmem:[%s200 + $0x8a0] sm:$0xff]
                %483 = vst [vmem:[%s201 + $0x460] sm:$0xff] %v482
                %v484 = vld [vmem:[%s200 + $0x8a8] sm:$0xff]
                %485 = vst [vmem:[%s201 + $0x468] sm:$0xff] %v484
                %v486 = vld [vmem:[%s200 + $0x8b0] sm:$0xff]
                %487 = vst [vmem:[%s201 + $0x470] sm:$0xff] %v486
                %v488 = vld [vmem:[%s200 + $0x8b8] sm:$0xff]
                %489 = vst [vmem:[%s201 + $0x478] sm:$0xff] %v488
              $region45: #{resnet_forward.9} parent=39 // loop_footer
                %s199 = sadd.s32 1, %s195
              $region46: #{resnet_forward.9} parent=39 // loop_footer_branch
                %194 = sbr.rel target = $region42
              $region47: #{resnet_forward.9} parent=39 // loop_exit
                _
            $region40: #{resnet_forward.9} parent=35 // pred_fallthru
              _
            // Predicated region
            $region48: #{resnet_forward.9} parent=35 // pred_check
              _
            $region49: #{resnet_forward.9} parent=35 // pred_check_branch
              %491 = sbr.rel target = $region51
            $region50: #{resnet_forward.9} parent=35 // pred_region
              _
            $region51: #{resnet_forward.9} parent=35 // pred_fallthru
              _
          $region36: #{resnet_forward.9} parent=31 // pred_fallthru
            _
          %492 = vnop
        $region32: #{resnet_forward.9} parent=27 // pred_fallthru
          _
        // Predicated region
        $region52: #{resnet_forward.9} parent=27 // pred_check
          %p493 = pneg %p99
        $region53: #{resnet_forward.9} parent=27 // pred_check_branch
          %495 = sbr.rel (%p493) target = $region55
        $region54: #{resnet_forward.9} parent=27 // pred_region
          %s496 = sand.u32 %s89, 1
          %s497 = sand.u32 %s89, 1
          %s498 = smul.addr %s497, 128
          %s499 = scalar_lea.vmem [#allocation3], %s498
          %s500 = smul.u32 8, %s11
          %s501 = smul.addr %s500, 8
          %s502 = scalar_lea.vmem %s3, %s501
          // Predicated region
          $region56: #{resnet_forward.9} parent=54 // pred_check
            _
          $region57: #{resnet_forward.9} parent=54 // pred_check_branch
            %504 = sbr.rel (0) target = $region59
          $region58: #{resnet_forward.9} parent=54 // pred_region
            // Predicated region
            $region60: #{resnet_forward.9} parent=58 // pred_check
              _
            $region61: #{resnet_forward.9} parent=58 // pred_check_branch
              %506 = sbr.rel (0) target = $region63
            $region62: #{resnet_forward.9} parent=58 // pred_region
              loop: start=0, step=1, limit=1
              $region64: #{resnet_forward.9} parent=62 // loop_pre_header
                _
              $region65: #{resnet_forward.9} parent=62 // loop_header
                %s508 = sphi 0, %s512
                %p509 = scmp.ge.s32.totalorder %s508, 1
                %s513 = sphi %s502, %s502
                %s514 = sphi %s499, %s499
              $region66: #{resnet_forward.9} parent=62 // loop_header_branch
                %511 = sbr.rel (%p509) target = $region70
              $region67: #{resnet_forward.9} parent=62 // loop_body
                %v515 = vld [vmem:[%s513] sm:$0xff]
                %516 = vst [vmem:[%s514] sm:$0xff] %v515
                %v517 = vld [vmem:[%s513 + $0x8] sm:$0xff]
                %518 = vst [vmem:[%s514 + $0x8] sm:$0xff] %v517
                %v519 = vld [vmem:[%s513 + $0x10] sm:$0xff]
                %520 = vst [vmem:[%s514 + $0x10] sm:$0xff] %v519
                %v521 = vld [vmem:[%s513 + $0x18] sm:$0xff]
                %522 = vst [vmem:[%s514 + $0x18] sm:$0xff] %v521
                %v523 = vld [vmem:[%s513 + $0x20] sm:$0xff]
                %524 = vst [vmem:[%s514 + $0x20] sm:$0xff] %v523
                %v525 = vld [vmem:[%s513 + $0x28] sm:$0xff]
                %526 = vst [vmem:[%s514 + $0x28] sm:$0xff] %v525
                %v527 = vld [vmem:[%s513 + $0x30] sm:$0xff]
                %528 = vst [vmem:[%s514 + $0x30] sm:$0xff] %v527
                %v529 = vld [vmem:[%s513 + $0x38] sm:$0xff]
                %530 = vst [vmem:[%s514 + $0x38] sm:$0xff] %v529
                %v531 = vld [vmem:[%s513 + $0x80] sm:$0xff]
                %532 = vst [vmem:[%s514 + $0x40] sm:$0xff] %v531
                %v533 = vld [vmem:[%s513 + $0x88] sm:$0xff]
                %534 = vst [vmem:[%s514 + $0x48] sm:$0xff] %v533
                %v535 = vld [vmem:[%s513 + $0x90] sm:$0xff]
                %536 = vst [vmem:[%s514 + $0x50] sm:$0xff] %v535
                %v537 = vld [vmem:[%s513 + $0x98] sm:$0xff]
                %538 = vst [vmem:[%s514 + $0x58] sm:$0xff] %v537
                %v539 = vld [vmem:[%s513 + $0xa0] sm:$0xff]
                %540 = vst [vmem:[%s514 + $0x60] sm:$0xff] %v539
                %v541 = vld [vmem:[%s513 + $0xa8] sm:$0xff]
                %542 = vst [vmem:[%s514 + $0x68] sm:$0xff] %v541
                %v543 = vld [vmem:[%s513 + $0xb0] sm:$0xff]
                %544 = vst [vmem:[%s514 + $0x70] sm:$0xff] %v543
                %v545 = vld [vmem:[%s513 + $0xb8] sm:$0xff]
                %546 = vst [vmem:[%s514 + $0x78] sm:$0xff] %v545
              $region68: #{resnet_forward.9} parent=62 // loop_footer
                %s512 = sadd.s32 1, %s508
              $region69: #{resnet_forward.9} parent=62 // loop_footer_branch
                %507 = sbr.rel target = $region65
              $region70: #{resnet_forward.9} parent=62 // loop_exit
                _
            $region63: #{resnet_forward.9} parent=58 // pred_fallthru
              _
            // Predicated region
            $region71: #{resnet_forward.9} parent=58 // pred_check
              _
            $region72: #{resnet_forward.9} parent=58 // pred_check_branch
              %548 = sbr.rel target = $region74
            $region73: #{resnet_forward.9} parent=58 // pred_region
              _
            $region74: #{resnet_forward.9} parent=58 // pred_fallthru
              _
          $region59: #{resnet_forward.9} parent=54 // pred_fallthru
            _
          %549 = vnop
        $region55: #{resnet_forward.9} parent=27 // pred_fallthru
          _
      $region28: #{resnet_forward.9} parent=5 // pred_fallthru
        _
      %p550 = scmp.le.s32.totalorder 1, %s11
      %p551 = scmp.lt.s32.totalorder %s11, 3
      %p552 = pnand %p550, %p551
      %p553 = pneg %p552
      // Predicated region
      $region75: #{resnet_forward.9} parent=5 // pred_check
        _
      $region76: #{resnet_forward.9} parent=5 // pred_check_branch
        %555 = sbr.rel (%p552) target = $region78
      $region77: #{resnet_forward.9} parent=5 // pred_region
        %s556 = ssub.s32 %s11, 1
        %s557 = sand.u32 %s24, 1
        %s558 = sand.u32 %s24, 1
        %s559 = smul.addr %s558, 1152
        %s560 = scalar_lea.vmem [#allocation2], %s559
        // Predicated region
        $region79: #{resnet_forward.9} parent=77 // pred_check
          %p561 = pneg %p37
        $region80: #{resnet_forward.9} parent=77 // pred_check_branch
          %563 = sbr.rel (%p561) target = $region82
        $region81: #{resnet_forward.9} parent=77 // pred_region
          _
        $region82: #{resnet_forward.9} parent=77 // pred_fallthru
          _
        %s564 = sand.u32 %s92, 1
        %s565 = sand.u32 %s92, 1
        %s566 = smul.addr %s565, 128
        %s567 = scalar_lea.vmem [#allocation3], %s566
        // Predicated region
        $region83: #{resnet_forward.9} parent=77 // pred_check
          %p568 = pneg %p105
        $region84: #{resnet_forward.9} parent=77 // pred_check_branch
          %570 = sbr.rel (%p568) target = $region86
        $region85: #{resnet_forward.9} parent=77 // pred_region
          _
        $region86: #{resnet_forward.9} parent=77 // pred_fallthru
          _
        %s571 = sand.u32 %s24, 1
        %s572 = sand.u32 %s24, 1
        %s573 = smul.addr %s572, 1152
        %s574 = scalar_lea.vmem [#allocation2], %s573
        %p575 = pneg %p37
        %p576 = pneg %p34
        %p577 = pneg %p58
        %p578 = pneg %p55
        %p579 = pneg %p79
        %p580 = pneg %p76
        %s581 = sand.u32 %s92, 1
        %s582 = sand.u32 %s92, 1
        %s583 = smul.addr %s582, 128
        %s584 = scalar_lea.vmem [#allocation3], %s583
        %p585 = pneg %p105
        %p586 = pneg %p102
        %p587 = pneg %p126
        %p588 = pneg %p123
        %p589 = pneg %p152
        %p590 = pneg %p149
        %s591 = sand.u32 %s139, 1
        %s592 = sand.u32 %s139, 1
        %s593 = smul.addr %s592, 128
        %s594 = scalar_lea.vmem [#allocation4], %s593
        %s595 = smul.u32 8, %s16
        %s596 = smul.u32 8, %s16
        %s597 = smul.u32 8, %s16
        %v598 = vld [vmem:[%s1] sm:$0xff]
        %v599 = vld [vmem:[%s1 + $0x8] sm:$0xff]
        %v600 = vld [vmem:[%s1 + $0x10] sm:$0xff]
        %v601 = vld [vmem:[%s1 + $0x18] sm:$0xff]
        %v602 = vld [vmem:[%s560] sm:$0xff]
        %v603 = vld [vmem:[%s560 + $0x8] sm:$0xff]
        %v604 = vld [vmem:[%s560 + $0x10] sm:$0xff]
        %v605 = vld [vmem:[%s560 + $0x18] sm:$0xff]
        %v606 = vld [vmem:[%s560 + $0x20] sm:$0xff]
        %v607 = vld [vmem:[%s560 + $0x28] sm:$0xff]
        %v608 = vld [vmem:[%s560 + $0x30] sm:$0xff]
        %v609 = vld [vmem:[%s560 + $0x38] sm:$0xff]
        %v610 = vld [vmem:[%s560 + $0x40] sm:$0xff]
        %v611 = vld [vmem:[%s560 + $0x48] sm:$0xff]
        %v612 = vld [vmem:[%s560 + $0x50] sm:$0xff]
        %v613 = vld [vmem:[%s560 + $0x58] sm:$0xff]
        %v614 = vld [vmem:[%s560 + $0x60] sm:$0xff]
        %v615 = vld [vmem:[%s560 + $0x68] sm:$0xff]
        %v616 = vld [vmem:[%s560 + $0x70] sm:$0xff]
        %v617 = vld [vmem:[%s560 + $0x78] sm:$0xff]
        %v618 = vld [vmem:[%s560 + $0x80] sm:$0xff]
        %v619 = vld [vmem:[%s560 + $0x88] sm:$0xff]
        %v620 = vld [vmem:[%s560 + $0x90] sm:$0xff]
        %v621 = vld [vmem:[%s560 + $0x98] sm:$0xff]
        %v622 = vld [vmem:[%s560 + $0xa0] sm:$0xff]
        %v623 = vld [vmem:[%s560 + $0xa8] sm:$0xff]
        %v624 = vld [vmem:[%s560 + $0xb0] sm:$0xff]
        %v625 = vld [vmem:[%s560 + $0xb8] sm:$0xff]
        %v626 = vld [vmem:[%s560 + $0xc0] sm:$0xff]
        %v627 = vld [vmem:[%s560 + $0xc8] sm:$0xff]
        %v628 = vld [vmem:[%s560 + $0xd0] sm:$0xff]
        %v629 = vld [vmem:[%s560 + $0xd8] sm:$0xff]
        %v630 = vld [vmem:[%s560 + $0xe0] sm:$0xff]
        %v631 = vld [vmem:[%s560 + $0xe8] sm:$0xff]
        %v632 = vld [vmem:[%s560 + $0xf0] sm:$0xff]
        %v633 = vld [vmem:[%s560 + $0xf8] sm:$0xff]
        %v634 = vld [vmem:[%s560 + $0x100] sm:$0xff]
        %v635 = vld [vmem:[%s560 + $0x108] sm:$0xff]
        %v636 = vld [vmem:[%s560 + $0x110] sm:$0xff]
        %v637 = vld [vmem:[%s560 + $0x118] sm:$0xff]
        %v638 = vld [vmem:[%s560 + $0x120] sm:$0xff]
        %v639 = vld [vmem:[%s560 + $0x128] sm:$0xff]
        %v640 = vld [vmem:[%s560 + $0x130] sm:$0xff]
        %v641 = vld [vmem:[%s560 + $0x138] sm:$0xff]
        %v642 = vld [vmem:[%s560 + $0x140] sm:$0xff]
        %v643 = vld [vmem:[%s560 + $0x148] sm:$0xff]
        %v644 = vld [vmem:[%s560 + $0x150] sm:$0xff]
        %v645 = vld [vmem:[%s560 + $0x158] sm:$0xff]
        %v646 = vld [vmem:[%s560 + $0x160] sm:$0xff]
        %v647 = vld [vmem:[%s560 + $0x168] sm:$0xff]
        %v648 = vld [vmem:[%s560 + $0x170] sm:$0xff]
        %v649 = vld [vmem:[%s560 + $0x178] sm:$0xff]
        %v650 = vld [vmem:[%s560 + $0x180] sm:$0xff]
        %v651 = vld [vmem:[%s560 + $0x188] sm:$0xff]
        %v652 = vld [vmem:[%s560 + $0x190] sm:$0xff]
        %v653 = vld [vmem:[%s560 + $0x198] sm:$0xff]
        %v654 = vld [vmem:[%s560 + $0x1a0] sm:$0xff]
        %v655 = vld [vmem:[%s560 + $0x1a8] sm:$0xff]
        %v656 = vld [vmem:[%s560 + $0x1b0] sm:$0xff]
        %v657 = vld [vmem:[%s560 + $0x1b8] sm:$0xff]
        %v658 = vld [vmem:[%s560 + $0x1c0] sm:$0xff]
        %v659 = vld [vmem:[%s560 + $0x1c8] sm:$0xff]
        %v660 = vld [vmem:[%s560 + $0x1d0] sm:$0xff]
        %v661 = vld [vmem:[%s560 + $0x1d8] sm:$0xff]
        %v662 = vld [vmem:[%s560 + $0x1e0] sm:$0xff]
        %v663 = vld [vmem:[%s560 + $0x1e8] sm:$0xff]
        %v664 = vld [vmem:[%s560 + $0x1f0] sm:$0xff]
        %v665 = vld [vmem:[%s560 + $0x1f8] sm:$0xff]
        %v666 = vld [vmem:[%s560 + $0x200] sm:$0xff]
        %v667 = vld [vmem:[%s560 + $0x208] sm:$0xff]
        %v668 = vld [vmem:[%s560 + $0x210] sm:$0xff]
        %v669 = vld [vmem:[%s560 + $0x218] sm:$0xff]
        %v670 = vld [vmem:[%s560 + $0x220] sm:$0xff]
        %v671 = vld [vmem:[%s560 + $0x228] sm:$0xff]
        %v672 = vld [vmem:[%s560 + $0x230] sm:$0xff]
        %v673 = vld [vmem:[%s560 + $0x238] sm:$0xff]
        %v674 = vld [vmem:[%s560 + $0x240] sm:$0xff]
        %v675 = vld [vmem:[%s560 + $0x248] sm:$0xff]
        %v676 = vld [vmem:[%s560 + $0x250] sm:$0xff]
        %v677 = vld [vmem:[%s560 + $0x258] sm:$0xff]
        %v678 = vld [vmem:[%s560 + $0x260] sm:$0xff]
        %v679 = vld [vmem:[%s560 + $0x268] sm:$0xff]
        %v680 = vld [vmem:[%s560 + $0x270] sm:$0xff]
        %v681 = vld [vmem:[%s560 + $0x278] sm:$0xff]
        %v682 = vld [vmem:[%s560 + $0x280] sm:$0xff]
        %v683 = vld [vmem:[%s560 + $0x288] sm:$0xff]
        %v684 = vld [vmem:[%s560 + $0x290] sm:$0xff]
        %v685 = vld [vmem:[%s560 + $0x298] sm:$0xff]
        %v686 = vld [vmem:[%s560 + $0x2a0] sm:$0xff]
        %v687 = vld [vmem:[%s560 + $0x2a8] sm:$0xff]
        %v688 = vld [vmem:[%s560 + $0x2b0] sm:$0xff]
        %v689 = vld [vmem:[%s560 + $0x2b8] sm:$0xff]
        %v690 = vld [vmem:[%s560 + $0x2c0] sm:$0xff]
        %v691 = vld [vmem:[%s560 + $0x2c8] sm:$0xff]
        %v692 = vld [vmem:[%s560 + $0x2d0] sm:$0xff]
        %v693 = vld [vmem:[%s560 + $0x2d8] sm:$0xff]
        %v694 = vld [vmem:[%s560 + $0x2e0] sm:$0xff]
        %v695 = vld [vmem:[%s560 + $0x2e8] sm:$0xff]
        %v696 = vld [vmem:[%s560 + $0x2f0] sm:$0xff]
        %v697 = vld [vmem:[%s560 + $0x2f8] sm:$0xff]
        %v698 = vld [vmem:[%s560 + $0x300] sm:$0xff]
        %v699 = vld [vmem:[%s560 + $0x308] sm:$0xff]
        %v700 = vld [vmem:[%s560 + $0x310] sm:$0xff]
        %v701 = vld [vmem:[%s560 + $0x318] sm:$0xff]
        %v702 = vld [vmem:[%s560 + $0x320] sm:$0xff]
        %v703 = vld [vmem:[%s560 + $0x328] sm:$0xff]
        %v704 = vld [vmem:[%s560 + $0x330] sm:$0xff]
        %v705 = vld [vmem:[%s560 + $0x338] sm:$0xff]
        %v706 = vld [vmem:[%s560 + $0x340] sm:$0xff]
        %v707 = vld [vmem:[%s560 + $0x348] sm:$0xff]
        %v708 = vld [vmem:[%s560 + $0x350] sm:$0xff]
        %v709 = vld [vmem:[%s560 + $0x358] sm:$0xff]
        %v710 = vld [vmem:[%s560 + $0x360] sm:$0xff]
        %v711 = vld [vmem:[%s560 + $0x368] sm:$0xff]
        %v712 = vld [vmem:[%s560 + $0x370] sm:$0xff]
        %v713 = vld [vmem:[%s560 + $0x378] sm:$0xff]
        %v714 = vld [vmem:[%s560 + $0x380] sm:$0xff]
        %v715 = vld [vmem:[%s560 + $0x388] sm:$0xff]
        %v716 = vld [vmem:[%s560 + $0x390] sm:$0xff]
        %v717 = vld [vmem:[%s560 + $0x398] sm:$0xff]
        %v718 = vld [vmem:[%s560 + $0x3a0] sm:$0xff]
        %v719 = vld [vmem:[%s560 + $0x3a8] sm:$0xff]
        %v720 = vld [vmem:[%s560 + $0x3b0] sm:$0xff]
        %v721 = vld [vmem:[%s560 + $0x3b8] sm:$0xff]
        %v722 = vld [vmem:[%s560 + $0x3c0] sm:$0xff]
        %v723 = vld [vmem:[%s560 + $0x3c8] sm:$0xff]
        %v724 = vld [vmem:[%s560 + $0x3d0] sm:$0xff]
        %v725 = vld [vmem:[%s560 + $0x3d8] sm:$0xff]
        %v726 = vld [vmem:[%s560 + $0x3e0] sm:$0xff]
        %v727 = vld [vmem:[%s560 + $0x3e8] sm:$0xff]
        %v728 = vld [vmem:[%s560 + $0x3f0] sm:$0xff]
        %v729 = vld [vmem:[%s560 + $0x3f8] sm:$0xff]
        %v730 = vld [vmem:[%s560 + $0x400] sm:$0xff]
        %v731 = vld [vmem:[%s560 + $0x408] sm:$0xff]
        %v732 = vld [vmem:[%s560 + $0x410] sm:$0xff]
        %v733 = vld [vmem:[%s560 + $0x418] sm:$0xff]
        %v734 = vld [vmem:[%s560 + $0x420] sm:$0xff]
        %v735 = vld [vmem:[%s560 + $0x428] sm:$0xff]
        %v736 = vld [vmem:[%s560 + $0x430] sm:$0xff]
        %v737 = vld [vmem:[%s560 + $0x438] sm:$0xff]
        %v738 = vld [vmem:[%s560 + $0x440] sm:$0xff]
        %v739 = vld [vmem:[%s560 + $0x448] sm:$0xff]
        %v740 = vld [vmem:[%s560 + $0x450] sm:$0xff]
        %v741 = vld [vmem:[%s560 + $0x458] sm:$0xff]
        %v742 = vld [vmem:[%s560 + $0x460] sm:$0xff]
        %v743 = vld [vmem:[%s560 + $0x468] sm:$0xff]
        %v744 = vld [vmem:[%s560 + $0x470] sm:$0xff]
        %v745 = vld [vmem:[%s560 + $0x478] sm:$0xff]
        %v746 = vld [vmem:[%s2] sm:$0xff]
        %v747 = vld [vmem:[%s2 + $0x8] sm:$0xff]
        %749 = vset.pattern.permute.xlu0 0
        %750 = vperm.xlu0 %749, %v746
        %v751 = vpop.permute.xlu0 %750
        %754 = vset.pattern.permute.xlu0 0
        %755 = vperm.xlu0 %754, %v747
        %v756 = vpop.permute.xlu0 %755
        %vm758 = vcmask 130048
        %v760 = vsel %vm758, %v599, 0
        %v763 = vsel %vm758, %v601, 0
        %765 = vmatprep.subr.mxu0 %v603
        %766 = vmatpush1.msra.mxu0 %v602
        %767 = vmatprep.subr.mxu0 %v611
        %768 = vmatpush1.msra.mxu0 %v610
        %769 = vmatprep.subr.mxu0 %v619
        %770 = vmatpush1.msra.mxu0 %v618
        %771 = vmatprep.subr.mxu0 %v627
        %772 = vmatpush1.msra.mxu0 %v626
        %773 = vmatprep.subr.mxu0 %v635
        %774 = vmatpush1.msra.mxu0 %v634
        %775 = vmatprep.subr.mxu0 %v643
        %776 = vmatpush1.msra.mxu0 %v642
        %777 = vmatprep.subr.mxu0 %v651
        %778 = vmatpush1.msra.mxu0 %v650
        %779 = vmatprep.subr.mxu0 %v659
        %780 = vmatpush1.msra.mxu0 %v658
        %781 = vmatprep.subr.mxu0 %v667
        %782 = vmatpush1.msra.mxu0 %v666
        %783 = vmatprep.subr.mxu0 %v675
        %784 = vmatpush1.msra.mxu0 %v674
        %785 = vmatprep.subr.mxu0 %v683
        %786 = vmatpush1.msra.mxu0 %v682
        %787 = vmatprep.subr.mxu0 %v691
        %788 = vmatpush1.msra.mxu0 %v690
        %789 = vmatprep.subr.mxu0 %v699
        %790 = vmatpush1.msra.mxu0 %v698
        %791 = vmatprep.subr.mxu0 %v707
        %792 = vmatpush1.msra.mxu0 %v706
        %793 = vmatprep.subr.mxu0 %v715
        %794 = vmatpush1.msra.mxu0 %v714
        %795 = vmatprep.subr.mxu0 %v723
        %796 = vmatpush1.msra.mxu0 %v722
        %797 = vmatprep.subr.mxu0 %v731
        %798 = vmatpush1.msra.mxu0 %v730
        %799 = vmatprep.subr.mxu0 %v739
        %800 = vmatpush1.msra.mxu0 %v738
        %801 = vmatprep.subr.mxu0 0.0
        %802 = vmatpush1.msra.mxu0 0.0
        %803 = vmatprep.subr.mxu0 0.0
        %804 = vmatpush1.msra.mxu0 0.0
        %805 = vmatprep.subr.mxu0 0.0
        %806 = vmatpush1.msra.mxu0 0.0
        %807 = vmatprep.subr.mxu0 0.0
        %808 = vmatpush1.msra.mxu0 0.0
        %809 = vmatprep.subr.mxu0 0.0
        %810 = vmatpush1.msra.mxu0 0.0
        %811 = vmatprep.subr.mxu0 0.0
        %812 = vmatpush1.msra.mxu0 0.0
        %813 = vmatprep.subr.mxu0 0.0
        %814 = vmatpush1.msra.mxu0 0.0
        %815 = vmatprep.subr.mxu0 0.0
        %816 = vmatpush1.msra.mxu0 0.0
        %817 = vmatprep.subr.mxu0 0.0
        %818 = vmatpush1.msra.mxu0 0.0
        %819 = vmatprep.subr.mxu0 0.0
        %820 = vmatpush1.msra.mxu0 0.0
        %821 = vmatprep.subr.mxu0 0.0
        %822 = vmatpush1.msra.mxu0 0.0
        %823 = vmatprep.subr.mxu0 0.0
        %824 = vmatpush1.msra.mxu0 0.0
        %825 = vmatprep.subr.mxu0 0.0
        %826 = vmatpush1.msra.mxu0 0.0
        %827 = vmatprep.subr.mxu0 0.0
        %828 = vmatpush1.msra.mxu0 0.0
        %829 = vmatprep.mubr.f32.mxu0 %v760
        %830 = vmatmul.mubr.f32.gmra.mrb[0].mxu0 %v598
        %v831 = vpop.f32.mrb[0].mxu0
        %v832 = vadd.f32 %v751, %v831
        %v833 = vpop.f32.mrb[0].mxu0
        %v834 = vadd.f32 %v751, %v833
        %835 = vmatprep.mubr.f32.mxu0 %v763
        %836 = vmatmul.mubr.f32.gmra.mrb[0].mxu0 %v600
        %v837 = vpop.f32.mrb[0].mxu0
        %v838 = vadd.f32 %v756, %v837
        %v839 = vpop.f32.mrb[0].mxu0
        %v840 = vadd.f32 %v756, %v839
        %841 = vdwg.mxu0
        %842 = vmatprep.subr.mxu0 %v605
        %843 = vmatpush1.msra.mxu0 %v604
        %844 = vmatprep.subr.mxu0 %v613
        %845 = vmatpush1.msra.mxu0 %v612
        %846 = vmatprep.subr.mxu0 %v621
        %847 = vmatpush1.msra.mxu0 %v620
        %848 = vmatprep.subr.mxu0 %v629
        %849 = vmatpush1.msra.mxu0 %v628
        %850 = vmatprep.subr.mxu0 %v637
        %851 = vmatpush1.msra.mxu0 %v636
        %852 = vmatprep.subr.mxu0 %v645
        %853 = vmatpush1.msra.mxu0 %v644
        %854 = vmatprep.subr.mxu0 %v653
        %855 = vmatpush1.msra.mxu0 %v652
        %856 = vmatprep.subr.mxu0 %v661
        %857 = vmatpush1.msra.mxu0 %v660
        %858 = vmatprep.subr.mxu0 %v669
        %859 = vmatpush1.msra.mxu0 %v668
        %860 = vmatprep.subr.mxu0 %v677
        %861 = vmatpush1.msra.mxu0 %v676
        %862 = vmatprep.subr.mxu0 %v685
        %863 = vmatpush1.msra.mxu0 %v684
        %864 = vmatprep.subr.mxu0 %v693
        %865 = vmatpush1.msra.mxu0 %v692
        %866 = vmatprep.subr.mxu0 %v701
        %867 = vmatpush1.msra.mxu0 %v700
        %868 = vmatprep.subr.mxu0 %v709
        %869 = vmatpush1.msra.mxu0 %v708
        %870 = vmatprep.subr.mxu0 %v717
        %871 = vmatpush1.msra.mxu0 %v716
        %872 = vmatprep.subr.mxu0 %v725
        %873 = vmatpush1.msra.mxu0 %v724
        %874 = vmatprep.subr.mxu0 %v733
        %875 = vmatpush1.msra.mxu0 %v732
        %876 = vmatprep.subr.mxu0 %v741
        %877 = vmatpush1.msra.mxu0 %v740
        %878 = vmatprep.subr.mxu0 0.0
        %879 = vmatpush1.msra.mxu0 0.0
        %880 = vmatprep.subr.mxu0 0.0
        %881 = vmatpush1.msra.mxu0 0.0
        %882 = vmatprep.subr.mxu0 0.0
        %883 = vmatpush1.msra.mxu0 0.0
        %884 = vmatprep.subr.mxu0 0.0
        %885 = vmatpush1.msra.mxu0 0.0
        %886 = vmatprep.subr.mxu0 0.0
        %887 = vmatpush1.msra.mxu0 0.0
        %888 = vmatprep.subr.mxu0 0.0
        %889 = vmatpush1.msra.mxu0 0.0
        %890 = vmatprep.subr.mxu0 0.0
        %891 = vmatpush1.msra.mxu0 0.0
        %892 = vmatprep.subr.mxu0 0.0
        %893 = vmatpush1.msra.mxu0 0.0
        %894 = vmatprep.subr.mxu0 0.0
        %895 = vmatpush1.msra.mxu0 0.0
        %896 = vmatprep.subr.mxu0 0.0
        %897 = vmatpush1.msra.mxu0 0.0
        %898 = vmatprep.subr.mxu0 0.0
        %899 = vmatpush1.msra.mxu0 0.0
        %900 = vmatprep.subr.mxu0 0.0
        %901 = vmatpush1.msra.mxu0 0.0
        %902 = vmatprep.subr.mxu0 0.0
        %903 = vmatpush1.msra.mxu0 0.0
        %904 = vmatprep.subr.mxu0 0.0
        %905 = vmatpush1.msra.mxu0 0.0
        %906 = vmatprep.mubr.f32.mxu0 %v760
        %907 = vmatmul.mubr.f32.gmra.mrb[0].mxu0 %v598
        %v908 = vpop.f32.mrb[0].mxu0
        %v909 = vadd.f32 %v751, %v908
        %v910 = vpop.f32.mrb[0].mxu0
        %v911 = vadd.f32 %v751, %v910
        %912 = vmatprep.mubr.f32.mxu0 %v763
        %913 = vmatmul.mubr.f32.gmra.mrb[0].mxu0 %v600
        %v914 = vpop.f32.mrb[0].mxu0
        %v915 = vadd.f32 %v756, %v914
        %v916 = vpop.f32.mrb[0].mxu0
        %v917 = vadd.f32 %v756, %v916
        %918 = vdwg.mxu0
        %919 = vmatprep.subr.mxu0 %v607
        %920 = vmatpush1.msra.mxu0 %v606
        %921 = vmatprep.subr.mxu0 %v615
        %922 = vmatpush1.msra.mxu0 %v614
        %923 = vmatprep.subr.mxu0 %v623
        %924 = vmatpush1.msra.mxu0 %v622
        %925 = vmatprep.subr.mxu0 %v631
        %926 = vmatpush1.msra.mxu0 %v630
        %927 = vmatprep.subr.mxu0 %v639
        %928 = vmatpush1.msra.mxu0 %v638
        %929 = vmatprep.subr.mxu0 %v647
        %930 = vmatpush1.msra.mxu0 %v646
        %931 = vmatprep.subr.mxu0 %v655
        %932 = vmatpush1.msra.mxu0 %v654
        %933 = vmatprep.subr.mxu0 %v663
        %934 = vmatpush1.msra.mxu0 %v662
        %935 = vmatprep.subr.mxu0 %v671
        %936 = vmatpush1.msra.mxu0 %v670
        %937 = vmatprep.subr.mxu0 %v679
        %938 = vmatpush1.msra.mxu0 %v678
        %939 = vmatprep.subr.mxu0 %v687
        %940 = vmatpush1.msra.mxu0 %v686
        %941 = vmatprep.subr.mxu0 %v695
        %942 = vmatpush1.msra.mxu0 %v694
        %943 = vmatprep.subr.mxu0 %v703
        %944 = vmatpush1.msra.mxu0 %v702
        %945 = vmatprep.subr.mxu0 %v711
        %946 = vmatpush1.msra.mxu0 %v710
        %947 = vmatprep.subr.mxu0 %v719
        %948 = vmatpush1.msra.mxu0 %v718
        %949 = vmatprep.subr.mxu0 %v727
        %950 = vmatpush1.msra.mxu0 %v726
        %951 = vmatprep.subr.mxu0 %v735
        %952 = vmatpush1.msra.mxu0 %v734
        %953 = vmatprep.subr.mxu0 %v743
        %954 = vmatpush1.msra.mxu0 %v742
        %955 = vmatprep.subr.mxu0 0.0
        %956 = vmatpush1.msra.mxu0 0.0
        %957 = vmatprep.subr.mxu0 0.0
        %958 = vmatpush1.msra.mxu0 0.0
        %959 = vmatprep.subr.mxu0 0.0
        %960 = vmatpush1.msra.mxu0 0.0
        %961 = vmatprep.subr.mxu0 0.0
        %962 = vmatpush1.msra.mxu0 0.0
        %963 = vmatprep.subr.mxu0 0.0
        %964 = vmatpush1.msra.mxu0 0.0
        %965 = vmatprep.subr.mxu0 0.0
        %966 = vmatpush1.msra.mxu0 0.0
        %967 = vmatprep.subr.mxu0 0.0
        %968 = vmatpush1.msra.mxu0 0.0
        %969 = vmatprep.subr.mxu0 0.0
        %970 = vmatpush1.msra.mxu0 0.0
        %971 = vmatprep.subr.mxu0 0.0
        %972 = vmatpush1.msra.mxu0 0.0
        %973 = vmatprep.subr.mxu0 0.0
        %974 = vmatpush1.msra.mxu0 0.0
        %975 = vmatprep.subr.mxu0 0.0
        %976 = vmatpush1.msra.mxu0 0.0
        %977 = vmatprep.subr.mxu0 0.0
        %978 = vmatpush1.msra.mxu0 0.0
        %979 = vmatprep.subr.mxu0 0.0
        %980 = vmatpush1.msra.mxu0 0.0
        %981 = vmatprep.subr.mxu0 0.0
        %982 = vmatpush1.msra.mxu0 0.0
        %983 = vmatprep.mubr.f32.mxu0 %v760
        %984 = vmatmul.mubr.f32.gmra.mrb[0].mxu0 %v598
        %v985 = vpop.f32.mrb[0].mxu0
        %v986 = vadd.f32 %v751, %v985
        %v987 = vpop.f32.mrb[0].mxu0
        %v988 = vadd.f32 %v751, %v987
        %989 = vmatprep.mubr.f32.mxu0 %v763
        %990 = vmatmul.mubr.f32.gmra.mrb[0].mxu0 %v600
        %v991 = vpop.f32.mrb[0].mxu0
        %v992 = vadd.f32 %v756, %v991
        %v993 = vpop.f32.mrb[0].mxu0
        %v994 = vadd.f32 %v756, %v993
        %995 = vdwg.mxu0
        %996 = vmatprep.subr.mxu0 %v609
        %997 = vmatpush1.msra.mxu0 %v608
        %998 = vmatprep.subr.mxu0 %v617
        %999 = vmatpush1.msra.mxu0 %v616
        %1000 = vmatprep.subr.mxu0 %v625
        %1001 = vmatpush1.msra.mxu0 %v624
        %1002 = vmatprep.subr.mxu0 %v633
        %1003 = vmatpush1.msra.mxu0 %v632
        %1004 = vmatprep.subr.mxu0 %v641
        %1005 = vmatpush1.msra.mxu0 %v640
        %1006 = vmatprep.subr.mxu0 %v649
        %1007 = vmatpush1.msra.mxu0 %v648
        %1008 = vmatprep.subr.mxu0 %v657
        %1009 = vmatpush1.msra.mxu0 %v656
        %1010 = vmatprep.subr.mxu0 %v665
        %1011 = vmatpush1.msra.mxu0 %v664
        %1012 = vmatprep.subr.mxu0 %v673
        %1013 = vmatpush1.msra.mxu0 %v672
        %1014 = vmatprep.subr.mxu0 %v681
        %1015 = vmatpush1.msra.mxu0 %v680
        %1016 = vmatprep.subr.mxu0 %v689
        %1017 = vmatpush1.msra.mxu0 %v688
        %1018 = vmatprep.subr.mxu0 %v697
        %1019 = vmatpush1.msra.mxu0 %v696
        %1020 = vmatprep.subr.mxu0 %v705
        %1021 = vmatpush1.msra.mxu0 %v704
        %1022 = vmatprep.subr.mxu0 %v713
        %1023 = vmatpush1.msra.mxu0 %v712
        %1024 = vmatprep.subr.mxu0 %v721
        %1025 = vmatpush1.msra.mxu0 %v720
        %1026 = vmatprep.subr.mxu0 %v729
        %1027 = vmatpush1.msra.mxu0 %v728
        %1028 = vmatprep.subr.mxu0 %v737
        %1029 = vmatpush1.msra.mxu0 %v736
        %1030 = vmatprep.subr.mxu0 %v745
        %1031 = vmatpush1.msra.mxu0 %v744
        %1032 = vmatprep.subr.mxu0 0.0
        %1033 = vmatpush1.msra.mxu0 0.0
        %1034 = vmatprep.subr.mxu0 0.0
        %1035 = vmatpush1.msra.mxu0 0.0
        %1036 = vmatprep.subr.mxu0 0.0
        %1037 = vmatpush1.msra.mxu0 0.0
        %1038 = vmatprep.subr.mxu0 0.0
        %1039 = vmatpush1.msra.mxu0 0.0
        %1040 = vmatprep.subr.mxu0 0.0
        %1041 = vmatpush1.msra.mxu0 0.0
        %1042 = vmatprep.subr.mxu0 0.0
        %1043 = vmatpush1.msra.mxu0 0.0
        %1044 = vmatprep.subr.mxu0 0.0
        %1045 = vmatpush1.msra.mxu0 0.0
        %1046 = vmatprep.subr.mxu0 0.0
        %1047 = vmatpush1.msra.mxu0 0.0
        %1048 = vmatprep.subr.mxu0 0.0
        %1049 = vmatpush1.msra.mxu0 0.0
        %1050 = vmatprep.subr.mxu0 0.0
        %1051 = vmatpush1.msra.mxu0 0.0
        %1052 = vmatprep.subr.mxu0 0.0
        %1053 = vmatpush1.msra.mxu0 0.0
        %1054 = vmatprep.subr.mxu0 0.0
        %1055 = vmatpush1.msra.mxu0 0.0
        %1056 = vmatprep.subr.mxu0 0.0
        %1057 = vmatpush1.msra.mxu0 0.0
        %1058 = vmatprep.subr.mxu0 0.0
        %1059 = vmatpush1.msra.mxu0 0.0
        %1060 = vmatprep.mubr.f32.mxu0 %v760
        %1061 = vmatmul.mubr.f32.gmra.mrb[0].mxu0 %v598
        %v1062 = vpop.f32.mrb[0].mxu0
        %v1063 = vadd.f32 %v751, %v1062
        %v1064 = vpop.f32.mrb[0].mxu0
        %v1065 = vadd.f32 %v751, %v1064
        %1066 = vmatprep.mubr.f32.mxu0 %v763
        %1067 = vmatmul.mubr.f32.gmra.mrb[0].mxu0 %v600
        %v1068 = vpop.f32.mrb[0].mxu0
        %v1069 = vadd.f32 %v756, %v1068
        %v1070 = vpop.f32.mrb[0].mxu0
        %v1071 = vadd.f32 %v756, %v1070
        %1072 = vdwg.mxu0
        %v1073 = vld [vmem:[%s567] sm:$0xff]
        %v1074 = vld [vmem:[%s567 + $0x8] sm:$0xff]
        %v1075 = vld [vmem:[%s567 + $0x10] sm:$0xff]
        %v1076 = vld [vmem:[%s567 + $0x18] sm:$0xff]
        %v1077 = vld [vmem:[%s567 + $0x20] sm:$0xff]
        %v1078 = vld [vmem:[%s567 + $0x28] sm:$0xff]
        %v1079 = vld [vmem:[%s567 + $0x30] sm:$0xff]
        %v1080 = vld [vmem:[%s567 + $0x38] sm:$0xff]
        %v1081 = vld [vmem:[%s567 + $0x40] sm:$0xff]
        %v1082 = vld [vmem:[%s567 + $0x48] sm:$0xff]
        %v1083 = vld [vmem:[%s567 + $0x50] sm:$0xff]
        %v1084 = vld [vmem:[%s567 + $0x58] sm:$0xff]
        %v1085 = vld [vmem:[%s567 + $0x60] sm:$0xff]
        %v1086 = vld [vmem:[%s567 + $0x68] sm:$0xff]
        %v1087 = vld [vmem:[%s567 + $0x70] sm:$0xff]
        %v1088 = vld [vmem:[%s567 + $0x78] sm:$0xff]
        %v1089 = vadd.f32 %v832, %v1073
        %v1090 = vadd.f32 %v834, %v1074
        %v1091 = vadd.f32 %v909, %v1075
        %v1092 = vadd.f32 %v911, %v1076
        %v1093 = vadd.f32 %v986, %v1077
        %v1094 = vadd.f32 %v988, %v1078
        %v1095 = vadd.f32 %v1063, %v1079
        %v1096 = vadd.f32 %v1065, %v1080
        %v1097 = vadd.f32 %v838, %v1081
        %v1098 = vadd.f32 %v840, %v1082
        %v1099 = vadd.f32 %v915, %v1083
        %v1100 = vadd.f32 %v917, %v1084
        %v1101 = vadd.f32 %v992, %v1085
        %v1102 = vadd.f32 %v994, %v1086
        %v1103 = vadd.f32 %v1069, %v1087
        %v1104 = vadd.f32 %v1071, %v1088
        %v1105 = vmax.f32 %v1089, 0.0
        %v1106 = vmax.f32 %v1090, 0.0
        %v1107 = vmax.f32 %v1091, 0.0
        %v1108 = vmax.f32 %v1092, 0.0
        %v1109 = vmax.f32 %v1093, 0.0
        %v1110 = vmax.f32 %v1094, 0.0
        %v1111 = vmax.f32 %v1095, 0.0
        %v1112 = vmax.f32 %v1096, 0.0
        %v1113 = vmax.f32 %v1097, 0.0
        %v1114 = vmax.f32 %v1098, 0.0
        %v1115 = vmax.f32 %v1099, 0.0
        %v1116 = vmax.f32 %v1100, 0.0
        %v1117 = vmax.f32 %v1101, 0.0
        %v1118 = vmax.f32 %v1102, 0.0
        %v1119 = vmax.f32 %v1103, 0.0
        %v1120 = vmax.f32 %v1104, 0.0
        %v1121 = vld [vmem:[%s4] sm:$0xff]
        %v1122 = vld [vmem:[%s4 + $0x8] sm:$0xff]
        %1124 = vset.pattern.permute.xlu0 0
        %1125 = vperm.xlu0 %1124, %v1121
        %v1126 = vpop.permute.xlu0 %1125
        %1129 = vset.pattern.permute.xlu0 0
        %1130 = vperm.xlu0 %1129, %v1122
        %v1131 = vpop.permute.xlu0 %1130
        %v1133 = vmul.f32 %v1105, %v1126
        %v1134 = vmul.f32 %v1106, %v1126
        %v1135 = vmul.f32 %v1107, %v1126
        %v1136 = vmul.f32 %v1108, %v1126
        %v1137 = vmul.f32 %v1109, %v1126
        %v1138 = vmul.f32 %v1110, %v1126
        %v1139 = vmul.f32 %v1111, %v1126
        %v1140 = vmul.f32 %v1112, %v1126
        %v1141 = vmul.f32 %v1113, %v1131
        %v1142 = vmul.f32 %v1114, %v1131
        %v1143 = vmul.f32 %v1115, %v1131
        %v1144 = vmul.f32 %v1116, %v1131
        %v1145 = vmul.f32 %v1117, %v1131
        %v1146 = vmul.f32 %v1118, %v1131
        %v1147 = vmul.f32 %v1119, %v1131
        %v1148 = vmul.f32 %v1120, %v1131
        %1149 = vst [vmem:[%s594] sm:$0xff] %v1133
        %1150 = vst [vmem:[%s594 + $0x8] sm:$0xff] %v1134
        %1151 = vst [vmem:[%s594 + $0x10] sm:$0xff] %v1135
        %1152 = vst [vmem:[%s594 + $0x18] sm:$0xff] %v1136
        %1153 = vst [vmem:[%s594 + $0x20] sm:$0xff] %v1137
        %1154 = vst [vmem:[%s594 + $0x28] sm:$0xff] %v1138
        %1155 = vst [vmem:[%s594 + $0x30] sm:$0xff] %v1139
        %1156 = vst [vmem:[%s594 + $0x38] sm:$0xff] %v1140
        %1157 = vst [vmem:[%s594 + $0x40] sm:$0xff] %v1141
        %1158 = vst [vmem:[%s594 + $0x48] sm:$0xff] %v1142
        %1159 = vst [vmem:[%s594 + $0x50] sm:$0xff] %v1143
        %1160 = vst [vmem:[%s594 + $0x58] sm:$0xff] %v1144
        %1161 = vst [vmem:[%s594 + $0x60] sm:$0xff] %v1145
        %1162 = vst [vmem:[%s594 + $0x68] sm:$0xff] %v1146
        %1163 = vst [vmem:[%s594 + $0x70] sm:$0xff] %v1147
        %1164 = vst [vmem:[%s594 + $0x78] sm:$0xff] %v1148
        %s1165 = sand.u32 %s139, 1
        %s1166 = sand.u32 %s139, 1
        %s1167 = smul.addr %s1166, 128
        %s1168 = scalar_lea.vmem [#allocation4], %s1167
        // Predicated region
        $region87: #{resnet_forward.9} parent=77 // pred_check
          %p1169 = pneg %p149
        $region88: #{resnet_forward.9} parent=77 // pred_check_branch
          %1171 = sbr.rel (%p1169) target = $region90
        $region89: #{resnet_forward.9} parent=77 // pred_region
          %s1172 = smul.u32 8, %s16
          %s1173 = smul.addr %s1172, 8
          %s1174 = scalar_lea.vmem %s5, %s1173
          // Predicated region
          $region91: #{resnet_forward.9} parent=89 // pred_check
            _
          $region92: #{resnet_forward.9} parent=89 // pred_check_branch
            %1176 = sbr.rel (0) target = $region94
          $region93: #{resnet_forward.9} parent=89 // pred_region
            // Predicated region
            $region95: #{resnet_forward.9} parent=93 // pred_check
              _
            $region96: #{resnet_forward.9} parent=93 // pred_check_branch
              %1178 = sbr.rel (0) target = $region98
            $region97: #{resnet_forward.9} parent=93 // pred_region
              loop: start=0, step=1, limit=1
              $region99: #{resnet_forward.9} parent=97 // loop_pre_header
                _
              $region100: #{resnet_forward.9} parent=97 // loop_header
                %s1180 = sphi 0, %s1184
                %p1181 = scmp.ge.s32.totalorder %s1180, 1
                %s1185 = sphi %s1168, %s1168
                %s1186 = sphi %s1174, %s1174
              $region101: #{resnet_forward.9} parent=97 // loop_header_branch
                %1183 = sbr.rel (%p1181) target = $region105
              $region102: #{resnet_forward.9} parent=97 // loop_body
                %v1187 = vld [vmem:[%s1185] sm:$0xff]
                %1188 = vst [vmem:[%s1186] sm:$0xff] %v1187
                %v1189 = vld [vmem:[%s1185 + $0x8] sm:$0xff]
                %1190 = vst [vmem:[%s1186 + $0x8] sm:$0xff] %v1189
                %v1191 = vld [vmem:[%s1185 + $0x10] sm:$0xff]
                %1192 = vst [vmem:[%s1186 + $0x10] sm:$0xff] %v1191
                %v1193 = vld [vmem:[%s1185 + $0x18] sm:$0xff]
                %1194 = vst [vmem:[%s1186 + $0x18] sm:$0xff] %v1193
                %v1195 = vld [vmem:[%s1185 + $0x20] sm:$0xff]
                %1196 = vst [vmem:[%s1186 + $0x20] sm:$0xff] %v1195
                %v1197 = vld [vmem:[%s1185 + $0x28] sm:$0xff]
                %1198 = vst [vmem:[%s1186 + $0x28] sm:$0xff] %v1197
                %v1199 = vld [vmem:[%s1185 + $0x30] sm:$0xff]
                %1200 = vst [vmem:[%s1186 + $0x30] sm:$0xff] %v1199
                %v1201 = vld [vmem:[%s1185 + $0x38] sm:$0xff]
                %1202 = vst [vmem:[%s1186 + $0x38] sm:$0xff] %v1201
                %v1203 = vld [vmem:[%s1185 + $0x40] sm:$0xff]
                %1204 = vst [vmem:[%s1186 + $0x80] sm:$0xff] %v1203
                %v1205 = vld [vmem:[%s1185 + $0x48] sm:$0xff]
                %1206 = vst [vmem:[%s1186 + $0x88] sm:$0xff] %v1205
                %v1207 = vld [vmem:[%s1185 + $0x50] sm:$0xff]
                %1208 = vst [vmem:[%s1186 + $0x90] sm:$0xff] %v1207
                %v1209 = vld [vmem:[%s1185 + $0x58] sm:$0xff]
                %1210 = vst [vmem:[%s1186 + $0x98] sm:$0xff] %v1209
                %v1211 = vld [vmem:[%s1185 + $0x60] sm:$0xff]
                %1212 = vst [vmem:[%s1186 + $0xa0] sm:$0xff] %v1211
                %v1213 = vld [vmem:[%s1185 + $0x68] sm:$0xff]
                %1214 = vst [vmem:[%s1186 + $0xa8] sm:$0xff] %v1213
                %v1215 = vld [vmem:[%s1185 + $0x70] sm:$0xff]
                %1216 = vst [vmem:[%s1186 + $0xb0] sm:$0xff] %v1215
                %v1217 = vld [vmem:[%s1185 + $0x78] sm:$0xff]
                %1218 = vst [vmem:[%s1186 + $0xb8] sm:$0xff] %v1217
              $region103: #{resnet_forward.9} parent=97 // loop_footer
                %s1184 = sadd.s32 1, %s1180
              $region104: #{resnet_forward.9} parent=97 // loop_footer_branch
                %1179 = sbr.rel target = $region100
              $region105: #{resnet_forward.9} parent=97 // loop_exit
                _
            $region98: #{resnet_forward.9} parent=93 // pred_fallthru
              _
            // Predicated region
            $region106: #{resnet_forward.9} parent=93 // pred_check
              _
            $region107: #{resnet_forward.9} parent=93 // pred_check_branch
              %1220 = sbr.rel target = $region109
            $region108: #{resnet_forward.9} parent=93 // pred_region
              _
            $region109: #{resnet_forward.9} parent=93 // pred_fallthru
              _
          $region94: #{resnet_forward.9} parent=89 // pred_fallthru
            _
          %1221 = vnop
        $region90: #{resnet_forward.9} parent=77 // pred_fallthru
          _
      $region78: #{resnet_forward.9} parent=5 // pred_fallthru
        _
      %p1222 = scmp.le.s32.totalorder 2, %s11
      // Predicated region
      $region110: #{resnet_forward.9} parent=5 // pred_check
        %p1223 = pneg %p1222
      $region111: #{resnet_forward.9} parent=5 // pred_check_branch
        %1225 = sbr.rel (%p1223) target = $region113
      $region112: #{resnet_forward.9} parent=5 // pred_region
        %s1226 = ssub.s32 %s11, 2
        // Predicated region
        $region114: #{resnet_forward.9} parent=112 // pred_check
          %p1227 = pneg %p155
        $region115: #{resnet_forward.9} parent=112 // pred_check_branch
          %1229 = sbr.rel (%p1227) target = $region117
        $region116: #{resnet_forward.9} parent=112 // pred_region
          %s1230 = sand.u32 %s140, 1
          %s1231 = sand.u32 %s140, 1
          %s1232 = smul.addr %s1231, 128
          %s1233 = scalar_lea.vmem [#allocation4], %s1232
        $region117: #{resnet_forward.9} parent=112 // pred_fallthru
          _
      $region113: #{resnet_forward.9} parent=5 // pred_fallthru
        _
    $region6: #{resnet_forward.9} parent=1 // loop_footer
      %s15 = sadd.s32 1, %s11
    $region7: #{resnet_forward.9} parent=1 // loop_footer_branch
      %10 = sbr.rel target = $region3
    $region8: #{resnet_forward.9} parent=1 // loop_exit
      _

// kernel: resnet_forward.10
$region0: #{resnet_forward.10}
  #allocation0 [shape = 'u32[]', space=smem, size = 0x4, offset = 0x4, fixed_abs, tag = 'smem constant byte address 0x4 - core index']
  #allocation1 [shape = 'u32[144,128]{1,0:T(1,128)}', space=vmem, size = 0x12000, scoped, tag = 'internal scratch']
  %s0 = inlined_call_operand.vmem [shape: f32[144,512], index: 0, kind: input, shape index: {}]
  %s1 = inlined_call_operand.vmem [shape: f32[32,144], index: 1, kind: input, shape index: {}]
  %s2 = inlined_call_operand.vmem [shape: f32[32,1], index: 2, kind: input, shape index: {}]
  %s3 = inlined_call_operand.vmem [shape: f32[32,512], index: 3, kind: output, shape index: {}]
  %s4 = sld [smem:[#allocation0]]
  $region22: #{resnet_forward.10} parent=0
    _
  %s6 = ssub.s32 1, %s4
  %s7 = scalar_select 0, %s6, %s4
  // Predicated region
  $region2: #{resnet_forward.10} parent=0 // pred_check
    _
  $region3: #{resnet_forward.10} parent=0 // pred_check_branch
    %9 = sbr.rel (0) target = $region5
  $region4: #{resnet_forward.10} parent=0 // pred_region
    _
  $region5: #{resnet_forward.10} parent=0 // pred_fallthru
    _
  // Predicated region
  $region6: #{resnet_forward.10} parent=0 // pred_check
    _
  $region7: #{resnet_forward.10} parent=0 // pred_check_branch
    %11 = sbr.rel (0) target = $region9
  $region8: #{resnet_forward.10} parent=0 // pred_region
    _
  $region9: #{resnet_forward.10} parent=0 // pred_fallthru
    _
  // Predicated region
  $region10: #{resnet_forward.10} parent=0 // pred_check
    _
  $region11: #{resnet_forward.10} parent=0 // pred_check_branch
    %13 = sbr.rel (0) target = $region13
  $region12: #{resnet_forward.10} parent=0 // pred_region
    _
  $region13: #{resnet_forward.10} parent=0 // pred_fallthru
    _
  %v14 = vld [vmem:[%s1] sm:$0xff]
  %v15 = vld [vmem:[%s1 + $0x8] sm:$0xff]
  %v16 = vld [vmem:[%s1 + $0x10] sm:$0xff]
  %v17 = vld [vmem:[%s1 + $0x18] sm:$0xff]
  %v18 = vld [vmem:[%s1 + $0x20] sm:$0xff]
  %v19 = vld [vmem:[%s1 + $0x28] sm:$0xff]
  %v20 = vld [vmem:[%s1 + $0x30] sm:$0xff]
  %v21 = vld [vmem:[%s1 + $0x38] sm:$0xff]
  %v22 = vld [vmem:[%s0] sm:$0xff]
  %v23 = vld [vmem:[%s0 + $0x8] sm:$0xff]
  %v24 = vld [vmem:[%s0 + $0x10] sm:$0xff]
  %v25 = vld [vmem:[%s0 + $0x18] sm:$0xff]
  %v26 = vld [vmem:[%s0 + $0x20] sm:$0xff]
  %v27 = vld [vmem:[%s0 + $0x28] sm:$0xff]
  %v28 = vld [vmem:[%s0 + $0x30] sm:$0xff]
  %v29 = vld [vmem:[%s0 + $0x38] sm:$0xff]
  %v30 = vld [vmem:[%s0 + $0x40] sm:$0xff]
  %v31 = vld [vmem:[%s0 + $0x48] sm:$0xff]
  %v32 = vld [vmem:[%s0 + $0x50] sm:$0xff]
  %v33 = vld [vmem:[%s0 + $0x58] sm:$0xff]
  %v34 = vld [vmem:[%s0 + $0x60] sm:$0xff]
  %v35 = vld [vmem:[%s0 + $0x68] sm:$0xff]
  %v36 = vld [vmem:[%s0 + $0x70] sm:$0xff]
  %v37 = vld [vmem:[%s0 + $0x78] sm:$0xff]
  %v38 = vld [vmem:[%s0 + $0x80] sm:$0xff]
  %v39 = vld [vmem:[%s0 + $0x88] sm:$0xff]
  %v40 = vld [vmem:[%s0 + $0x90] sm:$0xff]
  %v41 = vld [vmem:[%s0 + $0x98] sm:$0xff]
  %v42 = vld [vmem:[%s0 + $0xa0] sm:$0xff]
  %v43 = vld [vmem:[%s0 + $0xa8] sm:$0xff]
  %v44 = vld [vmem:[%s0 + $0xb0] sm:$0xff]
  %v45 = vld [vmem:[%s0 + $0xb8] sm:$0xff]
  %v46 = vld [vmem:[%s0 + $0xc0] sm:$0xff]
  %v47 = vld [vmem:[%s0 + $0xc8] sm:$0xff]
  %v48 = vld [vmem:[%s0 + $0xd0] sm:$0xff]
  %v49 = vld [vmem:[%s0 + $0xd8] sm:$0xff]
  %v50 = vld [vmem:[%s0 + $0xe0] sm:$0xff]
  %v51 = vld [vmem:[%s0 + $0xe8] sm:$0xff]
  %v52 = vld [vmem:[%s0 + $0xf0] sm:$0xff]
  %v53 = vld [vmem:[%s0 + $0xf8] sm:$0xff]
  %v54 = vld [vmem:[%s0 + $0x100] sm:$0xff]
  %v55 = vld [vmem:[%s0 + $0x108] sm:$0xff]
  %v56 = vld [vmem:[%s0 + $0x110] sm:$0xff]
  %v57 = vld [vmem:[%s0 + $0x118] sm:$0xff]
  %v58 = vld [vmem:[%s0 + $0x120] sm:$0xff]
  %v59 = vld [vmem:[%s0 + $0x128] sm:$0xff]
  %v60 = vld [vmem:[%s0 + $0x130] sm:$0xff]
  %v61 = vld [vmem:[%s0 + $0x138] sm:$0xff]
  %v62 = vld [vmem:[%s0 + $0x140] sm:$0xff]
  %v63 = vld [vmem:[%s0 + $0x148] sm:$0xff]
  %v64 = vld [vmem:[%s0 + $0x150] sm:$0xff]
  %v65 = vld [vmem:[%s0 + $0x158] sm:$0xff]
  %v66 = vld [vmem:[%s0 + $0x160] sm:$0xff]
  %v67 = vld [vmem:[%s0 + $0x168] sm:$0xff]
  %v68 = vld [vmem:[%s0 + $0x170] sm:$0xff]
  %v69 = vld [vmem:[%s0 + $0x178] sm:$0xff]
  %v70 = vld [vmem:[%s0 + $0x180] sm:$0xff]
  %v71 = vld [vmem:[%s0 + $0x188] sm:$0xff]
  %v72 = vld [vmem:[%s0 + $0x190] sm:$0xff]
  %v73 = vld [vmem:[%s0 + $0x198] sm:$0xff]
  %v74 = vld [vmem:[%s0 + $0x1a0] sm:$0xff]
  %v75 = vld [vmem:[%s0 + $0x1a8] sm:$0xff]
  %v76 = vld [vmem:[%s0 + $0x1b0] sm:$0xff]
  %v77 = vld [vmem:[%s0 + $0x1b8] sm:$0xff]
  %v78 = vld [vmem:[%s0 + $0x1c0] sm:$0xff]
  %v79 = vld [vmem:[%s0 + $0x1c8] sm:$0xff]
  %v80 = vld [vmem:[%s0 + $0x1d0] sm:$0xff]
  %v81 = vld [vmem:[%s0 + $0x1d8] sm:$0xff]
  %v82 = vld [vmem:[%s0 + $0x1e0] sm:$0xff]
  %v83 = vld [vmem:[%s0 + $0x1e8] sm:$0xff]
  %v84 = vld [vmem:[%s0 + $0x1f0] sm:$0xff]
  %v85 = vld [vmem:[%s0 + $0x1f8] sm:$0xff]
  %v86 = vld [vmem:[%s0 + $0x200] sm:$0xff]
  %v87 = vld [vmem:[%s0 + $0x208] sm:$0xff]
  %v88 = vld [vmem:[%s0 + $0x210] sm:$0xff]
  %v89 = vld [vmem:[%s0 + $0x218] sm:$0xff]
  %v90 = vld [vmem:[%s0 + $0x220] sm:$0xff]
  %v91 = vld [vmem:[%s0 + $0x228] sm:$0xff]
  %v92 = vld [vmem:[%s0 + $0x230] sm:$0xff]
  %v93 = vld [vmem:[%s0 + $0x238] sm:$0xff]
  %v94 = vld [vmem:[%s2] sm:$0xff]
  %v95 = vld [vmem:[%s2 + $0x8] sm:$0xff]
  %v96 = vld [vmem:[%s2 + $0x10] sm:$0xff]
  %v97 = vld [vmem:[%s2 + $0x18] sm:$0xff]
  %99 = vset.pattern.permute.xlu0 0
  %100 = vperm.xlu0 %99, %v94
  %v101 = vpop.permute.xlu0 %100
  %104 = vset.pattern.permute.xlu0 0
  %105 = vperm.xlu0 %104, %v95
  %v106 = vpop.permute.xlu0 %105
  %109 = vset.pattern.permute.xlu0 0
  %110 = vperm.xlu0 %109, %v96
  %v111 = vpop.permute.xlu0 %110
  %114 = vset.pattern.permute.xlu0 0
  %115 = vperm.xlu0 %114, %v97
  %v116 = vpop.permute.xlu0 %115
  %vm118 = vcmask 130048
  %v120 = vsel %vm118, %v15, 0
  %v123 = vsel %vm118, %v17, 0
  %v126 = vsel %vm118, %v19, 0
  %v129 = vsel %vm118, %v21, 0
  %131 = vmatprep.subr.mxu0 %v23
  %132 = vmatpush1.msra.mxu0 %v22
  %133 = vmatprep.subr.mxu0 %v27
  %134 = vmatpush1.msra.mxu0 %v26
  %135 = vmatprep.subr.mxu0 %v31
  %136 = vmatpush1.msra.mxu0 %v30
  %137 = vmatprep.subr.mxu0 %v35
  %138 = vmatpush1.msra.mxu0 %v34
  %139 = vmatprep.subr.mxu0 %v39
  %140 = vmatpush1.msra.mxu0 %v38
  %141 = vmatprep.subr.mxu0 %v43
  %142 = vmatpush1.msra.mxu0 %v42
  %143 = vmatprep.subr.mxu0 %v47
  %144 = vmatpush1.msra.mxu0 %v46
  %145 = vmatprep.subr.mxu0 %v51
  %146 = vmatpush1.msra.mxu0 %v50
  %147 = vmatprep.subr.mxu0 %v55
  %148 = vmatpush1.msra.mxu0 %v54
  %149 = vmatprep.subr.mxu0 %v59
  %150 = vmatpush1.msra.mxu0 %v58
  %151 = vmatprep.subr.mxu0 %v63
  %152 = vmatpush1.msra.mxu0 %v62
  %153 = vmatprep.subr.mxu0 %v67
  %154 = vmatpush1.msra.mxu0 %v66
  %155 = vmatprep.subr.mxu0 %v71
  %156 = vmatpush1.msra.mxu0 %v70
  %157 = vmatprep.subr.mxu0 %v75
  %158 = vmatpush1.msra.mxu0 %v74
  %159 = vmatprep.subr.mxu0 %v79
  %160 = vmatpush1.msra.mxu0 %v78
  %161 = vmatprep.subr.mxu0 %v83
  %162 = vmatpush1.msra.mxu0 %v82
  %163 = vmatprep.subr.mxu0 %v87
  %164 = vmatpush1.msra.mxu0 %v86
  %165 = vmatprep.subr.mxu0 %v91
  %166 = vmatpush1.msra.mxu0 %v90
  %167 = vmatprep.subr.mxu0 0.0
  %168 = vmatpush1.msra.mxu0 0.0
  %169 = vmatprep.subr.mxu0 0.0
  %170 = vmatpush1.msra.mxu0 0.0
  %171 = vmatprep.subr.mxu0 0.0
  %172 = vmatpush1.msra.mxu0 0.0
  %173 = vmatprep.subr.mxu0 0.0
  %174 = vmatpush1.msra.mxu0 0.0
  %175 = vmatprep.subr.mxu0 0.0
  %176 = vmatpush1.msra.mxu0 0.0
  %177 = vmatprep.subr.mxu0 0.0
  %178 = vmatpush1.msra.mxu0 0.0
  %179 = vmatprep.subr.mxu0 0.0
  %180 = vmatpush1.msra.mxu0 0.0
  %181 = vmatprep.subr.mxu0 0.0
  %182 = vmatpush1.msra.mxu0 0.0
  %183 = vmatprep.subr.mxu0 0.0
  %184 = vmatpush1.msra.mxu0 0.0
  %185 = vmatprep.subr.mxu0 0.0
  %186 = vmatpush1.msra.mxu0 0.0
  %187 = vmatprep.subr.mxu0 0.0
  %188 = vmatpush1.msra.mxu0 0.0
  %189 = vmatprep.subr.mxu0 0.0
  %190 = vmatpush1.msra.mxu0 0.0
  %191 = vmatprep.subr.mxu0 0.0
  %192 = vmatpush1.msra.mxu0 0.0
  %193 = vmatprep.subr.mxu0 0.0
  %194 = vmatpush1.msra.mxu0 0.0
  %195 = vmatprep.mubr.f32.mxu0 %v120
  %196 = vmatmul.mubr.f32.gmra.mrb[0].mxu0 %v14
  %v197 = vpop.f32.mrb[0].mxu0
  %v198 = vadd.f32 %v101, %v197
  %v199 = vpop.f32.mrb[0].mxu0
  %v200 = vadd.f32 %v101, %v199
  %201 = vmatprep.mubr.f32.mxu0 %v123
  %202 = vmatmul.mubr.f32.gmra.mrb[0].mxu0 %v16
  %v203 = vpop.f32.mrb[0].mxu0
  %v204 = vadd.f32 %v106, %v203
  %v205 = vpop.f32.mrb[0].mxu0
  %v206 = vadd.f32 %v106, %v205
  %207 = vmatprep.mubr.f32.mxu0 %v126
  %208 = vmatmul.mubr.f32.gmra.mrb[0].mxu0 %v18
  %v209 = vpop.f32.mrb[0].mxu0
  %v210 = vadd.f32 %v111, %v209
  %v211 = vpop.f32.mrb[0].mxu0
  %v212 = vadd.f32 %v111, %v211
  %213 = vmatprep.mubr.f32.mxu0 %v129
  %214 = vmatmul.mubr.f32.gmra.mrb[0].mxu0 %v20
  %v215 = vpop.f32.mrb[0].mxu0
  %v216 = vadd.f32 %v116, %v215
  %v217 = vpop.f32.mrb[0].mxu0
  %v218 = vadd.f32 %v116, %v217
  %219 = vdwg.mxu0
  %220 = vmatprep.subr.mxu0 %v25
  %221 = vmatpush1.msra.mxu0 %v24
  %222 = vmatprep.subr.mxu0 %v29
  %223 = vmatpush1.msra.mxu0 %v28
  %224 = vmatprep.subr.mxu0 %v33
  %225 = vmatpush1.msra.mxu0 %v32
  %226 = vmatprep.subr.mxu0 %v37
  %227 = vmatpush1.msra.mxu0 %v36
  %228 = vmatprep.subr.mxu0 %v41
  %229 = vmatpush1.msra.mxu0 %v40
  %230 = vmatprep.subr.mxu0 %v45
  %231 = vmatpush1.msra.mxu0 %v44
  %232 = vmatprep.subr.mxu0 %v49
  %233 = vmatpush1.msra.mxu0 %v48
  %234 = vmatprep.subr.mxu0 %v53
  %235 = vmatpush1.msra.mxu0 %v52
  %236 = vmatprep.subr.mxu0 %v57
  %237 = vmatpush1.msra.mxu0 %v56
  %238 = vmatprep.subr.mxu0 %v61
  %239 = vmatpush1.msra.mxu0 %v60
  %240 = vmatprep.subr.mxu0 %v65
  %241 = vmatpush1.msra.mxu0 %v64
  %242 = vmatprep.subr.mxu0 %v69
  %243 = vmatpush1.msra.mxu0 %v68
  %244 = vmatprep.subr.mxu0 %v73
  %245 = vmatpush1.msra.mxu0 %v72
  %246 = vmatprep.subr.mxu0 %v77
  %247 = vmatpush1.msra.mxu0 %v76
  %248 = vmatprep.subr.mxu0 %v81
  %249 = vmatpush1.msra.mxu0 %v80
  %250 = vmatprep.subr.mxu0 %v85
  %251 = vmatpush1.msra.mxu0 %v84
  %252 = vmatprep.subr.mxu0 %v89
  %253 = vmatpush1.msra.mxu0 %v88
  %254 = vmatprep.subr.mxu0 %v93
  %255 = vmatpush1.msra.mxu0 %v92
  %256 = vmatprep.subr.mxu0 0.0
  %257 = vmatpush1.msra.mxu0 0.0
  %258 = vmatprep.subr.mxu0 0.0
  %259 = vmatpush1.msra.mxu0 0.0
  %260 = vmatprep.subr.mxu0 0.0
  %261 = vmatpush1.msra.mxu0 0.0
  %262 = vmatprep.subr.mxu0 0.0
  %263 = vmatpush1.msra.mxu0 0.0
  %264 = vmatprep.subr.mxu0 0.0
  %265 = vmatpush1.msra.mxu0 0.0
  %266 = vmatprep.subr.mxu0 0.0
  %267 = vmatpush1.msra.mxu0 0.0
  %268 = vmatprep.subr.mxu0 0.0
  %269 = vmatpush1.msra.mxu0 0.0
  %270 = vmatprep.subr.mxu0 0.0
  %271 = vmatpush1.msra.mxu0 0.0
  %272 = vmatprep.subr.mxu0 0.0
  %273 = vmatpush1.msra.mxu0 0.0
  %274 = vmatprep.subr.mxu0 0.0
  %275 = vmatpush1.msra.mxu0 0.0
  %276 = vmatprep.subr.mxu0 0.0
  %277 = vmatpush1.msra.mxu0 0.0
  %278 = vmatprep.subr.mxu0 0.0
  %279 = vmatpush1.msra.mxu0 0.0
  %280 = vmatprep.subr.mxu0 0.0
  %281 = vmatpush1.msra.mxu0 0.0
  %282 = vmatprep.subr.mxu0 0.0
  %283 = vmatpush1.msra.mxu0 0.0
  %284 = vmatprep.mubr.f32.mxu0 %v120
  %285 = vmatmul.mubr.f32.gmra.mrb[0].mxu0 %v14
  %v286 = vpop.f32.mrb[0].mxu0
  %v287 = vadd.f32 %v101, %v286
  %v288 = vpop.f32.mrb[0].mxu0
  %v289 = vadd.f32 %v101, %v288
  %290 = vmatprep.mubr.f32.mxu0 %v123
  %291 = vmatmul.mubr.f32.gmra.mrb[0].mxu0 %v16
  %v292 = vpop.f32.mrb[0].mxu0
  %v293 = vadd.f32 %v106, %v292
  %v294 = vpop.f32.mrb[0].mxu0
  %v295 = vadd.f32 %v106, %v294
  %296 = vmatprep.mubr.f32.mxu0 %v126
  %297 = vmatmul.mubr.f32.gmra.mrb[0].mxu0 %v18
  %v298 = vpop.f32.mrb[0].mxu0
  %v299 = vadd.f32 %v111, %v298
  %v300 = vpop.f32.mrb[0].mxu0
  %v301 = vadd.f32 %v111, %v300
  %302 = vmatprep.mubr.f32.mxu0 %v129
  %303 = vmatmul.mubr.f32.gmra.mrb[0].mxu0 %v20
  %v304 = vpop.f32.mrb[0].mxu0
  %v305 = vadd.f32 %v116, %v304
  %v306 = vpop.f32.mrb[0].mxu0
  %v307 = vadd.f32 %v116, %v306
  %308 = vdwg.mxu0
  %v309 = vmax.f32 %v198, 0.0
  %v310 = vmax.f32 %v200, 0.0
  %v311 = vmax.f32 %v287, 0.0
  %v312 = vmax.f32 %v289, 0.0
  %v313 = vmax.f32 %v204, 0.0
  %v314 = vmax.f32 %v206, 0.0
  %v315 = vmax.f32 %v293, 0.0
  %v316 = vmax.f32 %v295, 0.0
  %v317 = vmax.f32 %v210, 0.0
  %v318 = vmax.f32 %v212, 0.0
  %v319 = vmax.f32 %v299, 0.0
  %v320 = vmax.f32 %v301, 0.0
  %v321 = vmax.f32 %v216, 0.0
  %v322 = vmax.f32 %v218, 0.0
  %v323 = vmax.f32 %v305, 0.0
  %v324 = vmax.f32 %v307, 0.0
  %325 = vst [vmem:[%s3] sm:$0xff] %v309
  %326 = vst [vmem:[%s3 + $0x8] sm:$0xff] %v310
  %327 = vst [vmem:[%s3 + $0x10] sm:$0xff] %v311
  %328 = vst [vmem:[%s3 + $0x18] sm:$0xff] %v312
  %329 = vst [vmem:[%s3 + $0x20] sm:$0xff] %v313
  %330 = vst [vmem:[%s3 + $0x28] sm:$0xff] %v314
  %331 = vst [vmem:[%s3 + $0x30] sm:$0xff] %v315
  %332 = vst [vmem:[%s3 + $0x38] sm:$0xff] %v316
  %333 = vst [vmem:[%s3 + $0x40] sm:$0xff] %v317
  %334 = vst [vmem:[%s3 + $0x48] sm:$0xff] %v318
  %335 = vst [vmem:[%s3 + $0x50] sm:$0xff] %v319
  %336 = vst [vmem:[%s3 + $0x58] sm:$0xff] %v320
  %337 = vst [vmem:[%s3 + $0x60] sm:$0xff] %v321
  %338 = vst [vmem:[%s3 + $0x68] sm:$0xff] %v322
  %339 = vst [vmem:[%s3 + $0x70] sm:$0xff] %v323
  %340 = vst [vmem:[%s3 + $0x78] sm:$0xff] %v324
  // Predicated region
  $region14: #{resnet_forward.10} parent=0 // pred_check
    _
  $region15: #{resnet_forward.10} parent=0 // pred_check_branch
    %342 = sbr.rel (0) target = $region17
  $region16: #{resnet_forward.10} parent=0 // pred_region
    _
  $region17: #{resnet_forward.10} parent=0 // pred_fallthru
    _
  // Predicated region
  $region18: #{resnet_forward.10} parent=0 // pred_check
    _
  $region19: #{resnet_forward.10} parent=0 // pred_check_branch
    %344 = sbr.rel (0) target = $region21
  $region20: #{resnet_forward.10} parent=0 // pred_region
    _
  $region21: #{resnet_forward.10} parent=0 // pred_fallthru
    _

// kernel: resnet_forward.11
$region0: #{resnet_forward.11}
  #allocation0 [shape = 'u32[]', space=smem, size = 0x4, offset = 0x4, fixed_abs, tag = 'smem constant byte address 0x4 - core index']
  #allocation1 [shape = 'u32[144,128]{1,0:T(1,128)}', space=vmem, size = 0x12000, scoped, tag = 'internal scratch']
  %s0 = inlined_call_operand.vmem [shape: f32[304,512], index: 0, kind: input, shape index: {}]
  %s1 = inlined_call_operand.vmem [shape: f32[32,304], index: 1, kind: input, shape index: {}]
  %s2 = inlined_call_operand.vmem [shape: f32[32,1], index: 2, kind: input, shape index: {}]
  %s3 = inlined_call_operand.vmem [shape: f32[32,512], index: 3, kind: output, shape index: {}]
  %s4 = sld [smem:[#allocation0]]
  $region22: #{resnet_forward.11} parent=0
    _
  %s6 = ssub.s32 1, %s4
  %s7 = scalar_select 0, %s6, %s4
  // Predicated region
  $region2: #{resnet_forward.11} parent=0 // pred_check
    _
  $region3: #{resnet_forward.11} parent=0 // pred_check_branch
    %9 = sbr.rel (0) target = $region5
  $region4: #{resnet_forward.11} parent=0 // pred_region
    _
  $region5: #{resnet_forward.11} parent=0 // pred_fallthru
    _
  // Predicated region
  $region6: #{resnet_forward.11} parent=0 // pred_check
    _
  $region7: #{resnet_forward.11} parent=0 // pred_check_branch
    %11 = sbr.rel (0) target = $region9
  $region8: #{resnet_forward.11} parent=0 // pred_region
    _
  $region9: #{resnet_forward.11} parent=0 // pred_fallthru
    _
  // Predicated region
  $region10: #{resnet_forward.11} parent=0 // pred_check
    _
  $region11: #{resnet_forward.11} parent=0 // pred_check_branch
    %13 = sbr.rel (0) target = $region13
  $region12: #{resnet_forward.11} parent=0 // pred_region
    _
  $region13: #{resnet_forward.11} parent=0 // pred_fallthru
    _
  %v14 = vld [vmem:[%s1] sm:$0xff]
  %v15 = vld [vmem:[%s1 + $0x8] sm:$0xff]
  %v16 = vld [vmem:[%s1 + $0x10] sm:$0xff]
  %v17 = vld [vmem:[%s1 + $0x18] sm:$0xff]
  %v18 = vld [vmem:[%s1 + $0x20] sm:$0xff]
  %v19 = vld [vmem:[%s1 + $0x28] sm:$0xff]
  %v20 = vld [vmem:[%s1 + $0x30] sm:$0xff]
  %v21 = vld [vmem:[%s1 + $0x38] sm:$0xff]
  %v22 = vld [vmem:[%s1 + $0x40] sm:$0xff]
  %v23 = vld [vmem:[%s1 + $0x48] sm:$0xff]
  %v24 = vld [vmem:[%s1 + $0x50] sm:$0xff]
  %v25 = vld [vmem:[%s1 + $0x58] sm:$0xff]
  %v26 = vld [vmem:[%s0] sm:$0xff]
  %v27 = vld [vmem:[%s0 + $0x8] sm:$0xff]
  %v28 = vld [vmem:[%s0 + $0x10] sm:$0xff]
  %v29 = vld [vmem:[%s0 + $0x18] sm:$0xff]
  %v30 = vld [vmem:[%s0 + $0x20] sm:$0xff]
  %v31 = vld [vmem:[%s0 + $0x28] sm:$0xff]
  %v32 = vld [vmem:[%s0 + $0x30] sm:$0xff]
  %v33 = vld [vmem:[%s0 + $0x38] sm:$0xff]
  %v34 = vld [vmem:[%s0 + $0x40] sm:$0xff]
  %v35 = vld [vmem:[%s0 + $0x48] sm:$0xff]
  %v36 = vld [vmem:[%s0 + $0x50] sm:$0xff]
  %v37 = vld [vmem:[%s0 + $0x58] sm:$0xff]
  %v38 = vld [vmem:[%s0 + $0x60] sm:$0xff]
  %v39 = vld [vmem:[%s0 + $0x68] sm:$0xff]
  %v40 = vld [vmem:[%s0 + $0x70] sm:$0xff]
  %v41 = vld [vmem:[%s0 + $0x78] sm:$0xff]
  %v42 = vld [vmem:[%s0 + $0x80] sm:$0xff]
  %v43 = vld [vmem:[%s0 + $0x88] sm:$0xff]
  %v44 = vld [vmem:[%s0 + $0x90] sm:$0xff]
  %v45 = vld [vmem:[%s0 + $0x98] sm:$0xff]
  %v46 = vld [vmem:[%s0 + $0xa0] sm:$0xff]
  %v47 = vld [vmem:[%s0 + $0xa8] sm:$0xff]
  %v48 = vld [vmem:[%s0 + $0xb0] sm:$0xff]
  %v49 = vld [vmem:[%s0 + $0xb8] sm:$0xff]
  %v50 = vld [vmem:[%s0 + $0xc0] sm:$0xff]
  %v51 = vld [vmem:[%s0 + $0xc8] sm:$0xff]
  %v52 = vld [vmem:[%s0 + $0xd0] sm:$0xff]
  %v53 = vld [vmem:[%s0 + $0xd8] sm:$0xff]
  %v54 = vld [vmem:[%s0 + $0xe0] sm:$0xff]
  %v55 = vld [vmem:[%s0 + $0xe8] sm:$0xff]
  %v56 = vld [vmem:[%s0 + $0xf0] sm:$0xff]
  %v57 = vld [vmem:[%s0 + $0xf8] sm:$0xff]
  %v58 = vld [vmem:[%s0 + $0x100] sm:$0xff]
  %v59 = vld [vmem:[%s0 + $0x108] sm:$0xff]
  %v60 = vld [vmem:[%s0 + $0x110] sm:$0xff]
  %v61 = vld [vmem:[%s0 + $0x118] sm:$0xff]
  %v62 = vld [vmem:[%s0 + $0x120] sm:$0xff]
  %v63 = vld [vmem:[%s0 + $0x128] sm:$0xff]
  %v64 = vld [vmem:[%s0 + $0x130] sm:$0xff]
  %v65 = vld [vmem:[%s0 + $0x138] sm:$0xff]
  %v66 = vld [vmem:[%s0 + $0x140] sm:$0xff]
  %v67 = vld [vmem:[%s0 + $0x148] sm:$0xff]
  %v68 = vld [vmem:[%s0 + $0x150] sm:$0xff]
  %v69 = vld [vmem:[%s0 + $0x158] sm:$0xff]
  %v70 = vld [vmem:[%s0 + $0x160] sm:$0xff]
  %v71 = vld [vmem:[%s0 + $0x168] sm:$0xff]
  %v72 = vld [vmem:[%s0 + $0x170] sm:$0xff]
  %v73 = vld [vmem:[%s0 + $0x178] sm:$0xff]
  %v74 = vld [vmem:[%s0 + $0x180] sm:$0xff]
  %v75 = vld [vmem:[%s0 + $0x188] sm:$0xff]
  %v76 = vld [vmem:[%s0 + $0x190] sm:$0xff]
  %v77 = vld [vmem:[%s0 + $0x198] sm:$0xff]
  %v78 = vld [vmem:[%s0 + $0x1a0] sm:$0xff]
  %v79 = vld [vmem:[%s0 + $0x1a8] sm:$0xff]
  %v80 = vld [vmem:[%s0 + $0x1b0] sm:$0xff]
  %v81 = vld [vmem:[%s0 + $0x1b8] sm:$0xff]
  %v82 = vld [vmem:[%s0 + $0x1c0] sm:$0xff]
  %v83 = vld [vmem:[%s0 + $0x1c8] sm:$0xff]
  %v84 = vld [vmem:[%s0 + $0x1d0] sm:$0xff]
  %v85 = vld [vmem:[%s0 + $0x1d8] sm:$0xff]
  %v86 = vld [vmem:[%s0 + $0x1e0] sm:$0xff]
  %v87 = vld [vmem:[%s0 + $0x1e8] sm:$0xff]
  %v88 = vld [vmem:[%s0 + $0x1f0] sm:$0xff]
  %v89 = vld [vmem:[%s0 + $0x1f8] sm:$0xff]
  %v90 = vld [vmem:[%s0 + $0x200] sm:$0xff]
  %v91 = vld [vmem:[%s0 + $0x208] sm:$0xff]
  %v92 = vld [vmem:[%s0 + $0x210] sm:$0xff]
  %v93 = vld [vmem:[%s0 + $0x218] sm:$0xff]
  %v94 = vld [vmem:[%s0 + $0x220] sm:$0xff]
  %v95 = vld [vmem:[%s0 + $0x228] sm:$0xff]
  %v96 = vld [vmem:[%s0 + $0x230] sm:$0xff]
  %v97 = vld [vmem:[%s0 + $0x238] sm:$0xff]
  %v98 = vld [vmem:[%s0 + $0x240] sm:$0xff]
  %v99 = vld [vmem:[%s0 + $0x248] sm:$0xff]
  %v100 = vld [vmem:[%s0 + $0x250] sm:$0xff]
  %v101 = vld [vmem:[%s0 + $0x258] sm:$0xff]
  %v102 = vld [vmem:[%s0 + $0x260] sm:$0xff]
  %v103 = vld [vmem:[%s0 + $0x268] sm:$0xff]
  %v104 = vld [vmem:[%s0 + $0x270] sm:$0xff]
  %v105 = vld [vmem:[%s0 + $0x278] sm:$0xff]
  %v106 = vld [vmem:[%s0 + $0x280] sm:$0xff]
  %v107 = vld [vmem:[%s0 + $0x288] sm:$0xff]
  %v108 = vld [vmem:[%s0 + $0x290] sm:$0xff]
  %v109 = vld [vmem:[%s0 + $0x298] sm:$0xff]
  %v110 = vld [vmem:[%s0 + $0x2a0] sm:$0xff]
  %v111 = vld [vmem:[%s0 + $0x2a8] sm:$0xff]
  %v112 = vld [vmem:[%s0 + $0x2b0] sm:$0xff]
  %v113 = vld [vmem:[%s0 + $0x2b8] sm:$0xff]
  %v114 = vld [vmem:[%s0 + $0x2c0] sm:$0xff]
  %v115 = vld [vmem:[%s0 + $0x2c8] sm:$0xff]
  %v116 = vld [vmem:[%s0 + $0x2d0] sm:$0xff]
  %v117 = vld [vmem:[%s0 + $0x2d8] sm:$0xff]
  %v118 = vld [vmem:[%s0 + $0x2e0] sm:$0xff]
  %v119 = vld [vmem:[%s0 + $0x2e8] sm:$0xff]
  %v120 = vld [vmem:[%s0 + $0x2f0] sm:$0xff]
  %v121 = vld [vmem:[%s0 + $0x2f8] sm:$0xff]
  %v122 = vld [vmem:[%s0 + $0x300] sm:$0xff]
  %v123 = vld [vmem:[%s0 + $0x308] sm:$0xff]
  %v124 = vld [vmem:[%s0 + $0x310] sm:$0xff]
  %v125 = vld [vmem:[%s0 + $0x318] sm:$0xff]
  %v126 = vld [vmem:[%s0 + $0x320] sm:$0xff]
  %v127 = vld [vmem:[%s0 + $0x328] sm:$0xff]
  %v128 = vld [vmem:[%s0 + $0x330] sm:$0xff]
  %v129 = vld [vmem:[%s0 + $0x338] sm:$0xff]
  %v130 = vld [vmem:[%s0 + $0x340] sm:$0xff]
  %v131 = vld [vmem:[%s0 + $0x348] sm:$0xff]
  %v132 = vld [vmem:[%s0 + $0x350] sm:$0xff]
  %v133 = vld [vmem:[%s0 + $0x358] sm:$0xff]
  %v134 = vld [vmem:[%s0 + $0x360] sm:$0xff]
  %v135 = vld [vmem:[%s0 + $0x368] sm:$0xff]
  %v136 = vld [vmem:[%s0 + $0x370] sm:$0xff]
  %v137 = vld [vmem:[%s0 + $0x378] sm:$0xff]
  %v138 = vld [vmem:[%s0 + $0x380] sm:$0xff]
  %v139 = vld [vmem:[%s0 + $0x388] sm:$0xff]
  %v140 = vld [vmem:[%s0 + $0x390] sm:$0xff]
  %v141 = vld [vmem:[%s0 + $0x398] sm:$0xff]
  %v142 = vld [vmem:[%s0 + $0x3a0] sm:$0xff]
  %v143 = vld [vmem:[%s0 + $0x3a8] sm:$0xff]
  %v144 = vld [vmem:[%s0 + $0x3b0] sm:$0xff]
  %v145 = vld [vmem:[%s0 + $0x3b8] sm:$0xff]
  %v146 = vld [vmem:[%s0 + $0x3c0] sm:$0xff]
  %v147 = vld [vmem:[%s0 + $0x3c8] sm:$0xff]
  %v148 = vld [vmem:[%s0 + $0x3d0] sm:$0xff]
  %v149 = vld [vmem:[%s0 + $0x3d8] sm:$0xff]
  %v150 = vld [vmem:[%s0 + $0x3e0] sm:$0xff]
  %v151 = vld [vmem:[%s0 + $0x3e8] sm:$0xff]
  %v152 = vld [vmem:[%s0 + $0x3f0] sm:$0xff]
  %v153 = vld [vmem:[%s0 + $0x3f8] sm:$0xff]
  %v154 = vld [vmem:[%s0 + $0x400] sm:$0xff]
  %v155 = vld [vmem:[%s0 + $0x408] sm:$0xff]
  %v156 = vld [vmem:[%s0 + $0x410] sm:$0xff]
  %v157 = vld [vmem:[%s0 + $0x418] sm:$0xff]
  %v158 = vld [vmem:[%s0 + $0x420] sm:$0xff]
  %v159 = vld [vmem:[%s0 + $0x428] sm:$0xff]
  %v160 = vld [vmem:[%s0 + $0x430] sm:$0xff]
  %v161 = vld [vmem:[%s0 + $0x438] sm:$0xff]
  %v162 = vld [vmem:[%s0 + $0x440] sm:$0xff]
  %v163 = vld [vmem:[%s0 + $0x448] sm:$0xff]
  %v164 = vld [vmem:[%s0 + $0x450] sm:$0xff]
  %v165 = vld [vmem:[%s0 + $0x458] sm:$0xff]
  %v166 = vld [vmem:[%s0 + $0x460] sm:$0xff]
  %v167 = vld [vmem:[%s0 + $0x468] sm:$0xff]
  %v168 = vld [vmem:[%s0 + $0x470] sm:$0xff]
  %v169 = vld [vmem:[%s0 + $0x478] sm:$0xff]
  %v170 = vld [vmem:[%s0 + $0x480] sm:$0xff]
  %v171 = vld [vmem:[%s0 + $0x488] sm:$0xff]
  %v172 = vld [vmem:[%s0 + $0x490] sm:$0xff]
  %v173 = vld [vmem:[%s0 + $0x498] sm:$0xff]
  %v174 = vld [vmem:[%s0 + $0x4a0] sm:$0xff]
  %v175 = vld [vmem:[%s0 + $0x4a8] sm:$0xff]
  %v176 = vld [vmem:[%s0 + $0x4b0] sm:$0xff]
  %v177 = vld [vmem:[%s0 + $0x4b8] sm:$0xff]
  %v178 = vld [vmem:[%s2] sm:$0xff]
  %v179 = vld [vmem:[%s2 + $0x8] sm:$0xff]
  %v180 = vld [vmem:[%s2 + $0x10] sm:$0xff]
  %v181 = vld [vmem:[%s2 + $0x18] sm:$0xff]
  %183 = vset.pattern.permute.xlu0 0
  %184 = vperm.xlu0 %183, %v178
  %v185 = vpop.permute.xlu0 %184
  %188 = vset.pattern.permute.xlu0 0
  %189 = vperm.xlu0 %188, %v179
  %v190 = vpop.permute.xlu0 %189
  %193 = vset.pattern.permute.xlu0 0
  %194 = vperm.xlu0 %193, %v180
  %v195 = vpop.permute.xlu0 %194
  %198 = vset.pattern.permute.xlu0 0
  %199 = vperm.xlu0 %198, %v181
  %v200 = vpop.permute.xlu0 %199
  %vm202 = vcmask 392192
  %v204 = vsel %vm202, %v16, 0
  %v207 = vsel %vm202, %v19, 0
  %v210 = vsel %vm202, %v22, 0
  %v213 = vsel %vm202, %v25, 0
  %215 = vmatprep.subr.mxu0 %v27
  %216 = vmatpush1.msra.mxu0 %v26
  %217 = vmatprep.subr.mxu0 %v31
  %218 = vmatpush1.msra.mxu0 %v30
  %219 = vmatprep.subr.mxu0 %v35
  %220 = vmatpush1.msra.mxu0 %v34
  %221 = vmatprep.subr.mxu0 %v39
  %222 = vmatpush1.msra.mxu0 %v38
  %223 = vmatprep.subr.mxu0 %v43
  %224 = vmatpush1.msra.mxu0 %v42
  %225 = vmatprep.subr.mxu0 %v47
  %226 = vmatpush1.msra.mxu0 %v46
  %227 = vmatprep.subr.mxu0 %v51
  %228 = vmatpush1.msra.mxu0 %v50
  %229 = vmatprep.subr.mxu0 %v55
  %230 = vmatpush1.msra.mxu0 %v54
  %231 = vmatprep.subr.mxu0 %v59
  %232 = vmatpush1.msra.mxu0 %v58
  %233 = vmatprep.subr.mxu0 %v63
  %234 = vmatpush1.msra.mxu0 %v62
  %235 = vmatprep.subr.mxu0 %v67
  %236 = vmatpush1.msra.mxu0 %v66
  %237 = vmatprep.subr.mxu0 %v71
  %238 = vmatpush1.msra.mxu0 %v70
  %239 = vmatprep.subr.mxu0 %v75
  %240 = vmatpush1.msra.mxu0 %v74
  %241 = vmatprep.subr.mxu0 %v79
  %242 = vmatpush1.msra.mxu0 %v78
  %243 = vmatprep.subr.mxu0 %v83
  %244 = vmatpush1.msra.mxu0 %v82
  %245 = vmatprep.subr.mxu0 %v87
  %246 = vmatpush1.msra.mxu0 %v86
  %247 = vmatprep.subr.mxu0 %v91
  %248 = vmatpush1.msra.mxu0 %v90
  %249 = vmatprep.subr.mxu0 %v95
  %250 = vmatpush1.msra.mxu0 %v94
  %251 = vmatprep.subr.mxu0 %v99
  %252 = vmatpush1.msra.mxu0 %v98
  %253 = vmatprep.subr.mxu0 %v103
  %254 = vmatpush1.msra.mxu0 %v102
  %255 = vmatprep.subr.mxu0 %v107
  %256 = vmatpush1.msra.mxu0 %v106
  %257 = vmatprep.subr.mxu0 %v111
  %258 = vmatpush1.msra.mxu0 %v110
  %259 = vmatprep.subr.mxu0 %v115
  %260 = vmatpush1.msra.mxu0 %v114
  %261 = vmatprep.subr.mxu0 %v119
  %262 = vmatpush1.msra.mxu0 %v118
  %263 = vmatprep.subr.mxu0 %v123
  %264 = vmatpush1.msra.mxu0 %v122
  %265 = vmatprep.subr.mxu0 %v127
  %266 = vmatpush1.msra.mxu0 %v126
  %267 = vmatprep.subr.mxu0 %v131
  %268 = vmatpush1.msra.mxu0 %v130
  %269 = vmatprep.subr.mxu0 %v135
  %270 = vmatpush1.msra.mxu0 %v134
  %271 = vmatprep.subr.mxu0 %v139
  %272 = vmatpush1.msra.mxu0 %v138
  %273 = vmatprep.subr.mxu0 %v143
  %274 = vmatpush1.msra.mxu0 %v142
  %275 = vmatprep.subr.mxu0 %v147
  %276 = vmatpush1.msra.mxu0 %v146
  %277 = vmatprep.subr.mxu0 %v151
  %278 = vmatpush1.msra.mxu0 %v150
  %279 = vmatprep.mubr.f32.mxu0 %v15
  %280 = vmatmul.mubr.f32.gmra.mrb[0].mxu0 %v14
  %v281 = vpop.f32.mrb[0].mxu0
  %v282 = vadd.f32 %v185, %v281
  %v283 = vpop.f32.mrb[0].mxu0
  %v284 = vadd.f32 %v185, %v283
  %285 = vmatprep.mubr.f32.mxu0 %v18
  %286 = vmatmul.mubr.f32.gmra.mrb[0].mxu0 %v17
  %v287 = vpop.f32.mrb[0].mxu0
  %v288 = vadd.f32 %v190, %v287
  %v289 = vpop.f32.mrb[0].mxu0
  %v290 = vadd.f32 %v190, %v289
  %291 = vmatprep.mubr.f32.mxu0 %v21
  %292 = vmatmul.mubr.f32.gmra.mrb[0].mxu0 %v20
  %v293 = vpop.f32.mrb[0].mxu0
  %v294 = vadd.f32 %v195, %v293
  %v295 = vpop.f32.mrb[0].mxu0
  %v296 = vadd.f32 %v195, %v295
  %297 = vmatprep.mubr.f32.mxu0 %v24
  %298 = vmatmul.mubr.f32.gmra.mrb[0].mxu0 %v23
  %v299 = vpop.f32.mrb[0].mxu0
  %v300 = vadd.f32 %v200, %v299
  %v301 = vpop.f32.mrb[0].mxu0
  %v302 = vadd.f32 %v200, %v301
  %303 = vdwg.mxu0
  %304 = vmatprep.subr.mxu0 %v155
  %305 = vmatpush1.msra.mxu0 %v154
  %306 = vmatprep.subr.mxu0 %v159
  %307 = vmatpush1.msra.mxu0 %v158
  %308 = vmatprep.subr.mxu0 %v163
  %309 = vmatpush1.msra.mxu0 %v162
  %310 = vmatprep.subr.mxu0 %v167
  %311 = vmatpush1.msra.mxu0 %v166
  %312 = vmatprep.subr.mxu0 %v171
  %313 = vmatpush1.msra.mxu0 %v170
  %314 = vmatprep.subr.mxu0 %v175
  %315 = vmatpush1.msra.mxu0 %v174
  %316 = vmatprep.subr.mxu0 0.0
  %317 = vmatpush1.msra.mxu0 0.0
  %318 = vmatprep.subr.mxu0 0.0
  %319 = vmatpush1.msra.mxu0 0.0
  %320 = vmatprep.subr.mxu0 0.0
  %321 = vmatpush1.msra.mxu0 0.0
  %322 = vmatprep.subr.mxu0 0.0
  %323 = vmatpush1.msra.mxu0 0.0
  %324 = vmatprep.subr.mxu0 0.0
  %325 = vmatpush1.msra.mxu0 0.0
  %326 = vmatprep.subr.mxu0 0.0
  %327 = vmatpush1.msra.mxu0 0.0
  %328 = vmatprep.subr.mxu0 0.0
  %329 = vmatpush1.msra.mxu0 0.0
  %330 = vmatprep.subr.mxu0 0.0
  %331 = vmatpush1.msra.mxu0 0.0
  %332 = vmatprep.subr.mxu0 0.0
  %333 = vmatpush1.msra.mxu0 0.0
  %334 = vmatprep.subr.mxu0 0.0
  %335 = vmatpush1.msra.mxu0 0.0
  %336 = vmatprep.subr.mxu0 0.0
  %337 = vmatpush1.msra.mxu0 0.0
  %338 = vmatprep.subr.mxu0 0.0
  %339 = vmatpush1.msra.mxu0 0.0
  %340 = vmatprep.subr.mxu0 0.0
  %341 = vmatpush1.msra.mxu0 0.0
  %342 = vmatprep.subr.mxu0 0.0
  %343 = vmatpush1.msra.mxu0 0.0
  %344 = vmatprep.subr.mxu0 0.0
  %345 = vmatpush1.msra.mxu0 0.0
  %346 = vmatprep.subr.mxu0 0.0
  %347 = vmatpush1.msra.mxu0 0.0
  %348 = vmatprep.subr.mxu0 0.0
  %349 = vmatpush1.msra.mxu0 0.0
  %350 = vmatprep.subr.mxu0 0.0
  %351 = vmatpush1.msra.mxu0 0.0
  %352 = vmatprep.subr.mxu0 0.0
  %353 = vmatpush1.msra.mxu0 0.0
  %354 = vmatprep.subr.mxu0 0.0
  %355 = vmatpush1.msra.mxu0 0.0
  %356 = vmatprep.subr.mxu0 0.0
  %357 = vmatpush1.msra.mxu0 0.0
  %358 = vmatprep.subr.mxu0 0.0
  %359 = vmatpush1.msra.mxu0 0.0
  %360 = vmatprep.subr.mxu0 0.0
  %361 = vmatpush1.msra.mxu0 0.0
  %362 = vmatprep.subr.mxu0 0.0
  %363 = vmatpush1.msra.mxu0 0.0
  %364 = vmatprep.subr.mxu0 0.0
  %365 = vmatpush1.msra.mxu0 0.0
  %366 = vmatprep.subr.mxu0 0.0
  %367 = vmatpush1.msra.mxu0 0.0
  %368 = vmatprep.mubr.f32.mxu0 0.0
  %369 = vmatmul.mubr.f32.gmra.mrb[0].mxu0 %v204
  %v370 = vpop.f32.mrb[0].mxu0
  %v371 = vadd.f32 %v282, %v370
  %v372 = vpop.f32.mrb[0].mxu0
  %v373 = vadd.f32 %v284, %v372
  %374 = vmatprep.mubr.f32.mxu0 0.0
  %375 = vmatmul.mubr.f32.gmra.mrb[0].mxu0 %v207
  %v376 = vpop.f32.mrb[0].mxu0
  %v377 = vadd.f32 %v288, %v376
  %v378 = vpop.f32.mrb[0].mxu0
  %v379 = vadd.f32 %v290, %v378
  %380 = vmatprep.mubr.f32.mxu0 0.0
  %381 = vmatmul.mubr.f32.gmra.mrb[0].mxu0 %v210
  %v382 = vpop.f32.mrb[0].mxu0
  %v383 = vadd.f32 %v294, %v382
  %v384 = vpop.f32.mrb[0].mxu0
  %v385 = vadd.f32 %v296, %v384
  %386 = vmatprep.mubr.f32.mxu0 0.0
  %387 = vmatmul.mubr.f32.gmra.mrb[0].mxu0 %v213
  %v388 = vpop.f32.mrb[0].mxu0
  %v389 = vadd.f32 %v300, %v388
  %v390 = vpop.f32.mrb[0].mxu0
  %v391 = vadd.f32 %v302, %v390
  %392 = vdwg.mxu0
  %393 = vmatprep.subr.mxu0 %v29
  %394 = vmatpush1.msra.mxu0 %v28
  %395 = vmatprep.subr.mxu0 %v33
  %396 = vmatpush1.msra.mxu0 %v32
  %397 = vmatprep.subr.mxu0 %v37
  %398 = vmatpush1.msra.mxu0 %v36
  %399 = vmatprep.subr.mxu0 %v41
  %400 = vmatpush1.msra.mxu0 %v40
  %401 = vmatprep.subr.mxu0 %v45
  %402 = vmatpush1.msra.mxu0 %v44
  %403 = vmatprep.subr.mxu0 %v49
  %404 = vmatpush1.msra.mxu0 %v48
  %405 = vmatprep.subr.mxu0 %v53
  %406 = vmatpush1.msra.mxu0 %v52
  %407 = vmatprep.subr.mxu0 %v57
  %408 = vmatpush1.msra.mxu0 %v56
  %409 = vmatprep.subr.mxu0 %v61
  %410 = vmatpush1.msra.mxu0 %v60
  %411 = vmatprep.subr.mxu0 %v65
  %412 = vmatpush1.msra.mxu0 %v64
  %413 = vmatprep.subr.mxu0 %v69
  %414 = vmatpush1.msra.mxu0 %v68
  %415 = vmatprep.subr.mxu0 %v73
  %416 = vmatpush1.msra.mxu0 %v72
  %417 = vmatprep.subr.mxu0 %v77
  %418 = vmatpush1.msra.mxu0 %v76
  %419 = vmatprep.subr.mxu0 %v81
  %420 = vmatpush1.msra.mxu0 %v80
  %421 = vmatprep.subr.mxu0 %v85
  %422 = vmatpush1.msra.mxu0 %v84
  %423 = vmatprep.subr.mxu0 %v89
  %424 = vmatpush1.msra.mxu0 %v88
  %425 = vmatprep.subr.mxu0 %v93
  %426 = vmatpush1.msra.mxu0 %v92
  %427 = vmatprep.subr.mxu0 %v97
  %428 = vmatpush1.msra.mxu0 %v96
  %429 = vmatprep.subr.mxu0 %v101
  %430 = vmatpush1.msra.mxu0 %v100
  %431 = vmatprep.subr.mxu0 %v105
  %432 = vmatpush1.msra.mxu0 %v104
  %433 = vmatprep.subr.mxu0 %v109
  %434 = vmatpush1.msra.mxu0 %v108
  %435 = vmatprep.subr.mxu0 %v113
  %436 = vmatpush1.msra.mxu0 %v112
  %437 = vmatprep.subr.mxu0 %v117
  %438 = vmatpush1.msra.mxu0 %v116
  %439 = vmatprep.subr.mxu0 %v121
  %440 = vmatpush1.msra.mxu0 %v120
  %441 = vmatprep.subr.mxu0 %v125
  %442 = vmatpush1.msra.mxu0 %v124
  %443 = vmatprep.subr.mxu0 %v129
  %444 = vmatpush1.msra.mxu0 %v128
  %445 = vmatprep.subr.mxu0 %v133
  %446 = vmatpush1.msra.mxu0 %v132
  %447 = vmatprep.subr.mxu0 %v137
  %448 = vmatpush1.msra.mxu0 %v136
  %449 = vmatprep.subr.mxu0 %v141
  %450 = vmatpush1.msra.mxu0 %v140
  %451 = vmatprep.subr.mxu0 %v145
  %452 = vmatpush1.msra.mxu0 %v144
  %453 = vmatprep.subr.mxu0 %v149
  %454 = vmatpush1.msra.mxu0 %v148
  %455 = vmatprep.subr.mxu0 %v153
  %456 = vmatpush1.msra.mxu0 %v152
  %457 = vmatprep.mubr.f32.mxu0 %v15
  %458 = vmatmul.mubr.f32.gmra.mrb[0].mxu0 %v14
  %v459 = vpop.f32.mrb[0].mxu0
  %v460 = vadd.f32 %v185, %v459
  %v461 = vpop.f32.mrb[0].mxu0
  %v462 = vadd.f32 %v185, %v461
  %463 = vmatprep.mubr.f32.mxu0 %v18
  %464 = vmatmul.mubr.f32.gmra.mrb[0].mxu0 %v17
  %v465 = vpop.f32.mrb[0].mxu0
  %v466 = vadd.f32 %v190, %v465
  %v467 = vpop.f32.mrb[0].mxu0
  %v468 = vadd.f32 %v190, %v467
  %469 = vmatprep.mubr.f32.mxu0 %v21
  %470 = vmatmul.mubr.f32.gmra.mrb[0].mxu0 %v20
  %v471 = vpop.f32.mrb[0].mxu0
  %v472 = vadd.f32 %v195, %v471
  %v473 = vpop.f32.mrb[0].mxu0
  %v474 = vadd.f32 %v195, %v473
  %475 = vmatprep.mubr.f32.mxu0 %v24
  %476 = vmatmul.mubr.f32.gmra.mrb[0].mxu0 %v23
  %v477 = vpop.f32.mrb[0].mxu0
  %v478 = vadd.f32 %v200, %v477
  %v479 = vpop.f32.mrb[0].mxu0
  %v480 = vadd.f32 %v200, %v479
  %481 = vdwg.mxu0
  %482 = vmatprep.subr.mxu0 %v157
  %483 = vmatpush1.msra.mxu0 %v156
  %484 = vmatprep.subr.mxu0 %v161
  %485 = vmatpush1.msra.mxu0 %v160
  %486 = vmatprep.subr.mxu0 %v165
  %487 = vmatpush1.msra.mxu0 %v164
  %488 = vmatprep.subr.mxu0 %v169
  %489 = vmatpush1.msra.mxu0 %v168
  %490 = vmatprep.subr.mxu0 %v173
  %491 = vmatpush1.msra.mxu0 %v172
  %492 = vmatprep.subr.mxu0 %v177
  %493 = vmatpush1.msra.mxu0 %v176
  %494 = vmatprep.subr.mxu0 0.0
  %495 = vmatpush1.msra.mxu0 0.0
  %496 = vmatprep.subr.mxu0 0.0
  %497 = vmatpush1.msra.mxu0 0.0
  %498 = vmatprep.subr.mxu0 0.0
  %499 = vmatpush1.msra.mxu0 0.0
  %500 = vmatprep.subr.mxu0 0.0
  %501 = vmatpush1.msra.mxu0 0.0
  %502 = vmatprep.subr.mxu0 0.0
  %503 = vmatpush1.msra.mxu0 0.0
  %504 = vmatprep.subr.mxu0 0.0
  %505 = vmatpush1.msra.mxu0 0.0
  %506 = vmatprep.subr.mxu0 0.0
  %507 = vmatpush1.msra.mxu0 0.0
  %508 = vmatprep.subr.mxu0 0.0
  %509 = vmatpush1.msra.mxu0 0.0
  %510 = vmatprep.subr.mxu0 0.0
  %511 = vmatpush1.msra.mxu0 0.0
  %512 = vmatprep.subr.mxu0 0.0
  %513 = vmatpush1.msra.mxu0 0.0
  %514 = vmatprep.subr.mxu0 0.0
  %515 = vmatpush1.msra.mxu0 0.0
  %516 = vmatprep.subr.mxu0 0.0
  %517 = vmatpush1.msra.mxu0 0.0
  %518 = vmatprep.subr.mxu0 0.0
  %519 = vmatpush1.msra.mxu0 0.0
  %520 = vmatprep.subr.mxu0 0.0
  %521 = vmatpush1.msra.mxu0 0.0
  %522 = vmatprep.subr.mxu0 0.0
  %523 = vmatpush1.msra.mxu0 0.0
  %524 = vmatprep.subr.mxu0 0.0
  %525 = vmatpush1.msra.mxu0 0.0
  %526 = vmatprep.subr.mxu0 0.0
  %527 = vmatpush1.msra.mxu0 0.0
  %528 = vmatprep.subr.mxu0 0.0
  %529 = vmatpush1.msra.mxu0 0.0
  %530 = vmatprep.subr.mxu0 0.0
  %531 = vmatpush1.msra.mxu0 0.0
  %532 = vmatprep.subr.mxu0 0.0
  %533 = vmatpush1.msra.mxu0 0.0
  %534 = vmatprep.subr.mxu0 0.0
  %535 = vmatpush1.msra.mxu0 0.0
  %536 = vmatprep.subr.mxu0 0.0
  %537 = vmatpush1.msra.mxu0 0.0
  %538 = vmatprep.subr.mxu0 0.0
  %539 = vmatpush1.msra.mxu0 0.0
  %540 = vmatprep.subr.mxu0 0.0
  %541 = vmatpush1.msra.mxu0 0.0
  %542 = vmatprep.subr.mxu0 0.0
  %543 = vmatpush1.msra.mxu0 0.0
  %544 = vmatprep.subr.mxu0 0.0
  %545 = vmatpush1.msra.mxu0 0.0
  %546 = vmatprep.mubr.f32.mxu0 0.0
  %547 = vmatmul.mubr.f32.gmra.mrb[0].mxu0 %v204
  %v548 = vpop.f32.mrb[0].mxu0
  %v549 = vadd.f32 %v460, %v548
  %v550 = vpop.f32.mrb[0].mxu0
  %v551 = vadd.f32 %v462, %v550
  %552 = vmatprep.mubr.f32.mxu0 0.0
  %553 = vmatmul.mubr.f32.gmra.mrb[0].mxu0 %v207
  %v554 = vpop.f32.mrb[0].mxu0
  %v555 = vadd.f32 %v466, %v554
  %v556 = vpop.f32.mrb[0].mxu0
  %v557 = vadd.f32 %v468, %v556
  %558 = vmatprep.mubr.f32.mxu0 0.0
  %559 = vmatmul.mubr.f32.gmra.mrb[0].mxu0 %v210
  %v560 = vpop.f32.mrb[0].mxu0
  %v561 = vadd.f32 %v472, %v560
  %v562 = vpop.f32.mrb[0].mxu0
  %v563 = vadd.f32 %v474, %v562
  %564 = vmatprep.mubr.f32.mxu0 0.0
  %565 = vmatmul.mubr.f32.gmra.mrb[0].mxu0 %v213
  %v566 = vpop.f32.mrb[0].mxu0
  %v567 = vadd.f32 %v478, %v566
  %v568 = vpop.f32.mrb[0].mxu0
  %v569 = vadd.f32 %v480, %v568
  %570 = vdwg.mxu0
  %v571 = vmax.f32 %v371, 0.0
  %v572 = vmax.f32 %v373, 0.0
  %v573 = vmax.f32 %v549, 0.0
  %v574 = vmax.f32 %v551, 0.0
  %v575 = vmax.f32 %v377, 0.0
  %v576 = vmax.f32 %v379, 0.0
  %v577 = vmax.f32 %v555, 0.0
  %v578 = vmax.f32 %v557, 0.0
  %v579 = vmax.f32 %v383, 0.0
  %v580 = vmax.f32 %v385, 0.0
  %v581 = vmax.f32 %v561, 0.0
  %v582 = vmax.f32 %v563, 0.0
  %v583 = vmax.f32 %v389, 0.0
  %v584 = vmax.f32 %v391, 0.0
  %v585 = vmax.f32 %v567, 0.0
  %v586 = vmax.f32 %v569, 0.0
  %587 = vst [vmem:[%s3] sm:$0xff] %v571
  %588 = vst [vmem:[%s3 + $0x8] sm:$0xff] %v572
  %589 = vst [vmem:[%s3 + $0x10] sm:$0xff] %v573
  %590 = vst [vmem:[%s3 + $0x18] sm:$0xff] %v574
  %591 = vst [vmem:[%s3 + $0x20] sm:$0xff] %v575
  %592 = vst [vmem:[%s3 + $0x28] sm:$0xff] %v576
  %593 = vst [vmem:[%s3 + $0x30] sm:$0xff] %v577
  %594 = vst [vmem:[%s3 + $0x38] sm:$0xff] %v578
  %595 = vst [vmem:[%s3 + $0x40] sm:$0xff] %v579
  %596 = vst [vmem:[%s3 + $0x48] sm:$0xff] %v580
  %597 = vst [vmem:[%s3 + $0x50] sm:$0xff] %v581
  %598 = vst [vmem:[%s3 + $0x58] sm:$0xff] %v582
  %599 = vst [vmem:[%s3 + $0x60] sm:$0xff] %v583
  %600 = vst [vmem:[%s3 + $0x68] sm:$0xff] %v584
  %601 = vst [vmem:[%s3 + $0x70] sm:$0xff] %v585
  %602 = vst [vmem:[%s3 + $0x78] sm:$0xff] %v586
  // Predicated region
  $region14: #{resnet_forward.11} parent=0 // pred_check
    _
  $region15: #{resnet_forward.11} parent=0 // pred_check_branch
    %604 = sbr.rel (0) target = $region17
  $region16: #{resnet_forward.11} parent=0 // pred_region
    _
  $region17: #{resnet_forward.11} parent=0 // pred_fallthru
    _
  // Predicated region
  $region18: #{resnet_forward.11} parent=0 // pred_check
    _
  $region19: #{resnet_forward.11} parent=0 // pred_check_branch
    %606 = sbr.rel (0) target = $region21
  $region20: #{resnet_forward.11} parent=0 // pred_region
    _
  $region21: #{resnet_forward.11} parent=0 // pred_fallthru
    _

// kernel: resnet_forward.12
$region0: #{resnet_forward.12}
  #allocation0 [shape = 'u32[]', space=smem, size = 0x4, offset = 0x4, fixed_abs, tag = 'smem constant byte address 0x4 - core index']
  #allocation1 [shape = 'u32[144,128]{1,0:T(1,128)}', space=vmem, size = 0x12000, scoped, tag = 'internal scratch']
  %s0 = inlined_call_operand.vmem [shape: f32[288,128], index: 0, kind: input, shape index: {}]
  %s1 = inlined_call_operand.vmem [shape: f32[64,288], index: 1, kind: input, shape index: {}]
  %s2 = inlined_call_operand.vmem [shape: f32[64,1], index: 2, kind: input, shape index: {}]
  %s3 = inlined_call_operand.vmem [shape: f32[64,128], index: 3, kind: output, shape index: {}]
  %s4 = sld [smem:[#allocation0]]
  $region22: #{resnet_forward.12} parent=0
    _
  %s6 = ssub.s32 1, %s4
  %s7 = scalar_select 0, %s6, %s4
  // Predicated region
  $region2: #{resnet_forward.12} parent=0 // pred_check
    _
  $region3: #{resnet_forward.12} parent=0 // pred_check_branch
    %9 = sbr.rel (0) target = $region5
  $region4: #{resnet_forward.12} parent=0 // pred_region
    _
  $region5: #{resnet_forward.12} parent=0 // pred_fallthru
    _
  // Predicated region
  $region6: #{resnet_forward.12} parent=0 // pred_check
    _
  $region7: #{resnet_forward.12} parent=0 // pred_check_branch
    %11 = sbr.rel (0) target = $region9
  $region8: #{resnet_forward.12} parent=0 // pred_region
    _
  $region9: #{resnet_forward.12} parent=0 // pred_fallthru
    _
  // Predicated region
  $region10: #{resnet_forward.12} parent=0 // pred_check
    _
  $region11: #{resnet_forward.12} parent=0 // pred_check_branch
    %13 = sbr.rel (0) target = $region13
  $region12: #{resnet_forward.12} parent=0 // pred_region
    _
  $region13: #{resnet_forward.12} parent=0 // pred_fallthru
    _
  %v14 = vld [vmem:[%s1] sm:$0xff]
  %v15 = vld [vmem:[%s1 + $0x8] sm:$0xff]
  %v16 = vld [vmem:[%s1 + $0x10] sm:$0xff]
  %v17 = vld [vmem:[%s1 + $0x18] sm:$0xff]
  %v18 = vld [vmem:[%s1 + $0x20] sm:$0xff]
  %v19 = vld [vmem:[%s1 + $0x28] sm:$0xff]
  %v20 = vld [vmem:[%s1 + $0x30] sm:$0xff]
  %v21 = vld [vmem:[%s1 + $0x38] sm:$0xff]
  %v22 = vld [vmem:[%s1 + $0x40] sm:$0xff]
  %v23 = vld [vmem:[%s1 + $0x48] sm:$0xff]
  %v24 = vld [vmem:[%s1 + $0x50] sm:$0xff]
  %v25 = vld [vmem:[%s1 + $0x58] sm:$0xff]
  %v26 = vld [vmem:[%s1 + $0x60] sm:$0xff]
  %v27 = vld [vmem:[%s1 + $0x68] sm:$0xff]
  %v28 = vld [vmem:[%s1 + $0x70] sm:$0xff]
  %v29 = vld [vmem:[%s1 + $0x78] sm:$0xff]
  %v30 = vld [vmem:[%s1 + $0x80] sm:$0xff]
  %v31 = vld [vmem:[%s1 + $0x88] sm:$0xff]
  %v32 = vld [vmem:[%s1 + $0x90] sm:$0xff]
  %v33 = vld [vmem:[%s1 + $0x98] sm:$0xff]
  %v34 = vld [vmem:[%s1 + $0xa0] sm:$0xff]
  %v35 = vld [vmem:[%s1 + $0xa8] sm:$0xff]
  %v36 = vld [vmem:[%s1 + $0xb0] sm:$0xff]
  %v37 = vld [vmem:[%s1 + $0xb8] sm:$0xff]
  %v38 = vld [vmem:[%s0] sm:$0xff]
  %v39 = vld [vmem:[%s0 + $0x8] sm:$0xff]
  %v40 = vld [vmem:[%s0 + $0x10] sm:$0xff]
  %v41 = vld [vmem:[%s0 + $0x18] sm:$0xff]
  %v42 = vld [vmem:[%s0 + $0x20] sm:$0xff]
  %v43 = vld [vmem:[%s0 + $0x28] sm:$0xff]
  %v44 = vld [vmem:[%s0 + $0x30] sm:$0xff]
  %v45 = vld [vmem:[%s0 + $0x38] sm:$0xff]
  %v46 = vld [vmem:[%s0 + $0x40] sm:$0xff]
  %v47 = vld [vmem:[%s0 + $0x48] sm:$0xff]
  %v48 = vld [vmem:[%s0 + $0x50] sm:$0xff]
  %v49 = vld [vmem:[%s0 + $0x58] sm:$0xff]
  %v50 = vld [vmem:[%s0 + $0x60] sm:$0xff]
  %v51 = vld [vmem:[%s0 + $0x68] sm:$0xff]
  %v52 = vld [vmem:[%s0 + $0x70] sm:$0xff]
  %v53 = vld [vmem:[%s0 + $0x78] sm:$0xff]
  %v54 = vld [vmem:[%s0 + $0x80] sm:$0xff]
  %v55 = vld [vmem:[%s0 + $0x88] sm:$0xff]
  %v56 = vld [vmem:[%s0 + $0x90] sm:$0xff]
  %v57 = vld [vmem:[%s0 + $0x98] sm:$0xff]
  %v58 = vld [vmem:[%s0 + $0xa0] sm:$0xff]
  %v59 = vld [vmem:[%s0 + $0xa8] sm:$0xff]
  %v60 = vld [vmem:[%s0 + $0xb0] sm:$0xff]
  %v61 = vld [vmem:[%s0 + $0xb8] sm:$0xff]
  %v62 = vld [vmem:[%s0 + $0xc0] sm:$0xff]
  %v63 = vld [vmem:[%s0 + $0xc8] sm:$0xff]
  %v64 = vld [vmem:[%s0 + $0xd0] sm:$0xff]
  %v65 = vld [vmem:[%s0 + $0xd8] sm:$0xff]
  %v66 = vld [vmem:[%s0 + $0xe0] sm:$0xff]
  %v67 = vld [vmem:[%s0 + $0xe8] sm:$0xff]
  %v68 = vld [vmem:[%s0 + $0xf0] sm:$0xff]
  %v69 = vld [vmem:[%s0 + $0xf8] sm:$0xff]
  %v70 = vld [vmem:[%s0 + $0x100] sm:$0xff]
  %v71 = vld [vmem:[%s0 + $0x108] sm:$0xff]
  %v72 = vld [vmem:[%s0 + $0x110] sm:$0xff]
  %v73 = vld [vmem:[%s0 + $0x118] sm:$0xff]
  %v74 = vld [vmem:[%s2] sm:$0xff]
  %v75 = vld [vmem:[%s2 + $0x8] sm:$0xff]
  %v76 = vld [vmem:[%s2 + $0x10] sm:$0xff]
  %v77 = vld [vmem:[%s2 + $0x18] sm:$0xff]
  %v78 = vld [vmem:[%s2 + $0x20] sm:$0xff]
  %v79 = vld [vmem:[%s2 + $0x28] sm:$0xff]
  %v80 = vld [vmem:[%s2 + $0x30] sm:$0xff]
  %v81 = vld [vmem:[%s2 + $0x38] sm:$0xff]
  %83 = vset.pattern.permute.xlu0 0
  %84 = vperm.xlu0 %83, %v74
  %v85 = vpop.permute.xlu0 %84
  %88 = vset.pattern.permute.xlu0 0
  %89 = vperm.xlu0 %88, %v75
  %v90 = vpop.permute.xlu0 %89
  %93 = vset.pattern.permute.xlu0 0
  %94 = vperm.xlu0 %93, %v76
  %v95 = vpop.permute.xlu0 %94
  %98 = vset.pattern.permute.xlu0 0
  %99 = vperm.xlu0 %98, %v77
  %v100 = vpop.permute.xlu0 %99
  %103 = vset.pattern.permute.xlu0 0
  %104 = vperm.xlu0 %103, %v78
  %v105 = vpop.permute.xlu0 %104
  %108 = vset.pattern.permute.xlu0 0
  %109 = vperm.xlu0 %108, %v79
  %v110 = vpop.permute.xlu0 %109
  %113 = vset.pattern.permute.xlu0 0
  %114 = vperm.xlu0 %113, %v80
  %v115 = vpop.permute.xlu0 %114
  %118 = vset.pattern.permute.xlu0 0
  %119 = vperm.xlu0 %118, %v81
  %v120 = vpop.permute.xlu0 %119
  %vm122 = vcmask 261120
  %v124 = vsel %vm122, %v16, 0
  %v127 = vsel %vm122, %v19, 0
  %v130 = vsel %vm122, %v22, 0
  %v133 = vsel %vm122, %v25, 0
  %v136 = vsel %vm122, %v28, 0
  %v139 = vsel %vm122, %v31, 0
  %v142 = vsel %vm122, %v34, 0
  %v145 = vsel %vm122, %v37, 0
  %147 = vmatprep.subr.mxu0 0.0
  %148 = vmatpush1.msra.mxu0 %v38
  %149 = vmatprep.subr.mxu0 0.0
  %150 = vmatpush1.msra.mxu0 %v39
  %151 = vmatprep.subr.mxu0 0.0
  %152 = vmatpush1.msra.mxu0 %v40
  %153 = vmatprep.subr.mxu0 0.0
  %154 = vmatpush1.msra.mxu0 %v41
  %155 = vmatprep.subr.mxu0 0.0
  %156 = vmatpush1.msra.mxu0 %v42
  %157 = vmatprep.subr.mxu0 0.0
  %158 = vmatpush1.msra.mxu0 %v43
  %159 = vmatprep.subr.mxu0 0.0
  %160 = vmatpush1.msra.mxu0 %v44
  %161 = vmatprep.subr.mxu0 0.0
  %162 = vmatpush1.msra.mxu0 %v45
  %163 = vmatprep.subr.mxu0 0.0
  %164 = vmatpush1.msra.mxu0 %v46
  %165 = vmatprep.subr.mxu0 0.0
  %166 = vmatpush1.msra.mxu0 %v47
  %167 = vmatprep.subr.mxu0 0.0
  %168 = vmatpush1.msra.mxu0 %v48
  %169 = vmatprep.subr.mxu0 0.0
  %170 = vmatpush1.msra.mxu0 %v49
  %171 = vmatprep.subr.mxu0 0.0
  %172 = vmatpush1.msra.mxu0 %v50
  %173 = vmatprep.subr.mxu0 0.0
  %174 = vmatpush1.msra.mxu0 %v51
  %175 = vmatprep.subr.mxu0 0.0
  %176 = vmatpush1.msra.mxu0 %v52
  %177 = vmatprep.subr.mxu0 0.0
  %178 = vmatpush1.msra.mxu0 %v53
  %179 = vmatprep.subr.mxu0 0.0
  %180 = vmatpush1.msra.mxu0 %v54
  %181 = vmatprep.subr.mxu0 0.0
  %182 = vmatpush1.msra.mxu0 %v55
  %183 = vmatprep.subr.mxu0 0.0
  %184 = vmatpush1.msra.mxu0 %v56
  %185 = vmatprep.subr.mxu0 0.0
  %186 = vmatpush1.msra.mxu0 %v57
  %187 = vmatprep.subr.mxu0 0.0
  %188 = vmatpush1.msra.mxu0 %v58
  %189 = vmatprep.subr.mxu0 0.0
  %190 = vmatpush1.msra.mxu0 %v59
  %191 = vmatprep.subr.mxu0 0.0
  %192 = vmatpush1.msra.mxu0 %v60
  %193 = vmatprep.subr.mxu0 0.0
  %194 = vmatpush1.msra.mxu0 %v61
  %195 = vmatprep.subr.mxu0 0.0
  %196 = vmatpush1.msra.mxu0 %v62
  %197 = vmatprep.subr.mxu0 0.0
  %198 = vmatpush1.msra.mxu0 %v63
  %199 = vmatprep.subr.mxu0 0.0
  %200 = vmatpush1.msra.mxu0 %v64
  %201 = vmatprep.subr.mxu0 0.0
  %202 = vmatpush1.msra.mxu0 %v65
  %203 = vmatprep.subr.mxu0 0.0
  %204 = vmatpush1.msra.mxu0 %v66
  %205 = vmatprep.subr.mxu0 0.0
  %206 = vmatpush1.msra.mxu0 %v67
  %207 = vmatprep.subr.mxu0 0.0
  %208 = vmatpush1.msra.mxu0 %v68
  %209 = vmatprep.subr.mxu0 0.0
  %210 = vmatpush1.msra.mxu0 %v69
  %211 = vmatprep.mubr.f32.mxu0 %v15
  %212 = vmatmul.mubr.f32.gmra.mrb[0].mxu0 %v14
  %v213 = vpop.f32.mrb[0].mxu0
  %v214 = vadd.f32 %v85, %v213
  %v215 = vpop.f32.mrb[0].mxu0
  %216 = vmatprep.mubr.f32.mxu0 %v18
  %217 = vmatmul.mubr.f32.gmra.mrb[0].mxu0 %v17
  %v218 = vpop.f32.mrb[0].mxu0
  %v219 = vadd.f32 %v90, %v218
  %v220 = vpop.f32.mrb[0].mxu0
  %221 = vmatprep.mubr.f32.mxu0 %v21
  %222 = vmatmul.mubr.f32.gmra.mrb[0].mxu0 %v20
  %v223 = vpop.f32.mrb[0].mxu0
  %v224 = vadd.f32 %v95, %v223
  %v225 = vpop.f32.mrb[0].mxu0
  %226 = vmatprep.mubr.f32.mxu0 %v24
  %227 = vmatmul.mubr.f32.gmra.mrb[0].mxu0 %v23
  %v228 = vpop.f32.mrb[0].mxu0
  %v229 = vadd.f32 %v100, %v228
  %v230 = vpop.f32.mrb[0].mxu0
  %231 = vmatprep.mubr.f32.mxu0 %v27
  %232 = vmatmul.mubr.f32.gmra.mrb[0].mxu0 %v26
  %v233 = vpop.f32.mrb[0].mxu0
  %v234 = vadd.f32 %v105, %v233
  %v235 = vpop.f32.mrb[0].mxu0
  %236 = vmatprep.mubr.f32.mxu0 %v30
  %237 = vmatmul.mubr.f32.gmra.mrb[0].mxu0 %v29
  %v238 = vpop.f32.mrb[0].mxu0
  %v239 = vadd.f32 %v110, %v238
  %v240 = vpop.f32.mrb[0].mxu0
  %241 = vmatprep.mubr.f32.mxu0 %v33
  %242 = vmatmul.mubr.f32.gmra.mrb[0].mxu0 %v32
  %v243 = vpop.f32.mrb[0].mxu0
  %v244 = vadd.f32 %v115, %v243
  %v245 = vpop.f32.mrb[0].mxu0
  %246 = vmatprep.mubr.f32.mxu0 %v36
  %247 = vmatmul.mubr.f32.gmra.mrb[0].mxu0 %v35
  %v248 = vpop.f32.mrb[0].mxu0
  %v249 = vadd.f32 %v120, %v248
  %v250 = vpop.f32.mrb[0].mxu0
  %251 = vdwg.mxu0
  %252 = vmatprep.subr.mxu0 0.0
  %253 = vmatpush1.msra.mxu0 %v70
  %254 = vmatprep.subr.mxu0 0.0
  %255 = vmatpush1.msra.mxu0 %v71
  %256 = vmatprep.subr.mxu0 0.0
  %257 = vmatpush1.msra.mxu0 %v72
  %258 = vmatprep.subr.mxu0 0.0
  %259 = vmatpush1.msra.mxu0 %v73
  %260 = vmatprep.subr.mxu0 0.0
  %261 = vmatpush1.msra.mxu0 0.0
  %262 = vmatprep.subr.mxu0 0.0
  %263 = vmatpush1.msra.mxu0 0.0
  %264 = vmatprep.subr.mxu0 0.0
  %265 = vmatpush1.msra.mxu0 0.0
  %266 = vmatprep.subr.mxu0 0.0
  %267 = vmatpush1.msra.mxu0 0.0
  %268 = vmatprep.subr.mxu0 0.0
  %269 = vmatpush1.msra.mxu0 0.0
  %270 = vmatprep.subr.mxu0 0.0
  %271 = vmatpush1.msra.mxu0 0.0
  %272 = vmatprep.subr.mxu0 0.0
  %273 = vmatpush1.msra.mxu0 0.0
  %274 = vmatprep.subr.mxu0 0.0
  %275 = vmatpush1.msra.mxu0 0.0
  %276 = vmatprep.subr.mxu0 0.0
  %277 = vmatpush1.msra.mxu0 0.0
  %278 = vmatprep.subr.mxu0 0.0
  %279 = vmatpush1.msra.mxu0 0.0
  %280 = vmatprep.subr.mxu0 0.0
  %281 = vmatpush1.msra.mxu0 0.0
  %282 = vmatprep.subr.mxu0 0.0
  %283 = vmatpush1.msra.mxu0 0.0
  %284 = vmatprep.subr.mxu0 0.0
  %285 = vmatpush1.msra.mxu0 0.0
  %286 = vmatprep.subr.mxu0 0.0
  %287 = vmatpush1.msra.mxu0 0.0
  %288 = vmatprep.subr.mxu0 0.0
  %289 = vmatpush1.msra.mxu0 0.0
  %290 = vmatprep.subr.mxu0 0.0
  %291 = vmatpush1.msra.mxu0 0.0
  %292 = vmatprep.subr.mxu0 0.0
  %293 = vmatpush1.msra.mxu0 0.0
  %294 = vmatprep.subr.mxu0 0.0
  %295 = vmatpush1.msra.mxu0 0.0
  %296 = vmatprep.subr.mxu0 0.0
  %297 = vmatpush1.msra.mxu0 0.0
  %298 = vmatprep.subr.mxu0 0.0
  %299 = vmatpush1.msra.mxu0 0.0
  %300 = vmatprep.subr.mxu0 0.0
  %301 = vmatpush1.msra.mxu0 0.0
  %302 = vmatprep.subr.mxu0 0.0
  %303 = vmatpush1.msra.mxu0 0.0
  %304 = vmatprep.subr.mxu0 0.0
  %305 = vmatpush1.msra.mxu0 0.0
  %306 = vmatprep.subr.mxu0 0.0
  %307 = vmatpush1.msra.mxu0 0.0
  %308 = vmatprep.subr.mxu0 0.0
  %309 = vmatpush1.msra.mxu0 0.0
  %310 = vmatprep.subr.mxu0 0.0
  %311 = vmatpush1.msra.mxu0 0.0
  %312 = vmatprep.subr.mxu0 0.0
  %313 = vmatpush1.msra.mxu0 0.0
  %314 = vmatprep.subr.mxu0 0.0
  %315 = vmatpush1.msra.mxu0 0.0
  %316 = vmatprep.mubr.f32.mxu0 0.0
  %317 = vmatmul.mubr.f32.gmra.mrb[0].mxu0 %v124
  %v318 = vpop.f32.mrb[0].mxu0
  %v319 = vadd.f32 %v214, %v318
  %v320 = vpop.f32.mrb[0].mxu0
  %321 = vmatprep.mubr.f32.mxu0 0.0
  %322 = vmatmul.mubr.f32.gmra.mrb[0].mxu0 %v127
  %v323 = vpop.f32.mrb[0].mxu0
  %v324 = vadd.f32 %v219, %v323
  %v325 = vpop.f32.mrb[0].mxu0
  %326 = vmatprep.mubr.f32.mxu0 0.0
  %327 = vmatmul.mubr.f32.gmra.mrb[0].mxu0 %v130
  %v328 = vpop.f32.mrb[0].mxu0
  %v329 = vadd.f32 %v224, %v328
  %v330 = vpop.f32.mrb[0].mxu0
  %331 = vmatprep.mubr.f32.mxu0 0.0
  %332 = vmatmul.mubr.f32.gmra.mrb[0].mxu0 %v133
  %v333 = vpop.f32.mrb[0].mxu0
  %v334 = vadd.f32 %v229, %v333
  %v335 = vpop.f32.mrb[0].mxu0
  %336 = vmatprep.mubr.f32.mxu0 0.0
  %337 = vmatmul.mubr.f32.gmra.mrb[0].mxu0 %v136
  %v338 = vpop.f32.mrb[0].mxu0
  %v339 = vadd.f32 %v234, %v338
  %v340 = vpop.f32.mrb[0].mxu0
  %341 = vmatprep.mubr.f32.mxu0 0.0
  %342 = vmatmul.mubr.f32.gmra.mrb[0].mxu0 %v139
  %v343 = vpop.f32.mrb[0].mxu0
  %v344 = vadd.f32 %v239, %v343
  %v345 = vpop.f32.mrb[0].mxu0
  %346 = vmatprep.mubr.f32.mxu0 0.0
  %347 = vmatmul.mubr.f32.gmra.mrb[0].mxu0 %v142
  %v348 = vpop.f32.mrb[0].mxu0
  %v349 = vadd.f32 %v244, %v348
  %v350 = vpop.f32.mrb[0].mxu0
  %351 = vmatprep.mubr.f32.mxu0 0.0
  %352 = vmatmul.mubr.f32.gmra.mrb[0].mxu0 %v145
  %v353 = vpop.f32.mrb[0].mxu0
  %v354 = vadd.f32 %v249, %v353
  %v355 = vpop.f32.mrb[0].mxu0
  %356 = vdwg.mxu0
  %v357 = vmax.f32 %v319, 0.0
  %v358 = vmax.f32 %v324, 0.0
  %v359 = vmax.f32 %v329, 0.0
  %v360 = vmax.f32 %v334, 0.0
  %v361 = vmax.f32 %v339, 0.0
  %v362 = vmax.f32 %v344, 0.0
  %v363 = vmax.f32 %v349, 0.0
  %v364 = vmax.f32 %v354, 0.0
  %365 = vst [vmem:[%s3] sm:$0xff] %v357
  %366 = vst [vmem:[%s3 + $0x8] sm:$0xff] %v358
  %367 = vst [vmem:[%s3 + $0x10] sm:$0xff] %v359
  %368 = vst [vmem:[%s3 + $0x18] sm:$0xff] %v360
  %369 = vst [vmem:[%s3 + $0x20] sm:$0xff] %v361
  %370 = vst [vmem:[%s3 + $0x28] sm:$0xff] %v362
  %371 = vst [vmem:[%s3 + $0x30] sm:$0xff] %v363
  %372 = vst [vmem:[%s3 + $0x38] sm:$0xff] %v364
  // Predicated region
  $region14: #{resnet_forward.12} parent=0 // pred_check
    _
  $region15: #{resnet_forward.12} parent=0 // pred_check_branch
    %374 = sbr.rel (0) target = $region17
  $region16: #{resnet_forward.12} parent=0 // pred_region
    _
  $region17: #{resnet_forward.12} parent=0 // pred_fallthru
    _
  // Predicated region
  $region18: #{resnet_forward.12} parent=0 // pred_check
    _
  $region19: #{resnet_forward.12} parent=0 // pred_check_branch
    %376 = sbr.rel (0) target = $region21
  $region20: #{resnet_forward.12} parent=0 // pred_region
    _
  $region21: #{resnet_forward.12} parent=0 // pred_fallthru
    _

// kernel: resnet_forward.13
$region0: #{resnet_forward.13}
  #allocation0 [shape = 'u32[]', space=smem, size = 0x4, offset = 0x4, fixed_abs, tag = 'smem constant byte address 0x4 - core index']
  #allocation1 [shape = 'u32[144,128]{1,0:T(1,128)}', space=vmem, size = 0x12000, scoped, tag = 'internal scratch']
  %s0 = inlined_call_operand.vmem [shape: f32[608,128], index: 0, kind: input, shape index: {}]
  %s1 = inlined_call_operand.vmem [shape: f32[64,608], index: 1, kind: input, shape index: {}]
  %s2 = inlined_call_operand.vmem [shape: f32[64,1], index: 2, kind: input, shape index: {}]
  %s3 = inlined_call_operand.vmem [shape: f32[64,128], index: 3, kind: output, shape index: {}]
  %s4 = sld [smem:[#allocation0]]
  $region22: #{resnet_forward.13} parent=0
    _
  %s6 = ssub.s32 1, %s4
  %s7 = scalar_select 0, %s6, %s4
  // Predicated region
  $region2: #{resnet_forward.13} parent=0 // pred_check
    _
  $region3: #{resnet_forward.13} parent=0 // pred_check_branch
    %9 = sbr.rel (0) target = $region5
  $region4: #{resnet_forward.13} parent=0 // pred_region
    _
  $region5: #{resnet_forward.13} parent=0 // pred_fallthru
    _
  // Predicated region
  $region6: #{resnet_forward.13} parent=0 // pred_check
    _
  $region7: #{resnet_forward.13} parent=0 // pred_check_branch
    %11 = sbr.rel (0) target = $region9
  $region8: #{resnet_forward.13} parent=0 // pred_region
    _
  $region9: #{resnet_forward.13} parent=0 // pred_fallthru
    _
  // Predicated region
  $region10: #{resnet_forward.13} parent=0 // pred_check
    _
  $region11: #{resnet_forward.13} parent=0 // pred_check_branch
    %13 = sbr.rel (0) target = $region13
  $region12: #{resnet_forward.13} parent=0 // pred_region
    _
  $region13: #{resnet_forward.13} parent=0 // pred_fallthru
    _
  %v14 = vld [vmem:[%s1] sm:$0xff]
  %v15 = vld [vmem:[%s1 + $0x8] sm:$0xff]
  %v16 = vld [vmem:[%s1 + $0x10] sm:$0xff]
  %v17 = vld [vmem:[%s1 + $0x18] sm:$0xff]
  %v18 = vld [vmem:[%s1 + $0x20] sm:$0xff]
  %v19 = vld [vmem:[%s1 + $0x28] sm:$0xff]
  %v20 = vld [vmem:[%s1 + $0x30] sm:$0xff]
  %v21 = vld [vmem:[%s1 + $0x38] sm:$0xff]
  %v22 = vld [vmem:[%s1 + $0x40] sm:$0xff]
  %v23 = vld [vmem:[%s1 + $0x48] sm:$0xff]
  %v24 = vld [vmem:[%s1 + $0x50] sm:$0xff]
  %v25 = vld [vmem:[%s1 + $0x58] sm:$0xff]
  %v26 = vld [vmem:[%s1 + $0x60] sm:$0xff]
  %v27 = vld [vmem:[%s1 + $0x68] sm:$0xff]
  %v28 = vld [vmem:[%s1 + $0x70] sm:$0xff]
  %v29 = vld [vmem:[%s1 + $0x78] sm:$0xff]
  %v30 = vld [vmem:[%s1 + $0x80] sm:$0xff]
  %v31 = vld [vmem:[%s1 + $0x88] sm:$0xff]
  %v32 = vld [vmem:[%s1 + $0x90] sm:$0xff]
  %v33 = vld [vmem:[%s1 + $0x98] sm:$0xff]
  %v34 = vld [vmem:[%s1 + $0xa0] sm:$0xff]
  %v35 = vld [vmem:[%s1 + $0xa8] sm:$0xff]
  %v36 = vld [vmem:[%s1 + $0xb0] sm:$0xff]
  %v37 = vld [vmem:[%s1 + $0xb8] sm:$0xff]
  %v38 = vld [vmem:[%s1 + $0xc0] sm:$0xff]
  %v39 = vld [vmem:[%s1 + $0xc8] sm:$0xff]
  %v40 = vld [vmem:[%s1 + $0xd0] sm:$0xff]
  %v41 = vld [vmem:[%s1 + $0xd8] sm:$0xff]
  %v42 = vld [vmem:[%s1 + $0xe0] sm:$0xff]
  %v43 = vld [vmem:[%s1 + $0xe8] sm:$0xff]
  %v44 = vld [vmem:[%s1 + $0xf0] sm:$0xff]
  %v45 = vld [vmem:[%s1 + $0xf8] sm:$0xff]
  %v46 = vld [vmem:[%s1 + $0x100] sm:$0xff]
  %v47 = vld [vmem:[%s1 + $0x108] sm:$0xff]
  %v48 = vld [vmem:[%s1 + $0x110] sm:$0xff]
  %v49 = vld [vmem:[%s1 + $0x118] sm:$0xff]
  %v50 = vld [vmem:[%s1 + $0x120] sm:$0xff]
  %v51 = vld [vmem:[%s1 + $0x128] sm:$0xff]
  %v52 = vld [vmem:[%s1 + $0x130] sm:$0xff]
  %v53 = vld [vmem:[%s1 + $0x138] sm:$0xff]
  %v54 = vld [vmem:[%s0] sm:$0xff]
  %v55 = vld [vmem:[%s0 + $0x8] sm:$0xff]
  %v56 = vld [vmem:[%s0 + $0x10] sm:$0xff]
  %v57 = vld [vmem:[%s0 + $0x18] sm:$0xff]
  %v58 = vld [vmem:[%s0 + $0x20] sm:$0xff]
  %v59 = vld [vmem:[%s0 + $0x28] sm:$0xff]
  %v60 = vld [vmem:[%s0 + $0x30] sm:$0xff]
  %v61 = vld [vmem:[%s0 + $0x38] sm:$0xff]
  %v62 = vld [vmem:[%s0 + $0x40] sm:$0xff]
  %v63 = vld [vmem:[%s0 + $0x48] sm:$0xff]
  %v64 = vld [vmem:[%s0 + $0x50] sm:$0xff]
  %v65 = vld [vmem:[%s0 + $0x58] sm:$0xff]
  %v66 = vld [vmem:[%s0 + $0x60] sm:$0xff]
  %v67 = vld [vmem:[%s0 + $0x68] sm:$0xff]
  %v68 = vld [vmem:[%s0 + $0x70] sm:$0xff]
  %v69 = vld [vmem:[%s0 + $0x78] sm:$0xff]
  %v70 = vld [vmem:[%s0 + $0x80] sm:$0xff]
  %v71 = vld [vmem:[%s0 + $0x88] sm:$0xff]
  %v72 = vld [vmem:[%s0 + $0x90] sm:$0xff]
  %v73 = vld [vmem:[%s0 + $0x98] sm:$0xff]
  %v74 = vld [vmem:[%s0 + $0xa0] sm:$0xff]
  %v75 = vld [vmem:[%s0 + $0xa8] sm:$0xff]
  %v76 = vld [vmem:[%s0 + $0xb0] sm:$0xff]
  %v77 = vld [vmem:[%s0 + $0xb8] sm:$0xff]
  %v78 = vld [vmem:[%s0 + $0xc0] sm:$0xff]
  %v79 = vld [vmem:[%s0 + $0xc8] sm:$0xff]
  %v80 = vld [vmem:[%s0 + $0xd0] sm:$0xff]
  %v81 = vld [vmem:[%s0 + $0xd8] sm:$0xff]
  %v82 = vld [vmem:[%s0 + $0xe0] sm:$0xff]
  %v83 = vld [vmem:[%s0 + $0xe8] sm:$0xff]
  %v84 = vld [vmem:[%s0 + $0xf0] sm:$0xff]
  %v85 = vld [vmem:[%s0 + $0xf8] sm:$0xff]
  %v86 = vld [vmem:[%s0 + $0x100] sm:$0xff]
  %v87 = vld [vmem:[%s0 + $0x108] sm:$0xff]
  %v88 = vld [vmem:[%s0 + $0x110] sm:$0xff]
  %v89 = vld [vmem:[%s0 + $0x118] sm:$0xff]
  %v90 = vld [vmem:[%s0 + $0x120] sm:$0xff]
  %v91 = vld [vmem:[%s0 + $0x128] sm:$0xff]
  %v92 = vld [vmem:[%s0 + $0x130] sm:$0xff]
  %v93 = vld [vmem:[%s0 + $0x138] sm:$0xff]
  %v94 = vld [vmem:[%s0 + $0x140] sm:$0xff]
  %v95 = vld [vmem:[%s0 + $0x148] sm:$0xff]
  %v96 = vld [vmem:[%s0 + $0x150] sm:$0xff]
  %v97 = vld [vmem:[%s0 + $0x158] sm:$0xff]
  %v98 = vld [vmem:[%s0 + $0x160] sm:$0xff]
  %v99 = vld [vmem:[%s0 + $0x168] sm:$0xff]
  %v100 = vld [vmem:[%s0 + $0x170] sm:$0xff]
  %v101 = vld [vmem:[%s0 + $0x178] sm:$0xff]
  %v102 = vld [vmem:[%s0 + $0x180] sm:$0xff]
  %v103 = vld [vmem:[%s0 + $0x188] sm:$0xff]
  %v104 = vld [vmem:[%s0 + $0x190] sm:$0xff]
  %v105 = vld [vmem:[%s0 + $0x198] sm:$0xff]
  %v106 = vld [vmem:[%s0 + $0x1a0] sm:$0xff]
  %v107 = vld [vmem:[%s0 + $0x1a8] sm:$0xff]
  %v108 = vld [vmem:[%s0 + $0x1b0] sm:$0xff]
  %v109 = vld [vmem:[%s0 + $0x1b8] sm:$0xff]
  %v110 = vld [vmem:[%s0 + $0x1c0] sm:$0xff]
  %v111 = vld [vmem:[%s0 + $0x1c8] sm:$0xff]
  %v112 = vld [vmem:[%s0 + $0x1d0] sm:$0xff]
  %v113 = vld [vmem:[%s0 + $0x1d8] sm:$0xff]
  %v114 = vld [vmem:[%s0 + $0x1e0] sm:$0xff]
  %v115 = vld [vmem:[%s0 + $0x1e8] sm:$0xff]
  %v116 = vld [vmem:[%s0 + $0x1f0] sm:$0xff]
  %v117 = vld [vmem:[%s0 + $0x1f8] sm:$0xff]
  %v118 = vld [vmem:[%s0 + $0x200] sm:$0xff]
  %v119 = vld [vmem:[%s0 + $0x208] sm:$0xff]
  %v120 = vld [vmem:[%s0 + $0x210] sm:$0xff]
  %v121 = vld [vmem:[%s0 + $0x218] sm:$0xff]
  %v122 = vld [vmem:[%s0 + $0x220] sm:$0xff]
  %v123 = vld [vmem:[%s0 + $0x228] sm:$0xff]
  %v124 = vld [vmem:[%s0 + $0x230] sm:$0xff]
  %v125 = vld [vmem:[%s0 + $0x238] sm:$0xff]
  %v126 = vld [vmem:[%s0 + $0x240] sm:$0xff]
  %v127 = vld [vmem:[%s0 + $0x248] sm:$0xff]
  %v128 = vld [vmem:[%s0 + $0x250] sm:$0xff]
  %v129 = vld [vmem:[%s0 + $0x258] sm:$0xff]
  %v130 = vld [vmem:[%s2] sm:$0xff]
  %v131 = vld [vmem:[%s2 + $0x8] sm:$0xff]
  %v132 = vld [vmem:[%s2 + $0x10] sm:$0xff]
  %v133 = vld [vmem:[%s2 + $0x18] sm:$0xff]
  %v134 = vld [vmem:[%s2 + $0x20] sm:$0xff]
  %v135 = vld [vmem:[%s2 + $0x28] sm:$0xff]
  %v136 = vld [vmem:[%s2 + $0x30] sm:$0xff]
  %v137 = vld [vmem:[%s2 + $0x38] sm:$0xff]
  %139 = vset.pattern.permute.xlu0 0
  %140 = vperm.xlu0 %139, %v130
  %v141 = vpop.permute.xlu0 %140
  %144 = vset.pattern.permute.xlu0 0
  %145 = vperm.xlu0 %144, %v131
  %v146 = vpop.permute.xlu0 %145
  %149 = vset.pattern.permute.xlu0 0
  %150 = vperm.xlu0 %149, %v132
  %v151 = vpop.permute.xlu0 %150
  %154 = vset.pattern.permute.xlu0 0
  %155 = vperm.xlu0 %154, %v133
  %v156 = vpop.permute.xlu0 %155
  %159 = vset.pattern.permute.xlu0 0
  %160 = vperm.xlu0 %159, %v134
  %v161 = vpop.permute.xlu0 %160
  %164 = vset.pattern.permute.xlu0 0
  %165 = vperm.xlu0 %164, %v135
  %v166 = vpop.permute.xlu0 %165
  %169 = vset.pattern.permute.xlu0 0
  %170 = vperm.xlu0 %169, %v136
  %v171 = vpop.permute.xlu0 %170
  %174 = vset.pattern.permute.xlu0 0
  %175 = vperm.xlu0 %174, %v137
  %v176 = vpop.permute.xlu0 %175
  %vm178 = vcmask 785408
  %v180 = vsel %vm178, %v18, 0
  %v183 = vsel %vm178, %v23, 0
  %v186 = vsel %vm178, %v28, 0
  %v189 = vsel %vm178, %v33, 0
  %v192 = vsel %vm178, %v38, 0
  %v195 = vsel %vm178, %v43, 0
  %v198 = vsel %vm178, %v48, 0
  %v201 = vsel %vm178, %v53, 0
  %203 = vmatprep.subr.mxu0 0.0
  %204 = vmatpush1.msra.mxu0 %v54
  %205 = vmatprep.subr.mxu0 0.0
  %206 = vmatpush1.msra.mxu0 %v55
  %207 = vmatprep.subr.mxu0 0.0
  %208 = vmatpush1.msra.mxu0 %v56
  %209 = vmatprep.subr.mxu0 0.0
  %210 = vmatpush1.msra.mxu0 %v57
  %211 = vmatprep.subr.mxu0 0.0
  %212 = vmatpush1.msra.mxu0 %v58
  %213 = vmatprep.subr.mxu0 0.0
  %214 = vmatpush1.msra.mxu0 %v59
  %215 = vmatprep.subr.mxu0 0.0
  %216 = vmatpush1.msra.mxu0 %v60
  %217 = vmatprep.subr.mxu0 0.0
  %218 = vmatpush1.msra.mxu0 %v61
  %219 = vmatprep.subr.mxu0 0.0
  %220 = vmatpush1.msra.mxu0 %v62
  %221 = vmatprep.subr.mxu0 0.0
  %222 = vmatpush1.msra.mxu0 %v63
  %223 = vmatprep.subr.mxu0 0.0
  %224 = vmatpush1.msra.mxu0 %v64
  %225 = vmatprep.subr.mxu0 0.0
  %226 = vmatpush1.msra.mxu0 %v65
  %227 = vmatprep.subr.mxu0 0.0
  %228 = vmatpush1.msra.mxu0 %v66
  %229 = vmatprep.subr.mxu0 0.0
  %230 = vmatpush1.msra.mxu0 %v67
  %231 = vmatprep.subr.mxu0 0.0
  %232 = vmatpush1.msra.mxu0 %v68
  %233 = vmatprep.subr.mxu0 0.0
  %234 = vmatpush1.msra.mxu0 %v69
  %235 = vmatprep.subr.mxu0 0.0
  %236 = vmatpush1.msra.mxu0 %v70
  %237 = vmatprep.subr.mxu0 0.0
  %238 = vmatpush1.msra.mxu0 %v71
  %239 = vmatprep.subr.mxu0 0.0
  %240 = vmatpush1.msra.mxu0 %v72
  %241 = vmatprep.subr.mxu0 0.0
  %242 = vmatpush1.msra.mxu0 %v73
  %243 = vmatprep.subr.mxu0 0.0
  %244 = vmatpush1.msra.mxu0 %v74
  %245 = vmatprep.subr.mxu0 0.0
  %246 = vmatpush1.msra.mxu0 %v75
  %247 = vmatprep.subr.mxu0 0.0
  %248 = vmatpush1.msra.mxu0 %v76
  %249 = vmatprep.subr.mxu0 0.0
  %250 = vmatpush1.msra.mxu0 %v77
  %251 = vmatprep.subr.mxu0 0.0
  %252 = vmatpush1.msra.mxu0 %v78
  %253 = vmatprep.subr.mxu0 0.0
  %254 = vmatpush1.msra.mxu0 %v79
  %255 = vmatprep.subr.mxu0 0.0
  %256 = vmatpush1.msra.mxu0 %v80
  %257 = vmatprep.subr.mxu0 0.0
  %258 = vmatpush1.msra.mxu0 %v81
  %259 = vmatprep.subr.mxu0 0.0
  %260 = vmatpush1.msra.mxu0 %v82
  %261 = vmatprep.subr.mxu0 0.0
  %262 = vmatpush1.msra.mxu0 %v83
  %263 = vmatprep.subr.mxu0 0.0
  %264 = vmatpush1.msra.mxu0 %v84
  %265 = vmatprep.subr.mxu0 0.0
  %266 = vmatpush1.msra.mxu0 %v85
  %267 = vmatprep.mubr.f32.mxu0 %v15
  %268 = vmatmul.mubr.f32.gmra.mrb[0].mxu0 %v14
  %v269 = vpop.f32.mrb[0].mxu0
  %v270 = vadd.f32 %v141, %v269
  %v271 = vpop.f32.mrb[0].mxu0
  %272 = vmatprep.mubr.f32.mxu0 %v20
  %273 = vmatmul.mubr.f32.gmra.mrb[0].mxu0 %v19
  %v274 = vpop.f32.mrb[0].mxu0
  %v275 = vadd.f32 %v146, %v274
  %v276 = vpop.f32.mrb[0].mxu0
  %277 = vmatprep.mubr.f32.mxu0 %v25
  %278 = vmatmul.mubr.f32.gmra.mrb[0].mxu0 %v24
  %v279 = vpop.f32.mrb[0].mxu0
  %v280 = vadd.f32 %v151, %v279
  %v281 = vpop.f32.mrb[0].mxu0
  %282 = vmatprep.mubr.f32.mxu0 %v30
  %283 = vmatmul.mubr.f32.gmra.mrb[0].mxu0 %v29
  %v284 = vpop.f32.mrb[0].mxu0
  %v285 = vadd.f32 %v156, %v284
  %v286 = vpop.f32.mrb[0].mxu0
  %287 = vmatprep.mubr.f32.mxu0 %v35
  %288 = vmatmul.mubr.f32.gmra.mrb[0].mxu0 %v34
  %v289 = vpop.f32.mrb[0].mxu0
  %v290 = vadd.f32 %v161, %v289
  %v291 = vpop.f32.mrb[0].mxu0
  %292 = vmatprep.mubr.f32.mxu0 %v40
  %293 = vmatmul.mubr.f32.gmra.mrb[0].mxu0 %v39
  %v294 = vpop.f32.mrb[0].mxu0
  %v295 = vadd.f32 %v166, %v294
  %v296 = vpop.f32.mrb[0].mxu0
  %297 = vmatprep.mubr.f32.mxu0 %v45
  %298 = vmatmul.mubr.f32.gmra.mrb[0].mxu0 %v44
  %v299 = vpop.f32.mrb[0].mxu0
  %v300 = vadd.f32 %v171, %v299
  %v301 = vpop.f32.mrb[0].mxu0
  %302 = vmatprep.mubr.f32.mxu0 %v50
  %303 = vmatmul.mubr.f32.gmra.mrb[0].mxu0 %v49
  %v304 = vpop.f32.mrb[0].mxu0
  %v305 = vadd.f32 %v176, %v304
  %v306 = vpop.f32.mrb[0].mxu0
  %307 = vdwg.mxu0
  %308 = vmatprep.subr.mxu0 0.0
  %309 = vmatpush1.msra.mxu0 %v86
  %310 = vmatprep.subr.mxu0 0.0
  %311 = vmatpush1.msra.mxu0 %v87
  %312 = vmatprep.subr.mxu0 0.0
  %313 = vmatpush1.msra.mxu0 %v88
  %314 = vmatprep.subr.mxu0 0.0
  %315 = vmatpush1.msra.mxu0 %v89
  %316 = vmatprep.subr.mxu0 0.0
  %317 = vmatpush1.msra.mxu0 %v90
  %318 = vmatprep.subr.mxu0 0.0
  %319 = vmatpush1.msra.mxu0 %v91
  %320 = vmatprep.subr.mxu0 0.0
  %321 = vmatpush1.msra.mxu0 %v92
  %322 = vmatprep.subr.mxu0 0.0
  %323 = vmatpush1.msra.mxu0 %v93
  %324 = vmatprep.subr.mxu0 0.0
  %325 = vmatpush1.msra.mxu0 %v94
  %326 = vmatprep.subr.mxu0 0.0
  %327 = vmatpush1.msra.mxu0 %v95
  %328 = vmatprep.subr.mxu0 0.0
  %329 = vmatpush1.msra.mxu0 %v96
  %330 = vmatprep.subr.mxu0 0.0
  %331 = vmatpush1.msra.mxu0 %v97
  %332 = vmatprep.subr.mxu0 0.0
  %333 = vmatpush1.msra.mxu0 %v98
  %334 = vmatprep.subr.mxu0 0.0
  %335 = vmatpush1.msra.mxu0 %v99
  %336 = vmatprep.subr.mxu0 0.0
  %337 = vmatpush1.msra.mxu0 %v100
  %338 = vmatprep.subr.mxu0 0.0
  %339 = vmatpush1.msra.mxu0 %v101
  %340 = vmatprep.subr.mxu0 0.0
  %341 = vmatpush1.msra.mxu0 %v102
  %342 = vmatprep.subr.mxu0 0.0
  %343 = vmatpush1.msra.mxu0 %v103
  %344 = vmatprep.subr.mxu0 0.0
  %345 = vmatpush1.msra.mxu0 %v104
  %346 = vmatprep.subr.mxu0 0.0
  %347 = vmatpush1.msra.mxu0 %v105
  %348 = vmatprep.subr.mxu0 0.0
  %349 = vmatpush1.msra.mxu0 %v106
  %350 = vmatprep.subr.mxu0 0.0
  %351 = vmatpush1.msra.mxu0 %v107
  %352 = vmatprep.subr.mxu0 0.0
  %353 = vmatpush1.msra.mxu0 %v108
  %354 = vmatprep.subr.mxu0 0.0
  %355 = vmatpush1.msra.mxu0 %v109
  %356 = vmatprep.subr.mxu0 0.0
  %357 = vmatpush1.msra.mxu0 %v110
  %358 = vmatprep.subr.mxu0 0.0
  %359 = vmatpush1.msra.mxu0 %v111
  %360 = vmatprep.subr.mxu0 0.0
  %361 = vmatpush1.msra.mxu0 %v112
  %362 = vmatprep.subr.mxu0 0.0
  %363 = vmatpush1.msra.mxu0 %v113
  %364 = vmatprep.subr.mxu0 0.0
  %365 = vmatpush1.msra.mxu0 %v114
  %366 = vmatprep.subr.mxu0 0.0
  %367 = vmatpush1.msra.mxu0 %v115
  %368 = vmatprep.subr.mxu0 0.0
  %369 = vmatpush1.msra.mxu0 %v116
  %370 = vmatprep.subr.mxu0 0.0
  %371 = vmatpush1.msra.mxu0 %v117
  %372 = vmatprep.mubr.f32.mxu0 %v17
  %373 = vmatmul.mubr.f32.gmra.mrb[0].mxu0 %v16
  %v374 = vpop.f32.mrb[0].mxu0
  %v375 = vadd.f32 %v270, %v374
  %v376 = vpop.f32.mrb[0].mxu0
  %377 = vmatprep.mubr.f32.mxu0 %v22
  %378 = vmatmul.mubr.f32.gmra.mrb[0].mxu0 %v21
  %v379 = vpop.f32.mrb[0].mxu0
  %v380 = vadd.f32 %v275, %v379
  %v381 = vpop.f32.mrb[0].mxu0
  %382 = vmatprep.mubr.f32.mxu0 %v27
  %383 = vmatmul.mubr.f32.gmra.mrb[0].mxu0 %v26
  %v384 = vpop.f32.mrb[0].mxu0
  %v385 = vadd.f32 %v280, %v384
  %v386 = vpop.f32.mrb[0].mxu0
  %387 = vmatprep.mubr.f32.mxu0 %v32
  %388 = vmatmul.mubr.f32.gmra.mrb[0].mxu0 %v31
  %v389 = vpop.f32.mrb[0].mxu0
  %v390 = vadd.f32 %v285, %v389
  %v391 = vpop.f32.mrb[0].mxu0
  %392 = vmatprep.mubr.f32.mxu0 %v37
  %393 = vmatmul.mubr.f32.gmra.mrb[0].mxu0 %v36
  %v394 = vpop.f32.mrb[0].mxu0
  %v395 = vadd.f32 %v290, %v394
  %v396 = vpop.f32.mrb[0].mxu0
  %397 = vmatprep.mubr.f32.mxu0 %v42
  %398 = vmatmul.mubr.f32.gmra.mrb[0].mxu0 %v41
  %v399 = vpop.f32.mrb[0].mxu0
  %v400 = vadd.f32 %v295, %v399
  %v401 = vpop.f32.mrb[0].mxu0
  %402 = vmatprep.mubr.f32.mxu0 %v47
  %403 = vmatmul.mubr.f32.gmra.mrb[0].mxu0 %v46
  %v404 = vpop.f32.mrb[0].mxu0
  %v405 = vadd.f32 %v300, %v404
  %v406 = vpop.f32.mrb[0].mxu0
  %407 = vmatprep.mubr.f32.mxu0 %v52
  %408 = vmatmul.mubr.f32.gmra.mrb[0].mxu0 %v51
  %v409 = vpop.f32.mrb[0].mxu0
  %v410 = vadd.f32 %v305, %v409
  %v411 = vpop.f32.mrb[0].mxu0
  %412 = vdwg.mxu0
  %413 = vmatprep.subr.mxu0 0.0
  %414 = vmatpush1.msra.mxu0 %v118
  %415 = vmatprep.subr.mxu0 0.0
  %416 = vmatpush1.msra.mxu0 %v119
  %417 = vmatprep.subr.mxu0 0.0
  %418 = vmatpush1.msra.mxu0 %v120
  %419 = vmatprep.subr.mxu0 0.0
  %420 = vmatpush1.msra.mxu0 %v121
  %421 = vmatprep.subr.mxu0 0.0
  %422 = vmatpush1.msra.mxu0 %v122
  %423 = vmatprep.subr.mxu0 0.0
  %424 = vmatpush1.msra.mxu0 %v123
  %425 = vmatprep.subr.mxu0 0.0
  %426 = vmatpush1.msra.mxu0 %v124
  %427 = vmatprep.subr.mxu0 0.0
  %428 = vmatpush1.msra.mxu0 %v125
  %429 = vmatprep.subr.mxu0 0.0
  %430 = vmatpush1.msra.mxu0 %v126
  %431 = vmatprep.subr.mxu0 0.0
  %432 = vmatpush1.msra.mxu0 %v127
  %433 = vmatprep.subr.mxu0 0.0
  %434 = vmatpush1.msra.mxu0 %v128
  %435 = vmatprep.subr.mxu0 0.0
  %436 = vmatpush1.msra.mxu0 %v129
  %437 = vmatprep.subr.mxu0 0.0
  %438 = vmatpush1.msra.mxu0 0.0
  %439 = vmatprep.subr.mxu0 0.0
  %440 = vmatpush1.msra.mxu0 0.0
  %441 = vmatprep.subr.mxu0 0.0
  %442 = vmatpush1.msra.mxu0 0.0
  %443 = vmatprep.subr.mxu0 0.0
  %444 = vmatpush1.msra.mxu0 0.0
  %445 = vmatprep.subr.mxu0 0.0
  %446 = vmatpush1.msra.mxu0 0.0
  %447 = vmatprep.subr.mxu0 0.0
  %448 = vmatpush1.msra.mxu0 0.0
  %449 = vmatprep.subr.mxu0 0.0
  %450 = vmatpush1.msra.mxu0 0.0
  %451 = vmatprep.subr.mxu0 0.0
  %452 = vmatpush1.msra.mxu0 0.0
  %453 = vmatprep.subr.mxu0 0.0
  %454 = vmatpush1.msra.mxu0 0.0
  %455 = vmatprep.subr.mxu0 0.0
  %456 = vmatpush1.msra.mxu0 0.0
  %457 = vmatprep.subr.mxu0 0.0
  %458 = vmatpush1.msra.mxu0 0.0
  %459 = vmatprep.subr.mxu0 0.0
  %460 = vmatpush1.msra.mxu0 0.0
  %461 = vmatprep.subr.mxu0 0.0
  %462 = vmatpush1.msra.mxu0 0.0
  %463 = vmatprep.subr.mxu0 0.0
  %464 = vmatpush1.msra.mxu0 0.0
  %465 = vmatprep.subr.mxu0 0.0
  %466 = vmatpush1.msra.mxu0 0.0
  %467 = vmatprep.subr.mxu0 0.0
  %468 = vmatpush1.msra.mxu0 0.0
  %469 = vmatprep.subr.mxu0 0.0
  %470 = vmatpush1.msra.mxu0 0.0
  %471 = vmatprep.subr.mxu0 0.0
  %472 = vmatpush1.msra.mxu0 0.0
  %473 = vmatprep.subr.mxu0 0.0
  %474 = vmatpush1.msra.mxu0 0.0
  %475 = vmatprep.subr.mxu0 0.0
  %476 = vmatpush1.msra.mxu0 0.0
  %477 = vmatprep.mubr.f32.mxu0 0.0
  %478 = vmatmul.mubr.f32.gmra.mrb[0].mxu0 %v180
  %v479 = vpop.f32.mrb[0].mxu0
  %v480 = vadd.f32 %v375, %v479
  %v481 = vpop.f32.mrb[0].mxu0
  %482 = vmatprep.mubr.f32.mxu0 0.0
  %483 = vmatmul.mubr.f32.gmra.mrb[0].mxu0 %v183
  %v484 = vpop.f32.mrb[0].mxu0
  %v485 = vadd.f32 %v380, %v484
  %v486 = vpop.f32.mrb[0].mxu0
  %487 = vmatprep.mubr.f32.mxu0 0.0
  %488 = vmatmul.mubr.f32.gmra.mrb[0].mxu0 %v186
  %v489 = vpop.f32.mrb[0].mxu0
  %v490 = vadd.f32 %v385, %v489
  %v491 = vpop.f32.mrb[0].mxu0
  %492 = vmatprep.mubr.f32.mxu0 0.0
  %493 = vmatmul.mubr.f32.gmra.mrb[0].mxu0 %v189
  %v494 = vpop.f32.mrb[0].mxu0
  %v495 = vadd.f32 %v390, %v494
  %v496 = vpop.f32.mrb[0].mxu0
  %497 = vmatprep.mubr.f32.mxu0 0.0
  %498 = vmatmul.mubr.f32.gmra.mrb[0].mxu0 %v192
  %v499 = vpop.f32.mrb[0].mxu0
  %v500 = vadd.f32 %v395, %v499
  %v501 = vpop.f32.mrb[0].mxu0
  %502 = vmatprep.mubr.f32.mxu0 0.0
  %503 = vmatmul.mubr.f32.gmra.mrb[0].mxu0 %v195
  %v504 = vpop.f32.mrb[0].mxu0
  %v505 = vadd.f32 %v400, %v504
  %v506 = vpop.f32.mrb[0].mxu0
  %507 = vmatprep.mubr.f32.mxu0 0.0
  %508 = vmatmul.mubr.f32.gmra.mrb[0].mxu0 %v198
  %v509 = vpop.f32.mrb[0].mxu0
  %v510 = vadd.f32 %v405, %v509
  %v511 = vpop.f32.mrb[0].mxu0
  %512 = vmatprep.mubr.f32.mxu0 0.0
  %513 = vmatmul.mubr.f32.gmra.mrb[0].mxu0 %v201
  %v514 = vpop.f32.mrb[0].mxu0
  %v515 = vadd.f32 %v410, %v514
  %v516 = vpop.f32.mrb[0].mxu0
  %517 = vdwg.mxu0
  %v518 = vmax.f32 %v480, 0.0
  %v519 = vmax.f32 %v485, 0.0
  %v520 = vmax.f32 %v490, 0.0
  %v521 = vmax.f32 %v495, 0.0
  %v522 = vmax.f32 %v500, 0.0
  %v523 = vmax.f32 %v505, 0.0
  %v524 = vmax.f32 %v510, 0.0
  %v525 = vmax.f32 %v515, 0.0
  %526 = vst [vmem:[%s3] sm:$0xff] %v518
  %527 = vst [vmem:[%s3 + $0x8] sm:$0xff] %v519
  %528 = vst [vmem:[%s3 + $0x10] sm:$0xff] %v520
  %529 = vst [vmem:[%s3 + $0x18] sm:$0xff] %v521
  %530 = vst [vmem:[%s3 + $0x20] sm:$0xff] %v522
  %531 = vst [vmem:[%s3 + $0x28] sm:$0xff] %v523
  %532 = vst [vmem:[%s3 + $0x30] sm:$0xff] %v524
  %533 = vst [vmem:[%s3 + $0x38] sm:$0xff] %v525
  // Predicated region
  $region14: #{resnet_forward.13} parent=0 // pred_check
    _
  $region15: #{resnet_forward.13} parent=0 // pred_check_branch
    %535 = sbr.rel (0) target = $region17
  $region16: #{resnet_forward.13} parent=0 // pred_region
    _
  $region17: #{resnet_forward.13} parent=0 // pred_fallthru
    _
  // Predicated region
  $region18: #{resnet_forward.13} parent=0 // pred_check
    _
  $region19: #{resnet_forward.13} parent=0 // pred_check_branch
    %537 = sbr.rel (0) target = $region21
  $region20: #{resnet_forward.13} parent=0 // pred_region
    _
  $region21: #{resnet_forward.13} parent=0 // pred_fallthru
    _

</llo_original>
